<compile_context>
chip_gen: v7x
topology: tpu7x:2x2x1
jax: 0.10.0
libtpu: 0.0.40
codegen_flags: <defaults>
</compile_context>

<pallas_src>
import math

import jax
import jax.numpy as jnp
from jax import lax
from jax.experimental import pallas as pl
from jax.experimental.pallas import tpu as pltpu

PROTOTYPE_SIZE = 120   # conf.prototype_size
NUM_CLASSES = 10       # conf.num_classes

_HALO = 128            # halo block width (needs >= 2*wh + 2 for k=5)


def _round_up(x, m):
    return (x + m - 1) // m * m


# ----------------------------- Pallas kernels ------------------------------

def _make_conv_pool_kernel(k, cin, wh, tm):
    """Fused VALID conv(kxk) + bias + 2x2/2 max-pool + ReLU, im2col in-kernel.

    Input layout (phase-split, built once on the host):
      x[(2*pi+pj)*cin + ci, n*hh*wh + r*wh + c] = img[n, ci, 2r+pi, 2c+pj]
    For pool corner (di,dj) and kernel tap (kh,kw), the needed patch row is
      x[phase(di+kh, dj+kw)*cin + ci,  m + ((di+kh)//2)*wh + (dj+kw)//2]
    i.e. a pure lane-offset slice of the block (no strided gathers).  Columns
    whose (r, c) fall outside the valid pooled range receive garbage and are
    discarded by the caller.
    """
    def kernel(wt_ref, b_ref, x_ref, xh_ref, o_ref):
        # (4*cin, tm) current block + (4*cin, 128) halo from the next block.
        work = jnp.concatenate([x_ref[...], xh_ref[...]], axis=1)
        w = wt_ref[...]                                   # (cop, k*k*cin) f32
        acc = None
        for di in range(2):
            for dj in range(2):
                pieces = []
                for kh in range(k):
                    for kw in range(k):
                        p = ((di + kh) % 2) * 2 + ((dj + kw) % 2)
                        off = ((di + kh) // 2) * wh + ((dj + kw) // 2)
                        pieces.append(work[p * cin:(p + 1) * cin, off:off + tm])
                patches = jnp.concatenate(pieces, axis=0)  # (k*k*cin, tm)
                corner = jnp.dot(w, patches, preferred_element_type=jnp.float32)
                acc = corner if acc is None else jnp.maximum(acc, corner)
        # max(relu(x_i + b)) == relu(max(x_i) + b): bias added once, relu once.
        o_ref[...] = jnp.maximum(acc + b_ref[...], 0.0).astype(o_ref.dtype)

    return kernel


def _mlp_kernel(x_ref, w1_ref, b1_ref, w2_ref, b2_ref, w3_ref, b3_ref, o_ref):
    """fc3(relu(fc2(relu(fc1(x))))) fused; intermediates stay in VMEM/vregs."""
    h = jnp.dot(x_ref[...], w1_ref[...], preferred_element_type=jnp.float32)
    h = jnp.maximum(h + b1_ref[...], 0.0).astype(jnp.bfloat16)
    h = jnp.dot(h, w2_ref[...], preferred_element_type=jnp.float32)
    h = jnp.maximum(h + b2_ref[...], 0.0).astype(jnp.bfloat16)
    y = jnp.dot(h, w3_ref[...], preferred_element_type=jnp.float32) + b3_ref[...]
    o_ref[...] = y.astype(o_ref.dtype)


# ------------------------------ wrappers ------------------------------------

def _phase_split(x_cnhw, h_use, w_use):
    """(C, N, H, W) -> (4*C, N*(h_use//2)*(w_use//2)) with
    row = (2*pi+pj)*C + ci, col = n*hh*wh + r*wh + c, value = x[ci,n,2r+pi,2c+pj]."""
    c = x_cnhw.shape[0]
    n = x_cnhw.shape[1]
    hh, wh = h_use // 2, w_use // 2
    parts = [x_cnhw[:, :, pi:h_use:2, pj:w_use:2]
             for pi in range(2) for pj in range(2)]         # each (C, N, hh, wh)
    xps = jnp.stack(parts, axis=0).reshape(4 * c, n * hh * wh)
    return xps, hh, wh


def conv_relu_pool(x_cnhw, w_ochw, b, *, h_use, w_use, tm_max=2048):
    """VALID conv (k=5, stride 1) + ReLU + 2x2/2 max-pool, fused, im2col in-kernel.

    x_cnhw: (Cin, N, H, W) f32 (only the top-left h_use x w_use window is used)
    returns: (Cout_pad, N*hh*wh) bf16; column order (n, r, c) over the
             hh x wh pooled grid -- only r < (h_use-k+1)//2, c < (w_use-k+1)//2
             columns (and the first Cout rows) are valid.
    """
    cout, cin, k, _ = w_ochw.shape
    cop = _round_up(cout, 8)
    kkc = k * k * cin

    xps, hh, wh = _phase_split(x_cnhw, h_use, w_use)
    assert 2 * wh + 2 <= _HALO
    m = xps.shape[1]
    # big lane-dense tiles, but keep >=2 grid steps when possible (v7x megacore)
    tm = min(tm_max, max(128, _round_up(pl.cdiv(m, 2), 128)))
    mp = _round_up(m, tm)
    xps = jnp.pad(xps.astype(jnp.float32), ((0, 0), (0, mp - m)))

    # weight -> (Cout_pad, k*k*Cin), column order (kh, kw, ci); padded rows are 0.
    wt = jnp.transpose(w_ochw, (0, 2, 3, 1)).reshape(cout, kkc)
    wt = jnp.pad(wt, ((0, cop - cout), (0, 0))).astype(jnp.float32)
    bm = jnp.pad(b.reshape(cout, 1), ((0, cop - cout), (0, 0))).astype(jnp.float32)

    nblocks = mp // tm
    ratio = tm // _HALO
    kern = _make_conv_pool_kernel(k, cin, wh, tm)

    flops = 2 * 4 * mp * kkc * cop
    bytes_accessed = 4 * cin * mp * 4 + cop * kkc * 4 + cop * 4 + cop * mp * 2

    out = pl.pallas_call(
        kern,
        out_shape=jax.ShapeDtypeStruct((cop, mp), jnp.bfloat16),
        grid=(nblocks,),
        in_specs=[
            pl.BlockSpec((cop, kkc), lambda i: (0, 0)),
            pl.BlockSpec((cop, 1), lambda i: (0, 0)),
            pl.BlockSpec((4 * cin, tm), lambda i: (0, i)),
            # halo: first 128 columns of the next block (clamped in-bounds; the
            # clamped garbage only ever feeds invalid/padding output columns).
            pl.BlockSpec((4 * cin, _HALO),
                         lambda i: (0, jnp.minimum(i + 1, nblocks - 1) * ratio)),
        ],
        out_specs=pl.BlockSpec((cop, tm), lambda i: (0, i)),
        compiler_params=pltpu.CompilerParams(
            dimension_semantics=("parallel",),
            vmem_limit_bytes=32 * 1024 * 1024),
        cost_estimate=pl.CostEstimate(flops=flops, transcendentals=0,
                                      bytes_accessed=bytes_accessed),
    )(wt, bm, xps, xps)
    return out[:, :m], hh, wh


def mlp_fused(x, w1, b1, w2, b2, w3, b3, *, tb_max=512):
    """x: (N, 400) -> (N, num_classes) f32; fc1/fc2/fc3 fused, bf16 streams."""
    n, d_in = x.shape
    d1, d2, d_out = w1.shape[1], w2.shape[1], w3.shape[1]
    d_out_p = _round_up(d_out, 128)                 # lane-dense output stores
    tb = min(tb_max, _round_up(n, 8))
    n_pad = _round_up(n, tb)

    xp = jnp.pad(x.astype(jnp.bfloat16), ((0, n_pad - n), (0, 0)))
    w1b = w1.astype(jnp.bfloat16)
    w2b = w2.astype(jnp.bfloat16)
    w3b = jnp.pad(w3, ((0, 0), (0, d_out_p - d_out))).astype(jnp.bfloat16)
    b1m = b1.reshape(1, d1).astype(jnp.float32)
    b2m = b2.reshape(1, d2).astype(jnp.float32)
    b3m = jnp.pad(b3, (0, d_out_p - d_out)).reshape(1, d_out_p).astype(jnp.float32)

    full = lambda i: (0, 0)
    row = lambda i: (i, 0)
    flops = 2 * n_pad * (d_in * d1 + d1 * d2 + d2 * d_out_p)
    bytes_accessed = (n_pad * d_in * 2 + n_pad * d_out_p * 4
                      + (d_in * d1 + d1 * d2 + d2 * d_out_p) * 2
                      + (d1 + d2 + d_out_p) * 4)

    out = pl.pallas_call(
        _mlp_kernel,
        out_shape=jax.ShapeDtypeStruct((n_pad, d_out_p), jnp.float32),
        grid=(n_pad // tb,),
        in_specs=[
            pl.BlockSpec((tb, d_in), row),
            pl.BlockSpec((d_in, d1), full),
            pl.BlockSpec((1, d1), full),
            pl.BlockSpec((d1, d2), full),
            pl.BlockSpec((1, d2), full),
            pl.BlockSpec((d2, d_out_p), full),
            pl.BlockSpec((1, d_out_p), full),
        ],
        out_specs=pl.BlockSpec((tb, d_out_p), row),
        compiler_params=pltpu.CompilerParams(
            dimension_semantics=("parallel",),
            vmem_limit_bytes=32 * 1024 * 1024),
        cost_estimate=pl.CostEstimate(flops=flops, transcendentals=0,
                                      bytes_accessed=bytes_accessed),
    )(xp, w1b, b1m, w2b, b2m, w3b, b3m)
    return out[:n, :d_out]


# ------------------------------ parameters ----------------------------------

def init_params(key):
    def uniform(key, shape, fan_in):
        bound = 1.0 / math.sqrt(fan_in)
        return jax.random.uniform(key, shape, jnp.float32, -bound, bound)

    keys = jax.random.split(key, 10)
    p = {}
    p["conv1_w"] = uniform(keys[0], (6, 3, 5, 5), 3 * 5 * 5)
    p["conv1_b"] = uniform(keys[1], (6,), 3 * 5 * 5)
    p["conv2_w"] = uniform(keys[2], (16, 6, 5, 5), 6 * 5 * 5)
    p["conv2_b"] = uniform(keys[3], (16,), 6 * 5 * 5)
    p["fc1_w"] = uniform(keys[4], (16 * 5 * 5, PROTOTYPE_SIZE), 16 * 5 * 5)
    p["fc1_b"] = uniform(keys[5], (PROTOTYPE_SIZE,), 16 * 5 * 5)
    p["fc2_w"] = uniform(keys[6], (PROTOTYPE_SIZE, 84), PROTOTYPE_SIZE)
    p["fc2_b"] = uniform(keys[7], (84,), PROTOTYPE_SIZE)
    p["fc3_w"] = uniform(keys[8], (84, NUM_CLASSES), 84)
    p["fc3_b"] = uniform(keys[9], (NUM_CLASSES,), 84)
    return p


# ------------------------------ forward pass ---------------------------------

def net_digit5_forward(params, x_nchw):
    """x_nchw: (N, 3, 32, 32) f32 -> (N, NUM_CLASSES) f32."""
    n = x_nchw.shape[0]
    x1 = jnp.transpose(x_nchw, (1, 0, 2, 3))                       # (3, N, 32, 32)

    # conv1 + ReLU + pool1 -> (8, N*16*16) bf16; valid: channels <6, 14x14 grid
    y1, hh1, wh1 = conv_relu_pool(x1, params["conv1_w"], params["conv1_b"],
                                  h_use=32, w_use=32)
    x2 = y1[:6].reshape(6, n, hh1, wh1).astype(jnp.float32)        # (6, N, 16, 16)

    # conv2 + ReLU + pool2 -> (16, N*7*7) bf16; valid: 5x5 grid
    y2, hh2, wh2 = conv_relu_pool(x2, params["conv2_w"], params["conv2_b"],
                                  h_use=14, w_use=14)

    # torch flatten order (c, h, w): (16, N, 7, 7)[:, :, :5, :5] -> (N, 400)
    feat = (y2.reshape(16, n, hh2, wh2)[:, :, :5, :5]
            .transpose(1, 0, 2, 3).reshape(n, 16 * 5 * 5))

    return mlp_fused(feat,
                     params["fc1_w"], params["fc1_b"],
                     params["fc2_w"], params["fc2_b"],
                     params["fc3_w"], params["fc3_b"])


# ------------------------------ reference ------------------------------------

def net_digit5_reference(params, x):
    y = lax.conv_general_dilated(x, params["conv1_w"], (1, 1), "VALID")
    y = jnp.maximum(y + params["conv1_b"].reshape(1, -1, 1, 1), 0.0)
    y = lax.reduce_window(y, -jnp.inf, lax.max, (1, 1, 2, 2), (1, 1, 2, 2), "VALID")
    y = lax.conv_general_dilated(y, params["conv2_w"], (1, 1), "VALID")
    y = jnp.maximum(y + params["conv2_b"].reshape(1, -1, 1, 1), 0.0)
    y = lax.reduce_window(y, -jnp.inf, lax.max, (1, 1, 2, 2), (1, 1, 2, 2), "VALID")
    f = y.reshape(y.shape[0], -1)
    h = jnp.maximum(f @ params["fc1_w"] + params["fc1_b"], 0.0)
    h = jnp.maximum(h @ params["fc2_w"] + params["fc2_b"], 0.0)
    return h @ params["fc3_w"] + params["fc3_b"]


if __name__ == "__main__":
    key = jax.random.PRNGKey(0)
    pkey, xkey = jax.random.split(key)
    params = init_params(pkey)
    # Input must be 32x32x3 so the flattened conv output is 16*5*5 = 400.
    x = jax.random.normal(xkey, (2, 3, 32, 32), jnp.float32)
    out = jax.jit(net_digit5_forward)(params, x)
    jax.block_until_ready(out)
    assert out.shape == (2, NUM_CLASSES) and out.dtype == jnp.float32
    ref = net_digit5_reference(params, x)
    err = float(jnp.max(jnp.abs(out - ref)))
    assert err < 0.15, f"max abs error vs reference: {err}"
    print("KERNEL_OK")
</pallas_src>

<mosaic_0001>
module attributes {stable_mosaic.version = 11 : i64} {
  func.func @kernel(%arg0: i32, %arg1: memref<8x75xf32, #tpu.memory_space<vmem>>, %arg2: memref<8x1xf32, #tpu.memory_space<vmem>>, %arg3: memref<12x256xf32, #tpu.memory_space<vmem>>, %arg4: memref<12x128xf32, #tpu.memory_space<vmem>>, %arg5: memref<8x256xbf16, #tpu.memory_space<vmem>>) attributes {dimension_semantics = [#tpu.dimension_semantics<parallel>], iteration_bounds = array<i64: 2>, scalar_prefetch = 0 : i64, scratch_operands = 0 : i64, tpu.core_type = #tpu.core_type<tc>, window_params = [{pipeline_mode = #tpu.pipeline_mode<synchronous>, transform_indices = @transform_0, window_bounds = array<i64: 8, 75>}, {pipeline_mode = #tpu.pipeline_mode<synchronous>, transform_indices = @transform_1, window_bounds = array<i64: 8, 1>}, {transform_indices = @transform_2, window_bounds = array<i64: 12, 256>}, {transform_indices = @transform_3, window_bounds = array<i64: 12, 128>}, {transform_indices = @transform_4, window_bounds = array<i64: 8, 256>}]} {
    %c0 = arith.constant 0 : index
    %c0_0 = arith.constant 0 : index
    %0 = vector.load %arg3[%c0, %c0_0] : memref<12x256xf32, #tpu.memory_space<vmem>>, vector<12x256xf32>
    %c0_1 = arith.constant 0 : index
    %c0_2 = arith.constant 0 : index
    %1 = vector.load %arg4[%c0_1, %c0_2] : memref<12x128xf32, #tpu.memory_space<vmem>>, vector<12x128xf32>
    %2 = tpu.concatenate %0, %1 in 1 : vector<12x256xf32>, vector<12x128xf32> -> vector<12x384xf32>
    %c0_3 = arith.constant 0 : index
    %c0_4 = arith.constant 0 : index
    %3 = vector.load %arg1[%c0_3, %c0_4] : memref<8x75xf32, #tpu.memory_space<vmem>>, vector<8x75xf32>
    %4 = vector.extract_strided_slice %2 {offsets = [0, 0], sizes = [3, 256], strides = [1, 1]} : vector<12x384xf32> to vector<3x256xf32>
    %5 = vector.extract_strided_slice %2 {offsets = [3, 0], sizes = [3, 256], strides = [1, 1]} : vector<12x384xf32> to vector<3x256xf32>
    %6 = vector.extract_strided_slice %2 {offsets = [0, 1], sizes = [3, 256], strides = [1, 1]} : vector<12x384xf32> to vector<3x256xf32>
    %7 = vector.extract_strided_slice %2 {offsets = [3, 1], sizes = [3, 256], strides = [1, 1]} : vector<12x384xf32> to vector<3x256xf32>
    %8 = vector.extract_strided_slice %2 {offsets = [0, 2], sizes = [3, 256], strides = [1, 1]} : vector<12x384xf32> to vector<3x256xf32>
    %9 = vector.extract_strided_slice %2 {offsets = [6, 0], sizes = [3, 256], strides = [1, 1]} : vector<12x384xf32> to vector<3x256xf32>
    %10 = vector.extract_strided_slice %2 {offsets = [9, 0], sizes = [3, 256], strides = [1, 1]} : vector<12x384xf32> to vector<3x256xf32>
    %11 = vector.extract_strided_slice %2 {offsets = [6, 1], sizes = [3, 256], strides = [1, 1]} : vector<12x384xf32> to vector<3x256xf32>
    %12 = vector.extract_strided_slice %2 {offsets = [9, 1], sizes = [3, 256], strides = [1, 1]} : vector<12x384xf32> to vector<3x256xf32>
    %13 = vector.extract_strided_slice %2 {offsets = [6, 2], sizes = [3, 256], strides = [1, 1]} : vector<12x384xf32> to vector<3x256xf32>
    %14 = vector.extract_strided_slice %2 {offsets = [0, 16], sizes = [3, 256], strides = [1, 1]} : vector<12x384xf32> to vector<3x256xf32>
    %15 = vector.extract_strided_slice %2 {offsets = [3, 16], sizes = [3, 256], strides = [1, 1]} : vector<12x384xf32> to vector<3x256xf32>
    %16 = vector.extract_strided_slice %2 {offsets = [0, 17], sizes = [3, 256], strides = [1, 1]} : vector<12x384xf32> to vector<3x256xf32>
    %17 = vector.extract_strided_slice %2 {offsets = [3, 17], sizes = [3, 256], strides = [1, 1]} : vector<12x384xf32> to vector<3x256xf32>
    %18 = vector.extract_strided_slice %2 {offsets = [0, 18], sizes = [3, 256], strides = [1, 1]} : vector<12x384xf32> to vector<3x256xf32>
    %19 = vector.extract_strided_slice %2 {offsets = [6, 16], sizes = [3, 256], strides = [1, 1]} : vector<12x384xf32> to vector<3x256xf32>
    %20 = vector.extract_strided_slice %2 {offsets = [9, 16], sizes = [3, 256], strides = [1, 1]} : vector<12x384xf32> to vector<3x256xf32>
    %21 = vector.extract_strided_slice %2 {offsets = [6, 17], sizes = [3, 256], strides = [1, 1]} : vector<12x384xf32> to vector<3x256xf32>
    %22 = vector.extract_strided_slice %2 {offsets = [9, 17], sizes = [3, 256], strides = [1, 1]} : vector<12x384xf32> to vector<3x256xf32>
    %23 = vector.extract_strided_slice %2 {offsets = [6, 18], sizes = [3, 256], strides = [1, 1]} : vector<12x384xf32> to vector<3x256xf32>
    %24 = vector.extract_strided_slice %2 {offsets = [0, 32], sizes = [3, 256], strides = [1, 1]} : vector<12x384xf32> to vector<3x256xf32>
    %25 = vector.extract_strided_slice %2 {offsets = [3, 32], sizes = [3, 256], strides = [1, 1]} : vector<12x384xf32> to vector<3x256xf32>
    %26 = vector.extract_strided_slice %2 {offsets = [0, 33], sizes = [3, 256], strides = [1, 1]} : vector<12x384xf32> to vector<3x256xf32>
    %27 = vector.extract_strided_slice %2 {offsets = [3, 33], sizes = [3, 256], strides = [1, 1]} : vector<12x384xf32> to vector<3x256xf32>
    %28 = vector.extract_strided_slice %2 {offsets = [0, 34], sizes = [3, 256], strides = [1, 1]} : vector<12x384xf32> to vector<3x256xf32>
    %29 = tpu.concatenate %4, %5, %6, %7, %8, %9, %10, %11, %12, %13, %14, %15, %16, %17, %18, %19 in 0 : vector<3x256xf32>, vector<3x256xf32>, vector<3x256xf32>, vector<3x256xf32>, vector<3x256xf32>, vector<3x256xf32>, vector<3x256xf32>, vector<3x256xf32>, vector<3x256xf32>, vector<3x256xf32>, vector<3x256xf32>, vector<3x256xf32>, vector<3x256xf32>, vector<3x256xf32>, vector<3x256xf32>, vector<3x256xf32> -> vector<48x256xf32>
    %30 = tpu.concatenate %20, %21, %22, %23, %24, %25, %26, %27, %28 in 0 : vector<3x256xf32>, vector<3x256xf32>, vector<3x256xf32>, vector<3x256xf32>, vector<3x256xf32>, vector<3x256xf32>, vector<3x256xf32>, vector<3x256xf32>, vector<3x256xf32> -> vector<27x256xf32>
    %31 = tpu.concatenate %29, %30 in 0 : vector<48x256xf32>, vector<27x256xf32> -> vector<75x256xf32>
    %cst = arith.constant dense<0.000000e+00> : vector<8x256xf32>
    %32 = tpu.matmul %3, %31, %cst {dimension_numbers = #tpu.dot_dimension_numbers<[1], [0], [0], [1], [0, 0, 1, 1], [], []>} : vector<8x75xf32>, vector<75x256xf32>, vector<8x256xf32> -> vector<8x256xf32>
    %33 = vector.extract_strided_slice %2 {offsets = [3, 0], sizes = [3, 256], strides = [1, 1]} : vector<12x384xf32> to vector<3x256xf32>
    %34 = vector.extract_strided_slice %2 {offsets = [0, 1], sizes = [3, 256], strides = [1, 1]} : vector<12x384xf32> to vector<3x256xf32>
    %35 = vector.extract_strided_slice %2 {offsets = [3, 1], sizes = [3, 256], strides = [1, 1]} : vector<12x384xf32> to vector<3x256xf32>
    %36 = vector.extract_strided_slice %2 {offsets = [0, 2], sizes = [3, 256], strides = [1, 1]} : vector<12x384xf32> to vector<3x256xf32>
    %37 = vector.extract_strided_slice %2 {offsets = [3, 2], sizes = [3, 256], strides = [1, 1]} : vector<12x384xf32> to vector<3x256xf32>
    %38 = vector.extract_strided_slice %2 {offsets = [9, 0], sizes = [3, 256], strides = [1, 1]} : vector<12x384xf32> to vector<3x256xf32>
    %39 = vector.extract_strided_slice %2 {offsets = [6, 1], sizes = [3, 256], strides = [1, 1]} : vector<12x384xf32> to vector<3x256xf32>
    %40 = vector.extract_strided_slice %2 {offsets = [9, 1], sizes = [3, 256], strides = [1, 1]} : vector<12x384xf32> to vector<3x256xf32>
    %41 = vector.extract_strided_slice %2 {offsets = [6, 2], sizes = [3, 256], strides = [1, 1]} : vector<12x384xf32> to vector<3x256xf32>
    %42 = vector.extract_strided_slice %2 {offsets = [9, 2], sizes = [3, 256], strides = [1, 1]} : vector<12x384xf32> to vector<3x256xf32>
    %43 = vector.extract_strided_slice %2 {offsets = [3, 16], sizes = [3, 256], strides = [1, 1]} : vector<12x384xf32> to vector<3x256xf32>
    %44 = vector.extract_strided_slice %2 {offsets = [0, 17], sizes = [3, 256], strides = [1, 1]} : vector<12x384xf32> to vector<3x256xf32>
    %45 = vector.extract_strided_slice %2 {offsets = [3, 17], sizes = [3, 256], strides = [1, 1]} : vector<12x384xf32> to vector<3x256xf32>
    %46 = vector.extract_strided_slice %2 {offsets = [0, 18], sizes = [3, 256], strides = [1, 1]} : vector<12x384xf32> to vector<3x256xf32>
    %47 = vector.extract_strided_slice %2 {offsets = [3, 18], sizes = [3, 256], strides = [1, 1]} : vector<12x384xf32> to vector<3x256xf32>
    %48 = vector.extract_strided_slice %2 {offsets = [9, 16], sizes = [3, 256], strides = [1, 1]} : vector<12x384xf32> to vector<3x256xf32>
    %49 = vector.extract_strided_slice %2 {offsets = [6, 17], sizes = [3, 256], strides = [1, 1]} : vector<12x384xf32> to vector<3x256xf32>
    %50 = vector.extract_strided_slice %2 {offsets = [9, 17], sizes = [3, 256], strides = [1, 1]} : vector<12x384xf32> to vector<3x256xf32>
    %51 = vector.extract_strided_slice %2 {offsets = [6, 18], sizes = [3, 256], strides = [1, 1]} : vector<12x384xf32> to vector<3x256xf32>
    %52 = vector.extract_strided_slice %2 {offsets = [9, 18], sizes = [3, 256], strides = [1, 1]} : vector<12x384xf32> to vector<3x256xf32>
    %53 = vector.extract_strided_slice %2 {offsets = [3, 32], sizes = [3, 256], strides = [1, 1]} : vector<12x384xf32> to vector<3x256xf32>
    %54 = vector.extract_strided_slice %2 {offsets = [0, 33], sizes = [3, 256], strides = [1, 1]} : vector<12x384xf32> to vector<3x256xf32>
    %55 = vector.extract_strided_slice %2 {offsets = [3, 33], sizes = [3, 256], strides = [1, 1]} : vector<12x384xf32> to vector<3x256xf32>
    %56 = vector.extract_strided_slice %2 {offsets = [0, 34], sizes = [3, 256], strides = [1, 1]} : vector<12x384xf32> to vector<3x256xf32>
    %57 = vector.extract_strided_slice %2 {offsets = [3, 34], sizes = [3, 256], strides = [1, 1]} : vector<12x384xf32> to vector<3x256xf32>
    %58 = tpu.concatenate %33, %34, %35, %36, %37, %38, %39, %40, %41, %42, %43, %44, %45, %46, %47, %48 in 0 : vector<3x256xf32>, vector<3x256xf32>, vector<3x256xf32>, vector<3x256xf32>, vector<3x256xf32>, vector<3x256xf32>, vector<3x256xf32>, vector<3x256xf32>, vector<3x256xf32>, vector<3x256xf32>, vector<3x256xf32>, vector<3x256xf32>, vector<3x256xf32>, vector<3x256xf32>, vector<3x256xf32>, vector<3x256xf32> -> vector<48x256xf32>
    %59 = tpu.concatenate %49, %50, %51, %52, %53, %54, %55, %56, %57 in 0 : vector<3x256xf32>, vector<3x256xf32>, vector<3x256xf32>, vector<3x256xf32>, vector<3x256xf32>, vector<3x256xf32>, vector<3x256xf32>, vector<3x256xf32>, vector<3x256xf32> -> vector<27x256xf32>
    %60 = tpu.concatenate %58, %59 in 0 : vector<48x256xf32>, vector<27x256xf32> -> vector<75x256xf32>
    %cst_5 = arith.constant dense<0.000000e+00> : vector<8x256xf32>
    %61 = tpu.matmul %3, %60, %cst_5 {dimension_numbers = #tpu.dot_dimension_numbers<[1], [0], [0], [1], [0, 0, 1, 1], [], []>} : vector<8x75xf32>, vector<75x256xf32>, vector<8x256xf32> -> vector<8x256xf32>
    %62 = arith.maximumf %32, %61 : vector<8x256xf32>
    %63 = vector.extract_strided_slice %2 {offsets = [6, 0], sizes = [3, 256], strides = [1, 1]} : vector<12x384xf32> to vector<3x256xf32>
    %64 = vector.extract_strided_slice %2 {offsets = [9, 0], sizes = [3, 256], strides = [1, 1]} : vector<12x384xf32> to vector<3x256xf32>
    %65 = vector.extract_strided_slice %2 {offsets = [6, 1], sizes = [3, 256], strides = [1, 1]} : vector<12x384xf32> to vector<3x256xf32>
    %66 = vector.extract_strided_slice %2 {offsets = [9, 1], sizes = [3, 256], strides = [1, 1]} : vector<12x384xf32> to vector<3x256xf32>
    %67 = vector.extract_strided_slice %2 {offsets = [6, 2], sizes = [3, 256], strides = [1, 1]} : vector<12x384xf32> to vector<3x256xf32>
    %68 = vector.extract_strided_slice %2 {offsets = [0, 16], sizes = [3, 256], strides = [1, 1]} : vector<12x384xf32> to vector<3x256xf32>
    %69 = vector.extract_strided_slice %2 {offsets = [3, 16], sizes = [3, 256], strides = [1, 1]} : vector<12x384xf32> to vector<3x256xf32>
    %70 = vector.extract_strided_slice %2 {offsets = [0, 17], sizes = [3, 256], strides = [1, 1]} : vector<12x384xf32> to vector<3x256xf32>
    %71 = vector.extract_strided_slice %2 {offsets = [3, 17], sizes = [3, 256], strides = [1, 1]} : vector<12x384xf32> to vector<3x256xf32>
    %72 = vector.extract_strided_slice %2 {offsets = [0, 18], sizes = [3, 256], strides = [1, 1]} : vector<12x384xf32> to vector<3x256xf32>
    %73 = vector.extract_strided_slice %2 {offsets = [6, 16], sizes = [3, 256], strides = [1, 1]} : vector<12x384xf32> to vector<3x256xf32>
    %74 = vector.extract_strided_slice %2 {offsets = [9, 16], sizes = [3, 256], strides = [1, 1]} : vector<12x384xf32> to vector<3x256xf32>
    %75 = vector.extract_strided_slice %2 {offsets = [6, 17], sizes = [3, 256], strides = [1, 1]} : vector<12x384xf32> to vector<3x256xf32>
    %76 = vector.extract_strided_slice %2 {offsets = [9, 17], sizes = [3, 256], strides = [1, 1]} : vector<12x384xf32> to vector<3x256xf32>
    %77 = vector.extract_strided_slice %2 {offsets = [6, 18], sizes = [3, 256], strides = [1, 1]} : vector<12x384xf32> to vector<3x256xf32>
    %78 = vector.extract_strided_slice %2 {offsets = [0, 32], sizes = [3, 256], strides = [1, 1]} : vector<12x384xf32> to vector<3x256xf32>
    %79 = vector.extract_strided_slice %2 {offsets = [3, 32], sizes = [3, 256], strides = [1, 1]} : vector<12x384xf32> to vector<3x256xf32>
    %80 = vector.extract_strided_slice %2 {offsets = [0, 33], sizes = [3, 256], strides = [1, 1]} : vector<12x384xf32> to vector<3x256xf32>
    %81 = vector.extract_strided_slice %2 {offsets = [3, 33], sizes = [3, 256], strides = [1, 1]} : vector<12x384xf32> to vector<3x256xf32>
    %82 = vector.extract_strided_slice %2 {offsets = [0, 34], sizes = [3, 256], strides = [1, 1]} : vector<12x384xf32> to vector<3x256xf32>
    %83 = vector.extract_strided_slice %2 {offsets = [6, 32], sizes = [3, 256], strides = [1, 1]} : vector<12x384xf32> to vector<3x256xf32>
    %84 = vector.extract_strided_slice %2 {offsets = [9, 32], sizes = [3, 256], strides = [1, 1]} : vector<12x384xf32> to vector<3x256xf32>
    %85 = vector.extract_strided_slice %2 {offsets = [6, 33], sizes = [3, 256], strides = [1, 1]} : vector<12x384xf32> to vector<3x256xf32>
    %86 = vector.extract_strided_slice %2 {offsets = [9, 33], sizes = [3, 256], strides = [1, 1]} : vector<12x384xf32> to vector<3x256xf32>
    %87 = vector.extract_strided_slice %2 {offsets = [6, 34], sizes = [3, 256], strides = [1, 1]} : vector<12x384xf32> to vector<3x256xf32>
    %88 = tpu.concatenate %63, %64, %65, %66, %67, %68, %69, %70, %71, %72, %73, %74, %75, %76, %77, %78 in 0 : vector<3x256xf32>, vector<3x256xf32>, vector<3x256xf32>, vector<3x256xf32>, vector<3x256xf32>, vector<3x256xf32>, vector<3x256xf32>, vector<3x256xf32>, vector<3x256xf32>, vector<3x256xf32>, vector<3x256xf32>, vector<3x256xf32>, vector<3x256xf32>, vector<3x256xf32>, vector<3x256xf32>, vector<3x256xf32> -> vector<48x256xf32>
    %89 = tpu.concatenate %79, %80, %81, %82, %83, %84, %85, %86, %87 in 0 : vector<3x256xf32>, vector<3x256xf32>, vector<3x256xf32>, vector<3x256xf32>, vector<3x256xf32>, vector<3x256xf32>, vector<3x256xf32>, vector<3x256xf32>, vector<3x256xf32> -> vector<27x256xf32>
    %90 = tpu.concatenate %88, %89 in 0 : vector<48x256xf32>, vector<27x256xf32> -> vector<75x256xf32>
    %cst_6 = arith.constant dense<0.000000e+00> : vector<8x256xf32>
    %91 = tpu.matmul %3, %90, %cst_6 {dimension_numbers = #tpu.dot_dimension_numbers<[1], [0], [0], [1], [0, 0, 1, 1], [], []>} : vector<8x75xf32>, vector<75x256xf32>, vector<8x256xf32> -> vector<8x256xf32>
    %92 = arith.maximumf %62, %91 : vector<8x256xf32>
    %93 = vector.extract_strided_slice %2 {offsets = [9, 0], sizes = [3, 256], strides = [1, 1]} : vector<12x384xf32> to vector<3x256xf32>
    %94 = vector.extract_strided_slice %2 {offsets = [6, 1], sizes = [3, 256], strides = [1, 1]} : vector<12x384xf32> to vector<3x256xf32>
    %95 = vector.extract_strided_slice %2 {offsets = [9, 1], sizes = [3, 256], strides = [1, 1]} : vector<12x384xf32> to vector<3x256xf32>
    %96 = vector.extract_strided_slice %2 {offsets = [6, 2], sizes = [3, 256], strides = [1, 1]} : vector<12x384xf32> to vector<3x256xf32>
    %97 = vector.extract_strided_slice %2 {offsets = [9, 2], sizes = [3, 256], strides = [1, 1]} : vector<12x384xf32> to vector<3x256xf32>
    %98 = vector.extract_strided_slice %2 {offsets = [3, 16], sizes = [3, 256], strides = [1, 1]} : vector<12x384xf32> to vector<3x256xf32>
    %99 = vector.extract_strided_slice %2 {offsets = [0, 17], sizes = [3, 256], strides = [1, 1]} : vector<12x384xf32> to vector<3x256xf32>
    %100 = vector.extract_strided_slice %2 {offsets = [3, 17], sizes = [3, 256], strides = [1, 1]} : vector<12x384xf32> to vector<3x256xf32>
    %101 = vector.extract_strided_slice %2 {offsets = [0, 18], sizes = [3, 256], strides = [1, 1]} : vector<12x384xf32> to vector<3x256xf32>
    %102 = vector.extract_strided_slice %2 {offsets = [3, 18], sizes = [3, 256], strides = [1, 1]} : vector<12x384xf32> to vector<3x256xf32>
    %103 = vector.extract_strided_slice %2 {offsets = [9, 16], sizes = [3, 256], strides = [1, 1]} : vector<12x384xf32> to vector<3x256xf32>
    %104 = vector.extract_strided_slice %2 {offsets = [6, 17], sizes = [3, 256], strides = [1, 1]} : vector<12x384xf32> to vector<3x256xf32>
    %105 = vector.extract_strided_slice %2 {offsets = [9, 17], sizes = [3, 256], strides = [1, 1]} : vector<12x384xf32> to vector<3x256xf32>
    %106 = vector.extract_strided_slice %2 {offsets = [6, 18], sizes = [3, 256], strides = [1, 1]} : vector<12x384xf32> to vector<3x256xf32>
    %107 = vector.extract_strided_slice %2 {offsets = [9, 18], sizes = [3, 256], strides = [1, 1]} : vector<12x384xf32> to vector<3x256xf32>
    %108 = vector.extract_strided_slice %2 {offsets = [3, 32], sizes = [3, 256], strides = [1, 1]} : vector<12x384xf32> to vector<3x256xf32>
    %109 = vector.extract_strided_slice %2 {offsets = [0, 33], sizes = [3, 256], strides = [1, 1]} : vector<12x384xf32> to vector<3x256xf32>
    %110 = vector.extract_strided_slice %2 {offsets = [3, 33], sizes = [3, 256], strides = [1, 1]} : vector<12x384xf32> to vector<3x256xf32>
    %111 = vector.extract_strided_slice %2 {offsets = [0, 34], sizes = [3, 256], strides = [1, 1]} : vector<12x384xf32> to vector<3x256xf32>
    %112 = vector.extract_strided_slice %2 {offsets = [3, 34], sizes = [3, 256], strides = [1, 1]} : vector<12x384xf32> to vector<3x256xf32>
    %113 = vector.extract_strided_slice %2 {offsets = [9, 32], sizes = [3, 256], strides = [1, 1]} : vector<12x384xf32> to vector<3x256xf32>
    %114 = vector.extract_strided_slice %2 {offsets = [6, 33], sizes = [3, 256], strides = [1, 1]} : vector<12x384xf32> to vector<3x256xf32>
    %115 = vector.extract_strided_slice %2 {offsets = [9, 33], sizes = [3, 256], strides = [1, 1]} : vector<12x384xf32> to vector<3x256xf32>
    %116 = vector.extract_strided_slice %2 {offsets = [6, 34], sizes = [3, 256], strides = [1, 1]} : vector<12x384xf32> to vector<3x256xf32>
    %117 = vector.extract_strided_slice %2 {offsets = [9, 34], sizes = [3, 256], strides = [1, 1]} : vector<12x384xf32> to vector<3x256xf32>
    %118 = tpu.concatenate %93, %94, %95, %96, %97, %98, %99, %100, %101, %102, %103, %104, %105, %106, %107, %108 in 0 : vector<3x256xf32>, vector<3x256xf32>, vector<3x256xf32>, vector<3x256xf32>, vector<3x256xf32>, vector<3x256xf32>, vector<3x256xf32>, vector<3x256xf32>, vector<3x256xf32>, vector<3x256xf32>, vector<3x256xf32>, vector<3x256xf32>, vector<3x256xf32>, vector<3x256xf32>, vector<3x256xf32>, vector<3x256xf32> -> vector<48x256xf32>
    %119 = tpu.concatenate %109, %110, %111, %112, %113, %114, %115, %116, %117 in 0 : vector<3x256xf32>, vector<3x256xf32>, vector<3x256xf32>, vector<3x256xf32>, vector<3x256xf32>, vector<3x256xf32>, vector<3x256xf32>, vector<3x256xf32>, vector<3x256xf32> -> vector<27x256xf32>
    %120 = tpu.concatenate %118, %119 in 0 : vector<48x256xf32>, vector<27x256xf32> -> vector<75x256xf32>
    %cst_7 = arith.constant dense<0.000000e+00> : vector<8x256xf32>
    %121 = tpu.matmul %3, %120, %cst_7 {dimension_numbers = #tpu.dot_dimension_numbers<[1], [0], [0], [1], [0, 0, 1, 1], [], []>} : vector<8x75xf32>, vector<75x256xf32>, vector<8x256xf32> -> vector<8x256xf32>
    %122 = arith.maximumf %92, %121 : vector<8x256xf32>
    %c0_8 = arith.constant 0 : index
    %c0_9 = arith.constant 0 : index
    %123 = vector.load %arg2[%c0_8, %c0_9] : memref<8x1xf32, #tpu.memory_space<vmem>>, vector<8x1xf32>
    %124 = vector.broadcast %123 : vector<8x1xf32> to vector<8x256xf32>
    %125 = arith.addf %122, %124 : vector<8x256xf32>
    %cst_10 = arith.constant 0.000000e+00 : f32
    %126 = vector.broadcast %cst_10 : f32 to vector<8x256xf32>
    %127 = arith.maximumf %125, %126 : vector<8x256xf32>
    %128 = arith.truncf %127 : vector<8x256xf32> to vector<8x256xbf16>
    %c0_11 = arith.constant 0 : index
    %c0_12 = arith.constant 0 : index
    %129 = vector.load %arg5[%c0_11, %c0_12] : memref<8x256xbf16, #tpu.memory_space<vmem>>, vector<8x256xbf16>
    tpu.vector_store %arg5[%c0_11, %c0_12], %128 {strides = array<i32>} : memref<8x256xbf16, #tpu.memory_space<vmem>>, vector<8x256xbf16>,
    return
  }
  func.func @transform_0(%arg0: i32) -> (i32, i32) {
    %c0_i32 = arith.constant 0 : i32
    %c0_i32_0 = arith.constant 0 : i32
    %c0_i32_1 = arith.constant 0 : i32
    return %c0_i32, %c0_i32_0 : i32, i32
  }
  func.func @transform_1(%arg0: i32) -> (i32, i32) {
    %c0_i32 = arith.constant 0 : i32
    %c0_i32_0 = arith.constant 0 : i32
    %c0_i32_1 = arith.constant 0 : i32
    return %c0_i32, %c0_i32_0 : i32, i32
  }
  func.func @transform_2(%arg0: i32) -> (i32, i32) {
    %c0_i32 = arith.constant 0 : i32
    %c0_i32_0 = arith.constant 0 : i32
    return %c0_i32, %arg0 : i32, i32
  }
  func.func @transform_3(%arg0: i32) -> (i32, i32) {
    %c1_i32 = arith.constant 1 : i32
    %0 = arith.addi %arg0, %c1_i32 : i32
    %c1_i32_0 = arith.constant 1 : i32
    %1 = arith.minsi %0, %c1_i32_0 : i32
    %c2_i32 = arith.constant 2 : i32
    %2 = arith.muli %1, %c2_i32 : i32
    %c0_i32 = arith.constant 0 : i32
    %c0_i32_1 = arith.constant 0 : i32
    return %c0_i32, %2 : i32, i32
  }
  func.func @transform_4(%arg0: i32) -> (i32, i32) {
    %c0_i32 = arith.constant 0 : i32
    %c0_i32_0 = arith.constant 0 : i32
    return %c0_i32, %arg0 : i32, i32
  }
}

module attributes {stable_mosaic.version = 11 : i64} {
  func.func @kernel(%arg0: i32, %arg1: memref<16x150xf32, #tpu.memory_space<vmem>>, %arg2: memref<16x1xf32, #tpu.memory_space<vmem>>, %arg3: memref<24x128xf32, #tpu.memory_space<vmem>>, %arg4: memref<24x128xf32, #tpu.memory_space<vmem>>, %arg5: memref<16x128xbf16, #tpu.memory_space<vmem>>) attributes {dimension_semantics = [#tpu.dimension_semantics<parallel>], iteration_bounds = array<i64: 1>, scalar_prefetch = 0 : i64, scratch_operands = 0 : i64, tpu.core_type = #tpu.core_type<tc>, window_params = [{pipeline_mode = #tpu.pipeline_mode<synchronous>, transform_indices = @transform_0, window_bounds = array<i64: 16, 150>}, {pipeline_mode = #tpu.pipeline_mode<synchronous>, transform_indices = @transform_1, window_bounds = array<i64: 16, 1>}, {transform_indices = @transform_2, window_bounds = array<i64: 24, 128>}, {transform_indices = @transform_3, window_bounds = array<i64: 24, 128>}, {transform_indices = @transform_4, window_bounds = array<i64: 16, 128>}]} {
    %c0 = arith.constant 0 : index
    %c0_0 = arith.constant 0 : index
    %0 = vector.load %arg3[%c0, %c0_0] : memref<24x128xf32, #tpu.memory_space<vmem>>, vector<24x128xf32>
    %c0_1 = arith.constant 0 : index
    %c0_2 = arith.constant 0 : index
    %1 = vector.load %arg4[%c0_1, %c0_2] : memref<24x128xf32, #tpu.memory_space<vmem>>, vector<24x128xf32>
    %2 = tpu.concatenate %0, %1 in 1 : vector<24x128xf32>, vector<24x128xf32> -> vector<24x256xf32>
    %c0_3 = arith.constant 0 : index
    %c0_4 = arith.constant 0 : index
    %3 = vector.load %arg1[%c0_3, %c0_4] : memref<16x150xf32, #tpu.memory_space<vmem>>, vector<16x150xf32>
    %4 = vector.extract_strided_slice %2 {offsets = [0, 0], sizes = [6, 128], strides = [1, 1]} : vector<24x256xf32> to vector<6x128xf32>
    %5 = vector.extract_strided_slice %2 {offsets = [6, 0], sizes = [6, 128], strides = [1, 1]} : vector<24x256xf32> to vector<6x128xf32>
    %6 = vector.extract_strided_slice %2 {offsets = [0, 1], sizes = [6, 128], strides = [1, 1]} : vector<24x256xf32> to vector<6x128xf32>
    %7 = vector.extract_strided_slice %2 {offsets = [6, 1], sizes = [6, 128], strides = [1, 1]} : vector<24x256xf32> to vector<6x128xf32>
    %8 = vector.extract_strided_slice %2 {offsets = [0, 2], sizes = [6, 128], strides = [1, 1]} : vector<24x256xf32> to vector<6x128xf32>
    %9 = vector.extract_strided_slice %2 {offsets = [12, 0], sizes = [6, 128], strides = [1, 1]} : vector<24x256xf32> to vector<6x128xf32>
    %10 = vector.extract_strided_slice %2 {offsets = [18, 0], sizes = [6, 128], strides = [1, 1]} : vector<24x256xf32> to vector<6x128xf32>
    %11 = vector.extract_strided_slice %2 {offsets = [12, 1], sizes = [6, 128], strides = [1, 1]} : vector<24x256xf32> to vector<6x128xf32>
    %12 = vector.extract_strided_slice %2 {offsets = [18, 1], sizes = [6, 128], strides = [1, 1]} : vector<24x256xf32> to vector<6x128xf32>
    %13 = vector.extract_strided_slice %2 {offsets = [12, 2], sizes = [6, 128], strides = [1, 1]} : vector<24x256xf32> to vector<6x128xf32>
    %14 = vector.extract_strided_slice %2 {offsets = [0, 7], sizes = [6, 128], strides = [1, 1]} : vector<24x256xf32> to vector<6x128xf32>
    %15 = vector.extract_strided_slice %2 {offsets = [6, 7], sizes = [6, 128], strides = [1, 1]} : vector<24x256xf32> to vector<6x128xf32>
    %16 = vector.extract_strided_slice %2 {offsets = [0, 8], sizes = [6, 128], strides = [1, 1]} : vector<24x256xf32> to vector<6x128xf32>
    %17 = vector.extract_strided_slice %2 {offsets = [6, 8], sizes = [6, 128], strides = [1, 1]} : vector<24x256xf32> to vector<6x128xf32>
    %18 = vector.extract_strided_slice %2 {offsets = [0, 9], sizes = [6, 128], strides = [1, 1]} : vector<24x256xf32> to vector<6x128xf32>
    %19 = vector.extract_strided_slice %2 {offsets = [12, 7], sizes = [6, 128], strides = [1, 1]} : vector<24x256xf32> to vector<6x128xf32>
    %20 = vector.extract_strided_slice %2 {offsets = [18, 7], sizes = [6, 128], strides = [1, 1]} : vector<24x256xf32> to vector<6x128xf32>
    %21 = vector.extract_strided_slice %2 {offsets = [12, 8], sizes = [6, 128], strides = [1, 1]} : vector<24x256xf32> to vector<6x128xf32>
    %22 = vector.extract_strided_slice %2 {offsets = [18, 8], sizes = [6, 128], strides = [1, 1]} : vector<24x256xf32> to vector<6x128xf32>
    %23 = vector.extract_strided_slice %2 {offsets = [12, 9], sizes = [6, 128], strides = [1, 1]} : vector<24x256xf32> to vector<6x128xf32>
    %24 = vector.extract_strided_slice %2 {offsets = [0, 14], sizes = [6, 128], strides = [1, 1]} : vector<24x256xf32> to vector<6x128xf32>
    %25 = vector.extract_strided_slice %2 {offsets = [6, 14], sizes = [6, 128], strides = [1, 1]} : vector<24x256xf32> to vector<6x128xf32>
    %26 = vector.extract_strided_slice %2 {offsets = [0, 15], sizes = [6, 128], strides = [1, 1]} : vector<24x256xf32> to vector<6x128xf32>
    %27 = vector.extract_strided_slice %2 {offsets = [6, 15], sizes = [6, 128], strides = [1, 1]} : vector<24x256xf32> to vector<6x128xf32>
    %28 = vector.extract_strided_slice %2 {offsets = [0, 16], sizes = [6, 128], strides = [1, 1]} : vector<24x256xf32> to vector<6x128xf32>
    %29 = tpu.concatenate %4, %5, %6, %7, %8, %9, %10, %11, %12, %13, %14, %15, %16, %17, %18, %19 in 0 : vector<6x128xf32>, vector<6x128xf32>, vector<6x128xf32>, vector<6x128xf32>, vector<6x128xf32>, vector<6x128xf32>, vector<6x128xf32>, vector<6x128xf32>, vector<6x128xf32>, vector<6x128xf32>, vector<6x128xf32>, vector<6x128xf32>, vector<6x128xf32>, vector<6x128xf32>, vector<6x128xf32>, vector<6x128xf32> -> vector<96x128xf32>
    %30 = tpu.concatenate %20, %21, %22, %23, %24, %25, %26, %27, %28 in 0 : vector<6x128xf32>, vector<6x128xf32>, vector<6x128xf32>, vector<6x128xf32>, vector<6x128xf32>, vector<6x128xf32>, vector<6x128xf32>, vector<6x128xf32>, vector<6x128xf32> -> vector<54x128xf32>
    %31 = tpu.concatenate %29, %30 in 0 : vector<96x128xf32>, vector<54x128xf32> -> vector<150x128xf32>
    %cst = arith.constant dense<0.000000e+00> : vector<16x128xf32>
    %32 = tpu.matmul %3, %31, %cst {dimension_numbers = #tpu.dot_dimension_numbers<[1], [0], [0], [1], [0, 0, 1, 1], [], []>} : vector<16x150xf32>, vector<150x128xf32>, vector<16x128xf32> -> vector<16x128xf32>
    %33 = vector.extract_strided_slice %2 {offsets = [6, 0], sizes = [6, 128], strides = [1, 1]} : vector<24x256xf32> to vector<6x128xf32>
    %34 = vector.extract_strided_slice %2 {offsets = [0, 1], sizes = [6, 128], strides = [1, 1]} : vector<24x256xf32> to vector<6x128xf32>
    %35 = vector.extract_strided_slice %2 {offsets = [6, 1], sizes = [6, 128], strides = [1, 1]} : vector<24x256xf32> to vector<6x128xf32>
    %36 = vector.extract_strided_slice %2 {offsets = [0, 2], sizes = [6, 128], strides = [1, 1]} : vector<24x256xf32> to vector<6x128xf32>
    %37 = vector.extract_strided_slice %2 {offsets = [6, 2], sizes = [6, 128], strides = [1, 1]} : vector<24x256xf32> to vector<6x128xf32>
    %38 = vector.extract_strided_slice %2 {offsets = [18, 0], sizes = [6, 128], strides = [1, 1]} : vector<24x256xf32> to vector<6x128xf32>
    %39 = vector.extract_strided_slice %2 {offsets = [12, 1], sizes = [6, 128], strides = [1, 1]} : vector<24x256xf32> to vector<6x128xf32>
    %40 = vector.extract_strided_slice %2 {offsets = [18, 1], sizes = [6, 128], strides = [1, 1]} : vector<24x256xf32> to vector<6x128xf32>
    %41 = vector.extract_strided_slice %2 {offsets = [12, 2], sizes = [6, 128], strides = [1, 1]} : vector<24x256xf32> to vector<6x128xf32>
    %42 = vector.extract_strided_slice %2 {offsets = [18, 2], sizes = [6, 128], strides = [1, 1]} : vector<24x256xf32> to vector<6x128xf32>
    %43 = vector.extract_strided_slice %2 {offsets = [6, 7], sizes = [6, 128], strides = [1, 1]} : vector<24x256xf32> to vector<6x128xf32>
    %44 = vector.extract_strided_slice %2 {offsets = [0, 8], sizes = [6, 128], strides = [1, 1]} : vector<24x256xf32> to vector<6x128xf32>
    %45 = vector.extract_strided_slice %2 {offsets = [6, 8], sizes = [6, 128], strides = [1, 1]} : vector<24x256xf32> to vector<6x128xf32>
    %46 = vector.extract_strided_slice %2 {offsets = [0, 9], sizes = [6, 128], strides = [1, 1]} : vector<24x256xf32> to vector<6x128xf32>
    %47 = vector.extract_strided_slice %2 {offsets = [6, 9], sizes = [6, 128], strides = [1, 1]} : vector<24x256xf32> to vector<6x128xf32>
    %48 = vector.extract_strided_slice %2 {offsets = [18, 7], sizes = [6, 128], strides = [1, 1]} : vector<24x256xf32> to vector<6x128xf32>
    %49 = vector.extract_strided_slice %2 {offsets = [12, 8], sizes = [6, 128], strides = [1, 1]} : vector<24x256xf32> to vector<6x128xf32>
    %50 = vector.extract_strided_slice %2 {offsets = [18, 8], sizes = [6, 128], strides = [1, 1]} : vector<24x256xf32> to vector<6x128xf32>
    %51 = vector.extract_strided_slice %2 {offsets = [12, 9], sizes = [6, 128], strides = [1, 1]} : vector<24x256xf32> to vector<6x128xf32>
    %52 = vector.extract_strided_slice %2 {offsets = [18, 9], sizes = [6, 128], strides = [1, 1]} : vector<24x256xf32> to vector<6x128xf32>
    %53 = vector.extract_strided_slice %2 {offsets = [6, 14], sizes = [6, 128], strides = [1, 1]} : vector<24x256xf32> to vector<6x128xf32>
    %54 = vector.extract_strided_slice %2 {offsets = [0, 15], sizes = [6, 128], strides = [1, 1]} : vector<24x256xf32> to vector<6x128xf32>
    %55 = vector.extract_strided_slice %2 {offsets = [6, 15], sizes = [6, 128], strides = [1, 1]} : vector<24x256xf32> to vector<6x128xf32>
    %56 = vector.extract_strided_slice %2 {offsets = [0, 16], sizes = [6, 128], strides = [1, 1]} : vector<24x256xf32> to vector<6x128xf32>
    %57 = vector.extract_strided_slice %2 {offsets = [6, 16], sizes = [6, 128], strides = [1, 1]} : vector<24x256xf32> to vector<6x128xf32>
    %58 = tpu.concatenate %33, %34, %35, %36, %37, %38, %39, %40, %41, %42, %43, %44, %45, %46, %47, %48 in 0 : vector<6x128xf32>, vector<6x128xf32>, vector<6x128xf32>, vector<6x128xf32>, vector<6x128xf32>, vector<6x128xf32>, vector<6x128xf32>, vector<6x128xf32>, vector<6x128xf32>, vector<6x128xf32>, vector<6x128xf32>, vector<6x128xf32>, vector<6x128xf32>, vector<6x128xf32>, vector<6x128xf32>, vector<6x128xf32> -> vector<96x128xf32>
    %59 = tpu.concatenate %49, %50, %51, %52, %53, %54, %55, %56, %57 in 0 : vector<6x128xf32>, vector<6x128xf32>, vector<6x128xf32>, vector<6x128xf32>, vector<6x128xf32>, vector<6x128xf32>, vector<6x128xf32>, vector<6x128xf32>, vector<6x128xf32> -> vector<54x128xf32>
    %60 = tpu.concatenate %58, %59 in 0 : vector<96x128xf32>, vector<54x128xf32> -> vector<150x128xf32>
    %cst_5 = arith.constant dense<0.000000e+00> : vector<16x128xf32>
    %61 = tpu.matmul %3, %60, %cst_5 {dimension_numbers = #tpu.dot_dimension_numbers<[1], [0], [0], [1], [0, 0, 1, 1], [], []>} : vector<16x150xf32>, vector<150x128xf32>, vector<16x128xf32> -> vector<16x128xf32>
    %62 = arith.maximumf %32, %61 : vector<16x128xf32>
    %63 = vector.extract_strided_slice %2 {offsets = [12, 0], sizes = [6, 128], strides = [1, 1]} : vector<24x256xf32> to vector<6x128xf32>
    %64 = vector.extract_strided_slice %2 {offsets = [18, 0], sizes = [6, 128], strides = [1, 1]} : vector<24x256xf32> to vector<6x128xf32>
    %65 = vector.extract_strided_slice %2 {offsets = [12, 1], sizes = [6, 128], strides = [1, 1]} : vector<24x256xf32> to vector<6x128xf32>
    %66 = vector.extract_strided_slice %2 {offsets = [18, 1], sizes = [6, 128], strides = [1, 1]} : vector<24x256xf32> to vector<6x128xf32>
    %67 = vector.extract_strided_slice %2 {offsets = [12, 2], sizes = [6, 128], strides = [1, 1]} : vector<24x256xf32> to vector<6x128xf32>
    %68 = vector.extract_strided_slice %2 {offsets = [0, 7], sizes = [6, 128], strides = [1, 1]} : vector<24x256xf32> to vector<6x128xf32>
    %69 = vector.extract_strided_slice %2 {offsets = [6, 7], sizes = [6, 128], strides = [1, 1]} : vector<24x256xf32> to vector<6x128xf32>
    %70 = vector.extract_strided_slice %2 {offsets = [0, 8], sizes = [6, 128], strides = [1, 1]} : vector<24x256xf32> to vector<6x128xf32>
    %71 = vector.extract_strided_slice %2 {offsets = [6, 8], sizes = [6, 128], strides = [1, 1]} : vector<24x256xf32> to vector<6x128xf32>
    %72 = vector.extract_strided_slice %2 {offsets = [0, 9], sizes = [6, 128], strides = [1, 1]} : vector<24x256xf32> to vector<6x128xf32>
    %73 = vector.extract_strided_slice %2 {offsets = [12, 7], sizes = [6, 128], strides = [1, 1]} : vector<24x256xf32> to vector<6x128xf32>
    %74 = vector.extract_strided_slice %2 {offsets = [18, 7], sizes = [6, 128], strides = [1, 1]} : vector<24x256xf32> to vector<6x128xf32>
    %75 = vector.extract_strided_slice %2 {offsets = [12, 8], sizes = [6, 128], strides = [1, 1]} : vector<24x256xf32> to vector<6x128xf32>
    %76 = vector.extract_strided_slice %2 {offsets = [18, 8], sizes = [6, 128], strides = [1, 1]} : vector<24x256xf32> to vector<6x128xf32>
    %77 = vector.extract_strided_slice %2 {offsets = [12, 9], sizes = [6, 128], strides = [1, 1]} : vector<24x256xf32> to vector<6x128xf32>
    %78 = vector.extract_strided_slice %2 {offsets = [0, 14], sizes = [6, 128], strides = [1, 1]} : vector<24x256xf32> to vector<6x128xf32>
    %79 = vector.extract_strided_slice %2 {offsets = [6, 14], sizes = [6, 128], strides = [1, 1]} : vector<24x256xf32> to vector<6x128xf32>
    %80 = vector.extract_strided_slice %2 {offsets = [0, 15], sizes = [6, 128], strides = [1, 1]} : vector<24x256xf32> to vector<6x128xf32>
    %81 = vector.extract_strided_slice %2 {offsets = [6, 15], sizes = [6, 128], strides = [1, 1]} : vector<24x256xf32> to vector<6x128xf32>
    %82 = vector.extract_strided_slice %2 {offsets = [0, 16], sizes = [6, 128], strides = [1, 1]} : vector<24x256xf32> to vector<6x128xf32>
    %83 = vector.extract_strided_slice %2 {offsets = [12, 14], sizes = [6, 128], strides = [1, 1]} : vector<24x256xf32> to vector<6x128xf32>
    %84 = vector.extract_strided_slice %2 {offsets = [18, 14], sizes = [6, 128], strides = [1, 1]} : vector<24x256xf32> to vector<6x128xf32>
    %85 = vector.extract_strided_slice %2 {offsets = [12, 15], sizes = [6, 128], strides = [1, 1]} : vector<24x256xf32> to vector<6x128xf32>
    %86 = vector.extract_strided_slice %2 {offsets = [18, 15], sizes = [6, 128], strides = [1, 1]} : vector<24x256xf32> to vector<6x128xf32>
    %87 = vector.extract_strided_slice %2 {offsets = [12, 16], sizes = [6, 128], strides = [1, 1]} : vector<24x256xf32> to vector<6x128xf32>
    %88 = tpu.concatenate %63, %64, %65, %66, %67, %68, %69, %70, %71, %72, %73, %74, %75, %76, %77, %78 in 0 : vector<6x128xf32>, vector<6x128xf32>, vector<6x128xf32>, vector<6x128xf32>, vector<6x128xf32>, vector<6x128xf32>, vector<6x128xf32>, vector<6x128xf32>, vector<6x128xf32>, vector<6x128xf32>, vector<6x128xf32>, vector<6x128xf32>, vector<6x128xf32>, vector<6x128xf32>, vector<6x128xf32>, vector<6x128xf32> -> vector<96x128xf32>
    %89 = tpu.concatenate %79, %80, %81, %82, %83, %84, %85, %86, %87 in 0 : vector<6x128xf32>, vector<6x128xf32>, vector<6x128xf32>, vector<6x128xf32>, vector<6x128xf32>, vector<6x128xf32>, vector<6x128xf32>, vector<6x128xf32>, vector<6x128xf32> -> vector<54x128xf32>
    %90 = tpu.concatenate %88, %89 in 0 : vector<96x128xf32>, vector<54x128xf32> -> vector<150x128xf32>
    %cst_6 = arith.constant dense<0.000000e+00> : vector<16x128xf32>
    %91 = tpu.matmul %3, %90, %cst_6 {dimension_numbers = #tpu.dot_dimension_numbers<[1], [0], [0], [1], [0, 0, 1, 1], [], []>} : vector<16x150xf32>, vector<150x128xf32>, vector<16x128xf32> -> vector<16x128xf32>
    %92 = arith.maximumf %62, %91 : vector<16x128xf32>
    %93 = vector.extract_strided_slice %2 {offsets = [18, 0], sizes = [6, 128], strides = [1, 1]} : vector<24x256xf32> to vector<6x128xf32>
    %94 = vector.extract_strided_slice %2 {offsets = [12, 1], sizes = [6, 128], strides = [1, 1]} : vector<24x256xf32> to vector<6x128xf32>
    %95 = vector.extract_strided_slice %2 {offsets = [18, 1], sizes = [6, 128], strides = [1, 1]} : vector<24x256xf32> to vector<6x128xf32>
    %96 = vector.extract_strided_slice %2 {offsets = [12, 2], sizes = [6, 128], strides = [1, 1]} : vector<24x256xf32> to vector<6x128xf32>
    %97 = vector.extract_strided_slice %2 {offsets = [18, 2], sizes = [6, 128], strides = [1, 1]} : vector<24x256xf32> to vector<6x128xf32>
    %98 = vector.extract_strided_slice %2 {offsets = [6, 7], sizes = [6, 128], strides = [1, 1]} : vector<24x256xf32> to vector<6x128xf32>
    %99 = vector.extract_strided_slice %2 {offsets = [0, 8], sizes = [6, 128], strides = [1, 1]} : vector<24x256xf32> to vector<6x128xf32>
    %100 = vector.extract_strided_slice %2 {offsets = [6, 8], sizes = [6, 128], strides = [1, 1]} : vector<24x256xf32> to vector<6x128xf32>
    %101 = vector.extract_strided_slice %2 {offsets = [0, 9], sizes = [6, 128], strides = [1, 1]} : vector<24x256xf32> to vector<6x128xf32>
    %102 = vector.extract_strided_slice %2 {offsets = [6, 9], sizes = [6, 128], strides = [1, 1]} : vector<24x256xf32> to vector<6x128xf32>
    %103 = vector.extract_strided_slice %2 {offsets = [18, 7], sizes = [6, 128], strides = [1, 1]} : vector<24x256xf32> to vector<6x128xf32>
    %104 = vector.extract_strided_slice %2 {offsets = [12, 8], sizes = [6, 128], strides = [1, 1]} : vector<24x256xf32> to vector<6x128xf32>
    %105 = vector.extract_strided_slice %2 {offsets = [18, 8], sizes = [6, 128], strides = [1, 1]} : vector<24x256xf32> to vector<6x128xf32>
    %106 = vector.extract_strided_slice %2 {offsets = [12, 9], sizes = [6, 128], strides = [1, 1]} : vector<24x256xf32> to vector<6x128xf32>
    %107 = vector.extract_strided_slice %2 {offsets = [18, 9], sizes = [6, 128], strides = [1, 1]} : vector<24x256xf32> to vector<6x128xf32>
    %108 = vector.extract_strided_slice %2 {offsets = [6, 14], sizes = [6, 128], strides = [1, 1]} : vector<24x256xf32> to vector<6x128xf32>
    %109 = vector.extract_strided_slice %2 {offsets = [0, 15], sizes = [6, 128], strides = [1, 1]} : vector<24x256xf32> to vector<6x128xf32>
    %110 = vector.extract_strided_slice %2 {offsets = [6, 15], sizes = [6, 128], strides = [1, 1]} : vector<24x256xf32> to vector<6x128xf32>
    %111 = vector.extract_strided_slice %2 {offsets = [0, 16], sizes = [6, 128], strides = [1, 1]} : vector<24x256xf32> to vector<6x128xf32>
    %112 = vector.extract_strided_slice %2 {offsets = [6, 16], sizes = [6, 128], strides = [1, 1]} : vector<24x256xf32> to vector<6x128xf32>
    %113 = vector.extract_strided_slice %2 {offsets = [18, 14], sizes = [6, 128], strides = [1, 1]} : vector<24x256xf32> to vector<6x128xf32>
    %114 = vector.extract_strided_slice %2 {offsets = [12, 15], sizes = [6, 128], strides = [1, 1]} : vector<24x256xf32> to vector<6x128xf32>
    %115 = vector.extract_strided_slice %2 {offsets = [18, 15], sizes = [6, 128], strides = [1, 1]} : vector<24x256xf32> to vector<6x128xf32>
    %116 = vector.extract_strided_slice %2 {offsets = [12, 16], sizes = [6, 128], strides = [1, 1]} : vector<24x256xf32> to vector<6x128xf32>
    %117 = vector.extract_strided_slice %2 {offsets = [18, 16], sizes = [6, 128], strides = [1, 1]} : vector<24x256xf32> to vector<6x128xf32>
    %118 = tpu.concatenate %93, %94, %95, %96, %97, %98, %99, %100, %101, %102, %103, %104, %105, %106, %107, %108 in 0 : vector<6x128xf32>, vector<6x128xf32>, vector<6x128xf32>, vector<6x128xf32>, vector<6x128xf32>, vector<6x128xf32>, vector<6x128xf32>, vector<6x128xf32>, vector<6x128xf32>, vector<6x128xf32>, vector<6x128xf32>, vector<6x128xf32>, vector<6x128xf32>, vector<6x128xf32>, vector<6x128xf32>, vector<6x128xf32> -> vector<96x128xf32>
    %119 = tpu.concatenate %109, %110, %111, %112, %113, %114, %115, %116, %117 in 0 : vector<6x128xf32>, vector<6x128xf32>, vector<6x128xf32>, vector<6x128xf32>, vector<6x128xf32>, vector<6x128xf32>, vector<6x128xf32>, vector<6x128xf32>, vector<6x128xf32> -> vector<54x128xf32>
    %120 = tpu.concatenate %118, %119 in 0 : vector<96x128xf32>, vector<54x128xf32> -> vector<150x128xf32>
    %cst_7 = arith.constant dense<0.000000e+00> : vector<16x128xf32>
    %121 = tpu.matmul %3, %120, %cst_7 {dimension_numbers = #tpu.dot_dimension_numbers<[1], [0], [0], [1], [0, 0, 1, 1], [], []>} : vector<16x150xf32>, vector<150x128xf32>, vector<16x128xf32> -> vector<16x128xf32>
    %122 = arith.maximumf %92, %121 : vector<16x128xf32>
    %c0_8 = arith.constant 0 : index
    %c0_9 = arith.constant 0 : index
    %123 = vector.load %arg2[%c0_8, %c0_9] : memref<16x1xf32, #tpu.memory_space<vmem>>, vector<16x1xf32>
    %124 = vector.broadcast %123 : vector<16x1xf32> to vector<16x128xf32>
    %125 = arith.addf %122, %124 : vector<16x128xf32>
    %cst_10 = arith.constant 0.000000e+00 : f32
    %126 = vector.broadcast %cst_10 : f32 to vector<16x128xf32>
    %127 = arith.maximumf %125, %126 : vector<16x128xf32>
    %128 = arith.truncf %127 : vector<16x128xf32> to vector<16x128xbf16>
    %c0_11 = arith.constant 0 : index
    %c0_12 = arith.constant 0 : index
    %129 = vector.load %arg5[%c0_11, %c0_12] : memref<16x128xbf16, #tpu.memory_space<vmem>>, vector<16x128xbf16>
    tpu.vector_store %arg5[%c0_11, %c0_12], %128 {strides = array<i32>} : memref<16x128xbf16, #tpu.memory_space<vmem>>, vector<16x128xbf16>,
    return
  }
  func.func @transform_0(%arg0: i32) -> (i32, i32) {
    %c0_i32 = arith.constant 0 : i32
    %c0_i32_0 = arith.constant 0 : i32
    %c0_i32_1 = arith.constant 0 : i32
    return %c0_i32, %c0_i32_0 : i32, i32
  }
  func.func @transform_1(%arg0: i32) -> (i32, i32) {
    %c0_i32 = arith.constant 0 : i32
    %c0_i32_0 = arith.constant 0 : i32
    %c0_i32_1 = arith.constant 0 : i32
    return %c0_i32, %c0_i32_0 : i32, i32
  }
  func.func @transform_2(%arg0: i32) -> (i32, i32) {
    %c0_i32 = arith.constant 0 : i32
    %c0_i32_0 = arith.constant 0 : i32
    return %c0_i32, %arg0 : i32, i32
  }
  func.func @transform_3(%arg0: i32) -> (i32, i32) {
    %c1_i32 = arith.constant 1 : i32
    %0 = arith.addi %arg0, %c1_i32 : i32
    %c0_i32 = arith.constant 0 : i32
    %1 = arith.minsi %0, %c0_i32 : i32
    %c1_i32_0 = arith.constant 1 : i32
    %2 = arith.muli %1, %c1_i32_0 : i32
    %c0_i32_1 = arith.constant 0 : i32
    %c0_i32_2 = arith.constant 0 : i32
    return %c0_i32_1, %2 : i32, i32
  }
  func.func @transform_4(%arg0: i32) -> (i32, i32) {
    %c0_i32 = arith.constant 0 : i32
    %c0_i32_0 = arith.constant 0 : i32
    return %c0_i32, %arg0 : i32, i32
  }
}

module attributes {stable_mosaic.version = 11 : i64} {
  func.func @_mlp_kernel(%arg0: i32, %arg1: memref<8x400xbf16, #tpu.memory_space<vmem>>, %arg2: memref<400x120xbf16, #tpu.memory_space<vmem>>, %arg3: memref<1x120xf32, #tpu.memory_space<vmem>>, %arg4: memref<120x84xbf16, #tpu.memory_space<vmem>>, %arg5: memref<1x84xf32, #tpu.memory_space<vmem>>, %arg6: memref<84x128xbf16, #tpu.memory_space<vmem>>, %arg7: memref<1x128xf32, #tpu.memory_space<vmem>>, %arg8: memref<8x128xf32, #tpu.memory_space<vmem>>) attributes {dimension_semantics = [#tpu.dimension_semantics<parallel>], iteration_bounds = array<i64: 1>, scalar_prefetch = 0 : i64, scratch_operands = 0 : i64, tpu.core_type = #tpu.core_type<tc>, window_params = [{transform_indices = @transform_0, window_bounds = array<i64: 8, 400>}, {pipeline_mode = #tpu.pipeline_mode<synchronous>, transform_indices = @transform_1, window_bounds = array<i64: 400, 120>}, {pipeline_mode = #tpu.pipeline_mode<synchronous>, transform_indices = @transform_2, window_bounds = array<i64: 1, 120>}, {pipeline_mode = #tpu.pipeline_mode<synchronous>, transform_indices = @transform_3, window_bounds = array<i64: 120, 84>}, {pipeline_mode = #tpu.pipeline_mode<synchronous>, transform_indices = @transform_4, window_bounds = array<i64: 1, 84>}, {pipeline_mode = #tpu.pipeline_mode<synchronous>, transform_indices = @transform_5, window_bounds = array<i64: 84, 128>}, {pipeline_mode = #tpu.pipeline_mode<synchronous>, transform_indices = @transform_6, window_bounds = array<i64: 1, 128>}, {transform_indices = @transform_7, window_bounds = array<i64: 8, 128>}]} {
    %c0 = arith.constant 0 : index
    %c0_0 = arith.constant 0 : index
    %0 = vector.load %arg1[%c0, %c0_0] : memref<8x400xbf16, #tpu.memory_space<vmem>>, vector<8x400xbf16>
    %c0_1 = arith.constant 0 : index
    %c0_2 = arith.constant 0 : index
    %1 = vector.load %arg2[%c0_1, %c0_2] : memref<400x120xbf16, #tpu.memory_space<vmem>>, vector<400x120xbf16>
    %cst = arith.constant dense<0.000000e+00> : vector<8x120xf32>
    %2 = tpu.matmul %0, %1, %cst {dimension_numbers = #tpu.dot_dimension_numbers<[1], [0], [0], [1], [0, 0, 1, 1], [], []>} : vector<8x400xbf16>, vector<400x120xbf16>, vector<8x120xf32> -> vector<8x120xf32>
    %c0_3 = arith.constant 0 : index
    %c0_4 = arith.constant 0 : index
    %3 = vector.load %arg3[%c0_3, %c0_4] : memref<1x120xf32, #tpu.memory_space<vmem>>, vector<1x120xf32>
    %4 = vector.broadcast %3 : vector<1x120xf32> to vector<8x120xf32>
    %5 = arith.addf %2, %4 : vector<8x120xf32>
    %cst_5 = arith.constant 0.000000e+00 : f32
    %6 = vector.broadcast %cst_5 : f32 to vector<8x120xf32>
    %7 = arith.maximumf %5, %6 : vector<8x120xf32>
    %8 = arith.truncf %7 : vector<8x120xf32> to vector<8x120xbf16>
    %c0_6 = arith.constant 0 : index
    %c0_7 = arith.constant 0 : index
    %9 = vector.load %arg4[%c0_6, %c0_7] : memref<120x84xbf16, #tpu.memory_space<vmem>>, vector<120x84xbf16>
    %cst_8 = arith.constant dense<0.000000e+00> : vector<8x84xf32>
    %10 = tpu.matmul %8, %9, %cst_8 {dimension_numbers = #tpu.dot_dimension_numbers<[1], [0], [0], [1], [0, 0, 1, 1], [], []>} : vector<8x120xbf16>, vector<120x84xbf16>, vector<8x84xf32> -> vector<8x84xf32>
    %c0_9 = arith.constant 0 : index
    %c0_10 = arith.constant 0 : index
    %11 = vector.load %arg5[%c0_9, %c0_10] : memref<1x84xf32, #tpu.memory_space<vmem>>, vector<1x84xf32>
    %12 = vector.broadcast %11 : vector<1x84xf32> to vector<8x84xf32>
    %13 = arith.addf %10, %12 : vector<8x84xf32>
    %cst_11 = arith.constant 0.000000e+00 : f32
    %14 = vector.broadcast %cst_11 : f32 to vector<8x84xf32>
    %15 = arith.maximumf %13, %14 : vector<8x84xf32>
    %16 = arith.truncf %15 : vector<8x84xf32> to vector<8x84xbf16>
    %c0_12 = arith.constant 0 : index
    %c0_13 = arith.constant 0 : index
    %17 = vector.load %arg6[%c0_12, %c0_13] : memref<84x128xbf16, #tpu.memory_space<vmem>>, vector<84x128xbf16>
    %cst_14 = arith.constant dense<0.000000e+00> : vector<8x128xf32>
    %18 = tpu.matmul %16, %17, %cst_14 {dimension_numbers = #tpu.dot_dimension_numbers<[1], [0], [0], [1], [0, 0, 1, 1], [], []>} : vector<8x84xbf16>, vector<84x128xbf16>, vector<8x128xf32> -> vector<8x128xf32>
    %c0_15 = arith.constant 0 : index
    %c0_16 = arith.constant 0 : index
    %19 = vector.load %arg7[%c0_15, %c0_16] : memref<1x128xf32, #tpu.memory_space<vmem>>, vector<1x128xf32>
    %20 = vector.broadcast %19 : vector<1x128xf32> to vector<8x128xf32>
    %21 = arith.addf %18, %20 : vector<8x128xf32>
    %c0_17 = arith.constant 0 : index
    %c0_18 = arith.constant 0 : index
    %22 = vector.load %arg8[%c0_17, %c0_18] : memref<8x128xf32, #tpu.memory_space<vmem>>, vector<8x128xf32>
    tpu.vector_store %arg8[%c0_17, %c0_18], %21 {strides = array<i32>} : memref<8x128xf32, #tpu.memory_space<vmem>>, vector<8x128xf32>,
    return
  }
  func.func @transform_0(%arg0: i32) -> (i32, i32) {
    %c0_i32 = arith.constant 0 : i32
    %c0_i32_0 = arith.constant 0 : i32
    return %arg0, %c0_i32 : i32, i32
  }
  func.func @transform_1(%arg0: i32) -> (i32, i32) {
    %c0_i32 = arith.constant 0 : i32
    %c0_i32_0 = arith.constant 0 : i32
    %c0_i32_1 = arith.constant 0 : i32
    return %c0_i32, %c0_i32_0 : i32, i32
  }
  func.func @transform_2(%arg0: i32) -> (i32, i32) {
    %c0_i32 = arith.constant 0 : i32
    %c0_i32_0 = arith.constant 0 : i32
    %c0_i32_1 = arith.constant 0 : i32
    return %c0_i32, %c0_i32_0 : i32, i32
  }
  func.func @transform_3(%arg0: i32) -> (i32, i32) {
    %c0_i32 = arith.constant 0 : i32
    %c0_i32_0 = arith.constant 0 : i32
    %c0_i32_1 = arith.constant 0 : i32
    return %c0_i32, %c0_i32_0 : i32, i32
  }
  func.func @transform_4(%arg0: i32) -> (i32, i32) {
    %c0_i32 = arith.constant 0 : i32
    %c0_i32_0 = arith.constant 0 : i32
    %c0_i32_1 = arith.constant 0 : i32
    return %c0_i32, %c0_i32_0 : i32, i32
  }
  func.func @transform_5(%arg0: i32) -> (i32, i32) {
    %c0_i32 = arith.constant 0 : i32
    %c0_i32_0 = arith.constant 0 : i32
    %c0_i32_1 = arith.constant 0 : i32
    return %c0_i32, %c0_i32_0 : i32, i32
  }
  func.func @transform_6(%arg0: i32) -> (i32, i32) {
    %c0_i32 = arith.constant 0 : i32
    %c0_i32_0 = arith.constant 0 : i32
    %c0_i32_1 = arith.constant 0 : i32
    return %c0_i32, %c0_i32_0 : i32, i32
  }
  func.func @transform_7(%arg0: i32) -> (i32, i32) {
    %c0_i32 = arith.constant 0 : i32
    %c0_i32_0 = arith.constant 0 : i32
    return %arg0, %c0_i32 : i32, i32
  }
}

</mosaic_0001>

<llo_original>
// kernel: net_digit5_forward.5
$region0: #{net_digit5_forward.5}
  #allocation0 [shape = 'u32[]', space=smem, size = 0x4, offset = 0x4, fixed_abs, tag = 'smem constant byte address 0x4 - core index']
  #allocation1 [shape = 'u32[144,128]{1,0:T(1,128)}', space=vmem, size = 0x12000, scoped, tag = 'internal scratch']
  %s0 = inlined_call_operand.vmem [shape: bf16[8,400], index: 0, kind: input, shape index: {}]
  %s1 = inlined_call_operand.vmem [shape: bf16[400,120], index: 1, kind: input, shape index: {}]
  %s2 = inlined_call_operand.vmem [shape: f32[1,120], index: 2, kind: input, shape index: {}]
  %s3 = inlined_call_operand.vmem [shape: bf16[120,84], index: 3, kind: input, shape index: {}]
  %s4 = inlined_call_operand.vmem [shape: f32[1,84], index: 4, kind: input, shape index: {}]
  %s5 = inlined_call_operand.vmem [shape: bf16[84,128], index: 5, kind: input, shape index: {}]
  %s6 = inlined_call_operand.vmem [shape: f32[1,128], index: 6, kind: input, shape index: {}]
  %s7 = inlined_call_operand.vmem [shape: f32[8,128], index: 7, kind: output, shape index: {}]
  %s8 = sld [smem:[#allocation0]]
  $region38: #{net_digit5_forward.5} parent=0
    _
  %s10 = ssub.s32 1, %s8
  %s11 = scalar_select 0, %s10, %s8
  // Predicated region
  $region2: #{net_digit5_forward.5} parent=0 // pred_check
    _
  $region3: #{net_digit5_forward.5} parent=0 // pred_check_branch
    %13 = sbr.rel (0) target = $region5
  $region4: #{net_digit5_forward.5} parent=0 // pred_region
    _
  $region5: #{net_digit5_forward.5} parent=0 // pred_fallthru
    _
  // Predicated region
  $region6: #{net_digit5_forward.5} parent=0 // pred_check
    _
  $region7: #{net_digit5_forward.5} parent=0 // pred_check_branch
    %15 = sbr.rel (0) target = $region9
  $region8: #{net_digit5_forward.5} parent=0 // pred_region
    _
  $region9: #{net_digit5_forward.5} parent=0 // pred_fallthru
    _
  // Predicated region
  $region10: #{net_digit5_forward.5} parent=0 // pred_check
    _
  $region11: #{net_digit5_forward.5} parent=0 // pred_check_branch
    %17 = sbr.rel (0) target = $region13
  $region12: #{net_digit5_forward.5} parent=0 // pred_region
    _
  $region13: #{net_digit5_forward.5} parent=0 // pred_fallthru
    _
  // Predicated region
  $region14: #{net_digit5_forward.5} parent=0 // pred_check
    _
  $region15: #{net_digit5_forward.5} parent=0 // pred_check_branch
    %19 = sbr.rel (0) target = $region17
  $region16: #{net_digit5_forward.5} parent=0 // pred_region
    _
  $region17: #{net_digit5_forward.5} parent=0 // pred_fallthru
    _
  // Predicated region
  $region18: #{net_digit5_forward.5} parent=0 // pred_check
    _
  $region19: #{net_digit5_forward.5} parent=0 // pred_check_branch
    %21 = sbr.rel (0) target = $region21
  $region20: #{net_digit5_forward.5} parent=0 // pred_region
    _
  $region21: #{net_digit5_forward.5} parent=0 // pred_fallthru
    _
  // Predicated region
  $region22: #{net_digit5_forward.5} parent=0 // pred_check
    _
  $region23: #{net_digit5_forward.5} parent=0 // pred_check_branch
    %23 = sbr.rel (0) target = $region25
  $region24: #{net_digit5_forward.5} parent=0 // pred_region
    _
  $region25: #{net_digit5_forward.5} parent=0 // pred_fallthru
    _
  // Predicated region
  $region26: #{net_digit5_forward.5} parent=0 // pred_check
    _
  $region27: #{net_digit5_forward.5} parent=0 // pred_check_branch
    %25 = sbr.rel (0) target = $region29
  $region28: #{net_digit5_forward.5} parent=0 // pred_region
    _
  $region29: #{net_digit5_forward.5} parent=0 // pred_fallthru
    _
  %v27 = vld [vmem:[%s0] sm:$0xff]
  %v28 = vld [vmem:[%s0 + $0x8] sm:$0xff]
  %v29 = vld [vmem:[%s1] sm:$0xf]
  %v30 = vld [vmem:[%s1 + $0x4] sm:$0xf]
  %v31 = vld [vmem:[%s1 + $0x8] sm:$0xf]
  %v32 = vld [vmem:[%s1 + $0xc] sm:$0xf]
  %v33 = vld [vmem:[%s1 + $0x10] sm:$0xf]
  %v34 = vld [vmem:[%s1 + $0x14] sm:$0xf]
  %v35 = vld [vmem:[%s1 + $0x18] sm:$0xf]
  %v36 = vld [vmem:[%s1 + $0x1c] sm:$0xf]
  %v37 = vld [vmem:[%s1 + $0x20] sm:$0xf]
  %v38 = vld [vmem:[%s1 + $0x24] sm:$0xf]
  %v39 = vld [vmem:[%s1 + $0x28] sm:$0xf]
  %v40 = vld [vmem:[%s1 + $0x2c] sm:$0xf]
  %v41 = vld [vmem:[%s1 + $0x30] sm:$0xf]
  %v42 = vld [vmem:[%s1 + $0x34] sm:$0xf]
  %v43 = vld [vmem:[%s1 + $0x38] sm:$0xf]
  %v44 = vld [vmem:[%s1 + $0x3c] sm:$0xf]
  %v45 = vld [vmem:[%s1 + $0x40] sm:$0xf]
  %v46 = vld [vmem:[%s1 + $0x44] sm:$0xf]
  %v47 = vld [vmem:[%s1 + $0x48] sm:$0xf]
  %v48 = vld [vmem:[%s1 + $0x4c] sm:$0xf]
  %v49 = vld [vmem:[%s1 + $0x50] sm:$0xf]
  %v50 = vld [vmem:[%s1 + $0x54] sm:$0xf]
  %v51 = vld [vmem:[%s1 + $0x58] sm:$0xf]
  %v52 = vld [vmem:[%s1 + $0x5c] sm:$0xf]
  %v53 = vld [vmem:[%s1 + $0x60] sm:$0xf]
  %v54 = vld [vmem:[%s1 + $0x64] sm:$0xf]
  %v55 = vld [vmem:[%s1 + $0x68] sm:$0xf]
  %v56 = vld [vmem:[%s1 + $0x6c] sm:$0xf]
  %v57 = vld [vmem:[%s1 + $0x70] sm:$0xf]
  %v58 = vld [vmem:[%s1 + $0x74] sm:$0xf]
  %v59 = vld [vmem:[%s1 + $0x78] sm:$0xf]
  %v60 = vld [vmem:[%s1 + $0x7c] sm:$0xf]
  %v61 = vld [vmem:[%s1 + $0x80] sm:$0xf]
  %v62 = vld [vmem:[%s1 + $0x84] sm:$0xf]
  %v63 = vld [vmem:[%s1 + $0x88] sm:$0xf]
  %v64 = vld [vmem:[%s1 + $0x8c] sm:$0xf]
  %v65 = vld [vmem:[%s1 + $0x90] sm:$0xf]
  %v66 = vld [vmem:[%s1 + $0x94] sm:$0xf]
  %v67 = vld [vmem:[%s1 + $0x98] sm:$0xf]
  %v68 = vld [vmem:[%s1 + $0x9c] sm:$0xf]
  %v69 = vld [vmem:[%s1 + $0xa0] sm:$0xf]
  %v70 = vld [vmem:[%s1 + $0xa4] sm:$0xf]
  %v71 = vld [vmem:[%s1 + $0xa8] sm:$0xf]
  %v72 = vld [vmem:[%s1 + $0xac] sm:$0xf]
  %v73 = vld [vmem:[%s1 + $0xb0] sm:$0xf]
  %v74 = vld [vmem:[%s1 + $0xb4] sm:$0xf]
  %v75 = vld [vmem:[%s1 + $0xb8] sm:$0xf]
  %v76 = vld [vmem:[%s1 + $0xbc] sm:$0xf]
  %v77 = vld [vmem:[%s1 + $0xc0] sm:$0xf]
  %v78 = vld [vmem:[%s1 + $0xc4] sm:$0xf]
  %v79 = vld [vmem:[%s2] sm:$0x1]
  %v81 = vlaneseq
  %v82 = vshrl.u32 %v81, 7
  %v83 = vsub.s32 0, %v82
  %v84 = vrot.slane %v79, %v83
  %v88 = vunpack.c.l.b16 %v27
  %v89 = vunpack.c.h.b16 %v27
  %v90 = vunpack.c.l.b16 %v28
  %v91 = vunpack.c.h.b16 %v28
  %v92 = vpack.c.b16 %v88, %v88
  %v93 = vpack.c.b16 %v89, %v89
  %v94 = vpack.c.b16 %v90, %v90
  %v95 = vpack.c.b16 %v91, %v91
  %v149 = vunpack.c.l.b16 %v29
  %v150 = vunpack.c.l.b16 %v30
  %v151 = vunpack.c.l.b16 %v31
  %v152 = vunpack.c.l.b16 %v32
  %v153 = vunpack.c.l.b16 %v33
  %v154 = vunpack.c.l.b16 %v34
  %v155 = vunpack.c.l.b16 %v35
  %v156 = vunpack.c.l.b16 %v36
  %v157 = vunpack.c.l.b16 %v37
  %v158 = vunpack.c.l.b16 %v38
  %v159 = vunpack.c.l.b16 %v39
  %v160 = vunpack.c.l.b16 %v40
  %v161 = vunpack.c.l.b16 %v41
  %v162 = vunpack.c.l.b16 %v42
  %v163 = vunpack.c.l.b16 %v43
  %v164 = vunpack.c.l.b16 %v44
  %v165 = vunpack.c.l.b16 %v45
  %v166 = vunpack.c.l.b16 %v46
  %v167 = vunpack.c.l.b16 %v47
  %v168 = vunpack.c.l.b16 %v48
  %v169 = vunpack.c.l.b16 %v49
  %v170 = vunpack.c.l.b16 %v50
  %v171 = vunpack.c.l.b16 %v51
  %v172 = vunpack.c.l.b16 %v52
  %v173 = vunpack.c.l.b16 %v53
  %v174 = vunpack.c.l.b16 %v54
  %v175 = vunpack.c.l.b16 %v55
  %v176 = vunpack.c.l.b16 %v56
  %v177 = vunpack.c.l.b16 %v57
  %v178 = vunpack.c.l.b16 %v58
  %v179 = vunpack.c.l.b16 %v59
  %v180 = vunpack.c.l.b16 %v60
  %v181 = vunpack.c.l.b16 %v61
  %v182 = vunpack.c.l.b16 %v62
  %v183 = vunpack.c.l.b16 %v63
  %v184 = vunpack.c.l.b16 %v64
  %v185 = vunpack.c.l.b16 %v65
  %v186 = vunpack.c.l.b16 %v66
  %v187 = vunpack.c.l.b16 %v67
  %v188 = vunpack.c.l.b16 %v68
  %v189 = vunpack.c.l.b16 %v69
  %v190 = vunpack.c.l.b16 %v70
  %v191 = vunpack.c.l.b16 %v71
  %v192 = vunpack.c.l.b16 %v72
  %v193 = vunpack.c.l.b16 %v73
  %v194 = vunpack.c.l.b16 %v74
  %v195 = vunpack.c.l.b16 %v75
  %v196 = vunpack.c.l.b16 %v76
  %v197 = vunpack.c.l.b16 %v77
  %v198 = vunpack.c.l.b16 %v78
  %v199 = vpack.c.b16 %v150, %v149
  %v200 = vpack.c.b16 %v152, %v151
  %v201 = vpack.c.b16 %v154, %v153
  %v202 = vpack.c.b16 %v156, %v155
  %v203 = vpack.c.b16 %v158, %v157
  %v204 = vpack.c.b16 %v160, %v159
  %v205 = vpack.c.b16 %v162, %v161
  %v206 = vpack.c.b16 %v164, %v163
  %v207 = vpack.c.b16 %v166, %v165
  %v208 = vpack.c.b16 %v168, %v167
  %v209 = vpack.c.b16 %v170, %v169
  %v210 = vpack.c.b16 %v172, %v171
  %v211 = vpack.c.b16 %v174, %v173
  %v212 = vpack.c.b16 %v176, %v175
  %v213 = vpack.c.b16 %v178, %v177
  %v214 = vpack.c.b16 %v180, %v179
  %v215 = vpack.c.b16 %v182, %v181
  %v216 = vpack.c.b16 %v184, %v183
  %v217 = vpack.c.b16 %v186, %v185
  %v218 = vpack.c.b16 %v188, %v187
  %v219 = vpack.c.b16 %v190, %v189
  %v220 = vpack.c.b16 %v192, %v191
  %v221 = vpack.c.b16 %v194, %v193
  %v222 = vpack.c.b16 %v196, %v195
  %v223 = vpack.c.b16 %v198, %v197
  %vm249 = vcmask 130048
  %v251 = vsel %vm249, %v95, 0
  %253 = vmatprep.subr.bf16.mxu0 0
  %254 = vmatpush1.bf16.msra.mxu0 %v199
  %255 = vmatprep.subr.bf16.mxu0 0
  %256 = vmatpush1.bf16.msra.mxu0 %v200
  %257 = vmatprep.subr.bf16.mxu0 0
  %258 = vmatpush1.bf16.msra.mxu0 %v201
  %259 = vmatprep.subr.bf16.mxu0 0
  %260 = vmatpush1.bf16.msra.mxu0 %v202
  %261 = vmatprep.subr.bf16.mxu0 0
  %262 = vmatpush1.bf16.msra.mxu0 %v203
  %263 = vmatprep.subr.bf16.mxu0 0
  %264 = vmatpush1.bf16.msra.mxu0 %v204
  %265 = vmatprep.subr.bf16.mxu0 0
  %266 = vmatpush1.bf16.msra.mxu0 %v205
  %267 = vmatprep.subr.bf16.mxu0 0
  %268 = vmatpush1.bf16.msra.mxu0 %v206
  %269 = vmatprep.subr.bf16.mxu0 0
  %270 = vmatpush1.bf16.msra.mxu0 %v207
  %271 = vmatprep.subr.bf16.mxu0 0
  %272 = vmatpush1.bf16.msra.mxu0 %v208
  %273 = vmatprep.subr.bf16.mxu0 0
  %274 = vmatpush1.bf16.msra.mxu0 %v209
  %275 = vmatprep.subr.bf16.mxu0 0
  %276 = vmatpush1.bf16.msra.mxu0 %v210
  %277 = vmatprep.subr.bf16.mxu0 0
  %278 = vmatpush1.bf16.msra.mxu0 %v211
  %279 = vmatprep.subr.bf16.mxu0 0
  %280 = vmatpush1.bf16.msra.mxu0 %v212
  %281 = vmatprep.subr.bf16.mxu0 0
  %282 = vmatpush1.bf16.msra.mxu0 %v213
  %283 = vmatprep.subr.bf16.mxu0 0
  %284 = vmatpush1.bf16.msra.mxu0 %v214
  %285 = vmatprep.mubr.bf16.mxu0 %v93
  %286 = vmatmul.mubr.bf16.gmra.mrb[0].mxu0 %v92
  %v287 = vpop.f32.mrb[0].mxu0
  %v288 = vadd.f32 %v84, %v287
  %v289 = vpop.f32.mrb[0].mxu0
  %v290 = vpop.f32.mrb[0].mxu0
  %v291 = vpop.f32.mrb[0].mxu0
  %292 = vdwg.mxu0
  %293 = vmatprep.subr.bf16.mxu0 0
  %294 = vmatpush1.bf16.msra.mxu0 %v215
  %295 = vmatprep.subr.bf16.mxu0 0
  %296 = vmatpush1.bf16.msra.mxu0 %v216
  %297 = vmatprep.subr.bf16.mxu0 0
  %298 = vmatpush1.bf16.msra.mxu0 %v217
  %299 = vmatprep.subr.bf16.mxu0 0
  %300 = vmatpush1.bf16.msra.mxu0 %v218
  %301 = vmatprep.subr.bf16.mxu0 0
  %302 = vmatpush1.bf16.msra.mxu0 %v219
  %303 = vmatprep.subr.bf16.mxu0 0
  %304 = vmatpush1.bf16.msra.mxu0 %v220
  %305 = vmatprep.subr.bf16.mxu0 0
  %306 = vmatpush1.bf16.msra.mxu0 %v221
  %307 = vmatprep.subr.bf16.mxu0 0
  %308 = vmatpush1.bf16.msra.mxu0 %v222
  %309 = vmatprep.subr.bf16.mxu0 0
  %310 = vmatpush1.bf16.msra.mxu0 %v223
  %311 = vmatprep.subr.bf16.mxu0 0
  %312 = vmatpush1.bf16.msra.mxu0 0
  %313 = vmatprep.subr.bf16.mxu0 0
  %314 = vmatpush1.bf16.msra.mxu0 0
  %315 = vmatprep.subr.bf16.mxu0 0
  %316 = vmatpush1.bf16.msra.mxu0 0
  %317 = vmatprep.subr.bf16.mxu0 0
  %318 = vmatpush1.bf16.msra.mxu0 0
  %319 = vmatprep.subr.bf16.mxu0 0
  %320 = vmatpush1.bf16.msra.mxu0 0
  %321 = vmatprep.subr.bf16.mxu0 0
  %322 = vmatpush1.bf16.msra.mxu0 0
  %323 = vmatprep.subr.bf16.mxu0 0
  %324 = vmatpush1.bf16.msra.mxu0 0
  %325 = vmatprep.mubr.bf16.mxu0 %v251
  %326 = vmatmul.mubr.bf16.gmra.mrb[0].mxu0 %v94
  %v327 = vpop.f32.mrb[0].mxu0
  %v328 = vadd.f32 %v288, %v327
  %v329 = vpop.f32.mrb[0].mxu0
  %v330 = vpop.f32.mrb[0].mxu0
  %v331 = vpop.f32.mrb[0].mxu0
  %332 = vdwg.mxu0
  %v333 = vmax.f32 %v328, 0.0
  %v334 = vpack.c.bf16 %v333, %v333
  %v335 = vld [vmem:[%s3] sm:$0xf]
  %v336 = vld [vmem:[%s3 + $0x4] sm:$0xf]
  %v337 = vld [vmem:[%s3 + $0x8] sm:$0xf]
  %v338 = vld [vmem:[%s3 + $0xc] sm:$0xf]
  %v339 = vld [vmem:[%s3 + $0x10] sm:$0xf]
  %v340 = vld [vmem:[%s3 + $0x14] sm:$0xf]
  %v341 = vld [vmem:[%s3 + $0x18] sm:$0xf]
  %v342 = vld [vmem:[%s3 + $0x1c] sm:$0xf]
  %v343 = vld [vmem:[%s3 + $0x20] sm:$0xf]
  %v344 = vld [vmem:[%s3 + $0x24] sm:$0xf]
  %v345 = vld [vmem:[%s3 + $0x28] sm:$0xf]
  %v346 = vld [vmem:[%s3 + $0x2c] sm:$0xf]
  %v347 = vld [vmem:[%s3 + $0x30] sm:$0xf]
  %v348 = vld [vmem:[%s3 + $0x34] sm:$0xf]
  %v349 = vld [vmem:[%s3 + $0x38] sm:$0xf]
  %v350 = vld [vmem:[%s4] sm:$0x1]
  %v352 = vlaneseq
  %v353 = vshrl.u32 %v352, 7
  %v354 = vsub.s32 0, %v353
  %v355 = vrot.slane %v350, %v354
  %v372 = vunpack.c.l.b16 %v335
  %v373 = vunpack.c.l.b16 %v336
  %v374 = vunpack.c.l.b16 %v337
  %v375 = vunpack.c.l.b16 %v338
  %v376 = vunpack.c.l.b16 %v339
  %v377 = vunpack.c.l.b16 %v340
  %v378 = vunpack.c.l.b16 %v341
  %v379 = vunpack.c.l.b16 %v342
  %v380 = vunpack.c.l.b16 %v343
  %v381 = vunpack.c.l.b16 %v344
  %v382 = vunpack.c.l.b16 %v345
  %v383 = vunpack.c.l.b16 %v346
  %v384 = vunpack.c.l.b16 %v347
  %v385 = vunpack.c.l.b16 %v348
  %v386 = vunpack.c.l.b16 %v349
  %v387 = vpack.c.b16 %v373, %v372
  %v388 = vpack.c.b16 %v375, %v374
  %v389 = vpack.c.b16 %v377, %v376
  %v390 = vpack.c.b16 %v379, %v378
  %v391 = vpack.c.b16 %v381, %v380
  %v392 = vpack.c.b16 %v383, %v382
  %v393 = vpack.c.b16 %v385, %v384
  %v394 = vpack.c.b16 %v386, %v386
  %vm402 = vcmask 982016
  %v404 = vsel %vm402, %v334, 0
  %vm406 = vcmask 1043456
  %v408 = vsel %vm406, %v394, 0
  %410 = vmatprep.subr.bf16.mxu0 0
  %411 = vmatpush1.bf16.msra.mxu0 %v387
  %412 = vmatprep.subr.bf16.mxu0 0
  %413 = vmatpush1.bf16.msra.mxu0 %v388
  %414 = vmatprep.subr.bf16.mxu0 0
  %415 = vmatpush1.bf16.msra.mxu0 %v389
  %416 = vmatprep.subr.bf16.mxu0 0
  %417 = vmatpush1.bf16.msra.mxu0 %v390
  %418 = vmatprep.subr.bf16.mxu0 0
  %419 = vmatpush1.bf16.msra.mxu0 %v391
  %420 = vmatprep.subr.bf16.mxu0 0
  %421 = vmatpush1.bf16.msra.mxu0 %v392
  %422 = vmatprep.subr.bf16.mxu0 0
  %423 = vmatpush1.bf16.msra.mxu0 %v393
  %424 = vmatprep.subr.bf16.mxu0 0
  %425 = vmatpush1.bf16.msra.mxu0 %v408
  %426 = vmatprep.subr.bf16.mxu0 0
  %427 = vmatpush1.bf16.msra.mxu0 0
  %428 = vmatprep.subr.bf16.mxu0 0
  %429 = vmatpush1.bf16.msra.mxu0 0
  %430 = vmatprep.subr.bf16.mxu0 0
  %431 = vmatpush1.bf16.msra.mxu0 0
  %432 = vmatprep.subr.bf16.mxu0 0
  %433 = vmatpush1.bf16.msra.mxu0 0
  %434 = vmatprep.subr.bf16.mxu0 0
  %435 = vmatpush1.bf16.msra.mxu0 0
  %436 = vmatprep.subr.bf16.mxu0 0
  %437 = vmatpush1.bf16.msra.mxu0 0
  %438 = vmatprep.subr.bf16.mxu0 0
  %439 = vmatpush1.bf16.msra.mxu0 0
  %440 = vmatprep.subr.bf16.mxu0 0
  %441 = vmatpush1.bf16.msra.mxu0 0
  %442 = vmatprep.mubr.bf16.mxu0 0
  %443 = vmatmul.mubr.bf16.gmra.mrb[0].mxu0 %v404
  %v444 = vpop.f32.mrb[0].mxu0
  %v445 = vadd.f32 %v355, %v444
  %v446 = vpop.f32.mrb[0].mxu0
  %v447 = vpop.f32.mrb[0].mxu0
  %v448 = vpop.f32.mrb[0].mxu0
  %449 = vdwg.mxu0
  %v450 = vmax.f32 %v445, 0.0
  %v451 = vpack.c.bf16 %v450, %v450
  %v452 = vld [vmem:[%s5] sm:$0xf]
  %v453 = vld [vmem:[%s5 + $0x4] sm:$0xf]
  %v454 = vld [vmem:[%s5 + $0x8] sm:$0xf]
  %v455 = vld [vmem:[%s5 + $0xc] sm:$0xf]
  %v456 = vld [vmem:[%s5 + $0x10] sm:$0xf]
  %v457 = vld [vmem:[%s5 + $0x14] sm:$0xf]
  %v458 = vld [vmem:[%s5 + $0x18] sm:$0xf]
  %v459 = vld [vmem:[%s5 + $0x1c] sm:$0xf]
  %v460 = vld [vmem:[%s5 + $0x20] sm:$0xf]
  %v461 = vld [vmem:[%s5 + $0x24] sm:$0xf]
  %v462 = vld [vmem:[%s5 + $0x28] sm:$0x3]
  %v463 = vld [vmem:[%s6] sm:$0x1]
  %v465 = vlaneseq
  %v466 = vshrl.u32 %v465, 7
  %v467 = vsub.s32 0, %v466
  %v468 = vrot.slane %v463, %v467
  %v481 = vunpack.c.l.b16 %v452
  %v482 = vunpack.c.l.b16 %v453
  %v483 = vunpack.c.l.b16 %v454
  %v484 = vunpack.c.l.b16 %v455
  %v485 = vunpack.c.l.b16 %v456
  %v486 = vunpack.c.l.b16 %v457
  %v487 = vunpack.c.l.b16 %v458
  %v488 = vunpack.c.l.b16 %v459
  %v489 = vunpack.c.l.b16 %v460
  %v490 = vunpack.c.l.b16 %v461
  %v491 = vunpack.c.l.b16 %v462
  %v492 = vpack.c.b16 %v482, %v481
  %v493 = vpack.c.b16 %v484, %v483
  %v494 = vpack.c.b16 %v486, %v485
  %v495 = vpack.c.b16 %v488, %v487
  %v496 = vpack.c.b16 %v490, %v489
  %v497 = vpack.c.b16 %v491, %v491
  %vm503 = vcmask 687104
  %v505 = vsel %vm503, %v451, 0
  %vm507 = vcmask 1041408
  %v509 = vsel %vm507, %v497, 0
  %511 = vmatprep.subr.bf16.mxu0 0
  %512 = vmatpush1.bf16.msra.mxu0 %v492
  %513 = vmatprep.subr.bf16.mxu0 0
  %514 = vmatpush1.bf16.msra.mxu0 %v493
  %515 = vmatprep.subr.bf16.mxu0 0
  %516 = vmatpush1.bf16.msra.mxu0 %v494
  %517 = vmatprep.subr.bf16.mxu0 0
  %518 = vmatpush1.bf16.msra.mxu0 %v495
  %519 = vmatprep.subr.bf16.mxu0 0
  %520 = vmatpush1.bf16.msra.mxu0 %v496
  %521 = vmatprep.subr.bf16.mxu0 0
  %522 = vmatpush1.bf16.msra.mxu0 %v509
  %523 = vmatprep.subr.bf16.mxu0 0
  %524 = vmatpush1.bf16.msra.mxu0 0
  %525 = vmatprep.subr.bf16.mxu0 0
  %526 = vmatpush1.bf16.msra.mxu0 0
  %527 = vmatprep.subr.bf16.mxu0 0
  %528 = vmatpush1.bf16.msra.mxu0 0
  %529 = vmatprep.subr.bf16.mxu0 0
  %530 = vmatpush1.bf16.msra.mxu0 0
  %531 = vmatprep.subr.bf16.mxu0 0
  %532 = vmatpush1.bf16.msra.mxu0 0
  %533 = vmatprep.subr.bf16.mxu0 0
  %534 = vmatpush1.bf16.msra.mxu0 0
  %535 = vmatprep.subr.bf16.mxu0 0
  %536 = vmatpush1.bf16.msra.mxu0 0
  %537 = vmatprep.subr.bf16.mxu0 0
  %538 = vmatpush1.bf16.msra.mxu0 0
  %539 = vmatprep.subr.bf16.mxu0 0
  %540 = vmatpush1.bf16.msra.mxu0 0
  %541 = vmatprep.subr.bf16.mxu0 0
  %542 = vmatpush1.bf16.msra.mxu0 0
  %543 = vmatprep.mubr.bf16.mxu0 0
  %544 = vmatmul.mubr.bf16.gmra.mrb[0].mxu0 %v505
  %v545 = vpop.f32.mrb[0].mxu0
  %v546 = vadd.f32 %v468, %v545
  %v547 = vpop.f32.mrb[0].mxu0
  %v548 = vpop.f32.mrb[0].mxu0
  %v549 = vpop.f32.mrb[0].mxu0
  %550 = vdwg.mxu0
  %551 = vst [vmem:[%s7] sm:$0xff] %v546
  // Predicated region
  $region30: #{net_digit5_forward.5} parent=0 // pred_check
    _
  $region31: #{net_digit5_forward.5} parent=0 // pred_check_branch
    %553 = sbr.rel (0) target = $region33
  $region32: #{net_digit5_forward.5} parent=0 // pred_region
    _
  $region33: #{net_digit5_forward.5} parent=0 // pred_fallthru
    _
  // Predicated region
  $region34: #{net_digit5_forward.5} parent=0 // pred_check
    _
  $region35: #{net_digit5_forward.5} parent=0 // pred_check_branch
    %555 = sbr.rel (0) target = $region37
  $region36: #{net_digit5_forward.5} parent=0 // pred_region
    _
  $region37: #{net_digit5_forward.5} parent=0 // pred_fallthru
    _

// kernel: net_digit5_forward.4
$region0: #{net_digit5_forward.4}
  #allocation0 [shape = 'u32[]', space=smem, size = 0x4, offset = 0x4, fixed_abs, tag = 'smem constant byte address 0x4 - core index']
  #allocation1 [shape = 'u32[144,128]{1,0:T(1,128)}', space=vmem, size = 0x12000, scoped, tag = 'internal scratch']
  %s0 = inlined_call_operand.vmem [shape: f32[16,150], index: 0, kind: input, shape index: {}]
  %s1 = inlined_call_operand.vmem [shape: f32[16,1], index: 1, kind: input, shape index: {}]
  %s2 = inlined_call_operand.vmem [shape: f32[24,128], index: 2, kind: input, shape index: {}, may-alias: {2,3}]
  %s3 = inlined_call_operand.vmem [shape: f32[24,128], index: 3, kind: input, shape index: {}, may-alias: {2,3}]
  %s4 = inlined_call_operand.vmem [shape: bf16[16,128], index: 4, kind: output, shape index: {}]
  %s5 = sld [smem:[#allocation0]]
  $region26: #{net_digit5_forward.4} parent=0
    _
  %s7 = ssub.s32 1, %s5
  %s8 = scalar_select 0, %s7, %s5
  // Predicated region
  $region2: #{net_digit5_forward.4} parent=0 // pred_check
    _
  $region3: #{net_digit5_forward.4} parent=0 // pred_check_branch
    %10 = sbr.rel (0) target = $region5
  $region4: #{net_digit5_forward.4} parent=0 // pred_region
    _
  $region5: #{net_digit5_forward.4} parent=0 // pred_fallthru
    _
  // Predicated region
  $region6: #{net_digit5_forward.4} parent=0 // pred_check
    _
  $region7: #{net_digit5_forward.4} parent=0 // pred_check_branch
    %12 = sbr.rel (0) target = $region9
  $region8: #{net_digit5_forward.4} parent=0 // pred_region
    _
  $region9: #{net_digit5_forward.4} parent=0 // pred_fallthru
    _
  // Predicated region
  $region10: #{net_digit5_forward.4} parent=0 // pred_check
    _
  $region11: #{net_digit5_forward.4} parent=0 // pred_check_branch
    %14 = sbr.rel (0) target = $region13
  $region12: #{net_digit5_forward.4} parent=0 // pred_region
    _
  $region13: #{net_digit5_forward.4} parent=0 // pred_fallthru
    _
  // Predicated region
  $region14: #{net_digit5_forward.4} parent=0 // pred_check
    _
  $region15: #{net_digit5_forward.4} parent=0 // pred_check_branch
    %16 = sbr.rel (0) target = $region17
  $region16: #{net_digit5_forward.4} parent=0 // pred_region
    %s17 = sadd.s32 0, 1
    %p18 = scmp.lt.s32.totalorder %s17, 0
    %s19 = scalar_select %p18, %s17, 0
    %p20 = scmp.lt.s32.totalorder %s19, 0
    %s21 = scalar_select %p20, %s19, 0
    %s22 = smul.addr %s21, 8
    %s23 = scalar_lea.vmem %s3, %s22
    %s24 = sadd.s32 0, 1
    %p25 = scmp.lt.s32.totalorder %s24, 0
    %s26 = scalar_select %p25, %s24, 0
  $region17: #{net_digit5_forward.4} parent=0 // pred_fallthru
    _
  %s27 = sadd.s32 0, 1
  %p28 = scmp.lt.s32.totalorder %s27, 0
  %s29 = scalar_select %p28, %s27, 0
  %p30 = scmp.lt.s32.totalorder %s29, 0
  %s31 = scalar_select %p30, %s29, 0
  %s32 = smul.addr %s31, 8
  %s33 = scalar_lea.vmem %s3, %s32
  %s34 = sadd.s32 0, 1
  %p35 = scmp.lt.s32.totalorder %s34, 0
  %s36 = scalar_select %p35, %s34, 0
  %p37 = scmp.lt.s32.totalorder %s36, 0
  %s38 = scalar_select %p37, %s36, 0
  %s39 = smul.addr %s38, 8
  %s40 = scalar_lea.vmem %s3, %s39
  %s41 = sadd.s32 0, 1
  %p42 = scmp.lt.s32.totalorder %s41, 0
  %s43 = scalar_select %p42, %s41, 0
  %v44 = vld [vmem:[%s2] sm:$0xff]
  %v45 = vld [vmem:[%s2 + $0x8] sm:$0xff]
  %v46 = vld [vmem:[%s2 + $0x10] sm:$0xff]
  %v47 = vld [vmem:[%s40] sm:$0xff]
  %v48 = vld [vmem:[%s40 + $0x8] sm:$0xff]
  %v49 = vld [vmem:[%s40 + $0x10] sm:$0xff]
  %v50 = vld [vmem:[%s0] sm:$0xff]
  %v51 = vld [vmem:[%s0 + $0x8] sm:$0xff]
  %v52 = vld [vmem:[%s0 + $0x10] sm:$0xff]
  %v53 = vld [vmem:[%s0 + $0x18] sm:$0xff]
  %v56 = vrot.slane %v44, 4
  %v57 = vrot.slane %v47, 4
  %58 = vrot.lane.b32.xlu0 %v56, 127
  %v59 = vpop.permute.xlu0 %58
  %60 = vrot.lane.b32.xlu0 %v57, 127
  %v61 = vpop.permute.xlu0 %60
  %vm62 = vcmask 1039360
  %v63 = vsel %vm62, %v59, %v61
  %vm67 = vcmask 1043456
  %v68 = vrot.slane %v45, 4
  %v69 = vsel %vm67, %v56, %v68
  %v70 = vrot.slane %v48, 4
  %v71 = vsel %vm67, %v57, %v70
  %72 = vrot.lane.b32.xlu0 %v69, 127
  %v73 = vpop.permute.xlu0 %72
  %74 = vrot.lane.b32.xlu0 %v71, 127
  %v75 = vpop.permute.xlu0 %74
  %v76 = vsel %vm62, %v73, %v75
  %78 = vrot.lane.b32.xlu0 %v44, 126
  %v79 = vpop.permute.xlu0 %78
  %80 = vrot.lane.b32.xlu0 %v47, 126
  %v81 = vpop.permute.xlu0 %80
  %vm82 = vcmask 1031168
  %v83 = vsel %vm82, %v79, %v81
  %vm86 = vcmask 1041408
  %v87 = vrot.slane %v45, 6
  %v88 = vrot.slane %v46, 6
  %v89 = vsel %vm86, %v87, %v88
  %vm94 = vcmask 1045504
  %v95 = vrot.slane %v45, 2
  %v96 = vrot.slane %v46, 2
  %v97 = vsel %vm94, %v95, %v96
  %v98 = vrot.slane %v48, 2
  %v99 = vrot.slane %v49, 2
  %v100 = vsel %vm94, %v98, %v99
  %101 = vrot.lane.b32.xlu0 %v97, 127
  %v102 = vpop.permute.xlu0 %101
  %103 = vrot.lane.b32.xlu0 %v100, 127
  %v104 = vpop.permute.xlu0 %103
  %v105 = vsel %vm62, %v102, %v104
  %107 = vrot.lane.b32.xlu0 %v96, 127
  %v108 = vpop.permute.xlu0 %107
  %109 = vrot.lane.b32.xlu0 %v99, 127
  %v110 = vpop.permute.xlu0 %109
  %v111 = vsel %vm62, %v108, %v110
  %v113 = vrot.slane %v48, 6
  %v114 = vrot.slane %v49, 6
  %v115 = vsel %vm86, %v113, %v114
  %116 = vrot.lane.b32.xlu0 %v87, 126
  %v117 = vpop.permute.xlu0 %116
  %118 = vrot.lane.b32.xlu0 %v113, 126
  %v119 = vpop.permute.xlu0 %118
  %120 = vrot.lane.b32.xlu0 %v89, 126
  %v121 = vpop.permute.xlu0 %120
  %122 = vrot.lane.b32.xlu0 %v115, 126
  %v123 = vpop.permute.xlu0 %122
  %v124 = vsel %vm82, %v117, %v119
  %v125 = vsel %vm82, %v121, %v123
  %128 = vrot.lane.b32.xlu0 %v56, 121
  %v129 = vpop.permute.xlu0 %128
  %130 = vrot.lane.b32.xlu0 %v57, 121
  %v131 = vpop.permute.xlu0 %130
  %vm132 = vcmask 990208
  %v133 = vsel %vm132, %v129, %v131
  %135 = vrot.lane.b32.xlu0 %v69, 121
  %v136 = vpop.permute.xlu0 %135
  %137 = vrot.lane.b32.xlu0 %v71, 121
  %v138 = vpop.permute.xlu0 %137
  %v139 = vsel %vm132, %v136, %v138
  %141 = vrot.lane.b32.xlu0 %v44, 120
  %v142 = vpop.permute.xlu0 %141
  %143 = vrot.lane.b32.xlu0 %v47, 120
  %v144 = vpop.permute.xlu0 %143
  %vm145 = vcmask 982016
  %v146 = vsel %vm145, %v142, %v144
  %148 = vrot.lane.b32.xlu0 %v45, 120
  %v149 = vpop.permute.xlu0 %148
  %150 = vrot.lane.b32.xlu0 %v48, 120
  %v151 = vpop.permute.xlu0 %150
  %v152 = vsel %vm145, %v149, %v151
  %154 = vrot.lane.b32.xlu0 %v56, 119
  %v155 = vpop.permute.xlu0 %154
  %156 = vrot.lane.b32.xlu0 %v57, 119
  %v157 = vpop.permute.xlu0 %156
  %vm158 = vcmask 973824
  %v159 = vsel %vm158, %v155, %v157
  %161 = vrot.lane.b32.xlu0 %v97, 121
  %v162 = vpop.permute.xlu0 %161
  %163 = vrot.lane.b32.xlu0 %v100, 121
  %v164 = vpop.permute.xlu0 %163
  %v165 = vsel %vm132, %v162, %v164
  %v167 = vsel %vm67, %v45, %v63
  %v168 = vsel %vm86, %v63, %v76
  %v169 = vsel %vm94, %v83, %v87
  %v170 = vsel %vm67, %v89, %v88
  %v171 = vsel %vm86, %v88, %v105
  %v172 = vsel %vm94, %v111, %v124
  %v173 = vsel %vm67, %v125, %v133
  %v174 = vsel %vm86, %v133, %v139
  %v175 = vsel %vm67, %v152, %v159
  %v176 = vsel %vm86, %v159, %v165
  %179 = vrot.lane.b32.xlu0 %v87, 127
  %v180 = vpop.permute.xlu0 %179
  %181 = vrot.lane.b32.xlu0 %v113, 127
  %v182 = vpop.permute.xlu0 %181
  %183 = vrot.lane.b32.xlu0 %v89, 127
  %v184 = vpop.permute.xlu0 %183
  %185 = vrot.lane.b32.xlu0 %v115, 127
  %v186 = vpop.permute.xlu0 %185
  %v187 = vsel %vm62, %v180, %v182
  %v188 = vsel %vm62, %v184, %v186
  %193 = vrot.lane.b32.xlu0 %v88, 127
  %v194 = vpop.permute.xlu0 %193
  %195 = vrot.lane.b32.xlu0 %v114, 127
  %v196 = vpop.permute.xlu0 %195
  %v197 = vsel %vm62, %v194, %v196
  %200 = vrot.lane.b32.xlu0 %v97, 126
  %v201 = vpop.permute.xlu0 %200
  %202 = vrot.lane.b32.xlu0 %v100, 126
  %v203 = vpop.permute.xlu0 %202
  %v204 = vsel %vm82, %v201, %v203
  %207 = vrot.lane.b32.xlu0 %v44, 121
  %v208 = vpop.permute.xlu0 %207
  %209 = vrot.lane.b32.xlu0 %v47, 121
  %v210 = vpop.permute.xlu0 %209
  %v211 = vsel %vm132, %v208, %v210
  %214 = vrot.lane.b32.xlu0 %v45, 121
  %v215 = vpop.permute.xlu0 %214
  %216 = vrot.lane.b32.xlu0 %v48, 121
  %v217 = vpop.permute.xlu0 %216
  %v218 = vsel %vm132, %v215, %v217
  %221 = vrot.lane.b32.xlu0 %v56, 120
  %v222 = vpop.permute.xlu0 %221
  %223 = vrot.lane.b32.xlu0 %v57, 120
  %v224 = vpop.permute.xlu0 %223
  %v225 = vsel %vm145, %v222, %v224
  %228 = vrot.lane.b32.xlu0 %v69, 120
  %v229 = vpop.permute.xlu0 %228
  %230 = vrot.lane.b32.xlu0 %v71, 120
  %v231 = vpop.permute.xlu0 %230
  %v232 = vsel %vm145, %v229, %v231
  %235 = vrot.lane.b32.xlu0 %v44, 119
  %v236 = vpop.permute.xlu0 %235
  %237 = vrot.lane.b32.xlu0 %v47, 119
  %v238 = vpop.permute.xlu0 %237
  %v239 = vsel %vm158, %v236, %v238
  %v240 = vsel %vm94, %v96, %v187
  %v241 = vsel %vm94, %v99, %v182
  %v242 = vsel %vm67, %v188, %v197
  %v243 = vsel %vm67, %v186, %v196
  %v244 = vsel %vm86, %v197, %v204
  %v245 = vsel %vm86, %v196, %v203
  %v246 = vsel %vm67, %v218, %v225
  %v247 = vsel %vm67, %v217, %v224
  %v248 = vsel %vm86, %v225, %v232
  %v249 = vsel %vm86, %v224, %v231
  %262 = vrot.lane.b32.xlu0 %v240, 121
  %v263 = vpop.permute.xlu0 %262
  %264 = vrot.lane.b32.xlu0 %v241, 121
  %v265 = vpop.permute.xlu0 %264
  %266 = vrot.lane.b32.xlu0 %v242, 121
  %v267 = vpop.permute.xlu0 %266
  %268 = vrot.lane.b32.xlu0 %v243, 121
  %v269 = vpop.permute.xlu0 %268
  %270 = vrot.lane.b32.xlu0 %v244, 121
  %v271 = vpop.permute.xlu0 %270
  %272 = vrot.lane.b32.xlu0 %v245, 121
  %v273 = vpop.permute.xlu0 %272
  %274 = vrot.lane.b32.xlu0 %v211, 121
  %v275 = vpop.permute.xlu0 %274
  %276 = vrot.lane.b32.xlu0 %v210, 121
  %v277 = vpop.permute.xlu0 %276
  %278 = vrot.lane.b32.xlu0 %v246, 121
  %v279 = vpop.permute.xlu0 %278
  %280 = vrot.lane.b32.xlu0 %v247, 121
  %v281 = vpop.permute.xlu0 %280
  %282 = vrot.lane.b32.xlu0 %v248, 121
  %v283 = vpop.permute.xlu0 %282
  %284 = vrot.lane.b32.xlu0 %v249, 121
  %v285 = vpop.permute.xlu0 %284
  %286 = vrot.lane.b32.xlu0 %v239, 121
  %v287 = vpop.permute.xlu0 %286
  %288 = vrot.lane.b32.xlu0 %v238, 121
  %v289 = vpop.permute.xlu0 %288
  %v290 = vsel %vm132, %v263, %v265
  %v291 = vsel %vm132, %v267, %v269
  %v292 = vsel %vm132, %v271, %v273
  %v293 = vsel %vm132, %v275, %v277
  %v294 = vsel %vm132, %v279, %v281
  %v295 = vsel %vm132, %v283, %v285
  %v296 = vsel %vm132, %v287, %v289
  %vm303 = vcmask 179200
  %v305 = vsel %vm303, %v51, 0
  %v308 = vsel %vm303, %v53, 0
  %v310 = vsel %vm94, %v296, 0
  %312 = vmatprep.subr.mxu0 0.0
  %313 = vmatpush1.msra.mxu0 %v44
  %314 = vmatprep.subr.mxu0 0.0
  %315 = vmatpush1.msra.mxu0 %v167
  %316 = vmatprep.subr.mxu0 0.0
  %317 = vmatpush1.msra.mxu0 %v168
  %318 = vmatprep.subr.mxu0 0.0
  %319 = vmatpush1.msra.mxu0 %v169
  %320 = vmatprep.subr.mxu0 0.0
  %321 = vmatpush1.msra.mxu0 %v170
  %322 = vmatprep.subr.mxu0 0.0
  %323 = vmatpush1.msra.mxu0 %v171
  %324 = vmatprep.subr.mxu0 0.0
  %325 = vmatpush1.msra.mxu0 %v172
  %326 = vmatprep.subr.mxu0 0.0
  %327 = vmatpush1.msra.mxu0 %v173
  %328 = vmatprep.subr.mxu0 0.0
  %329 = vmatpush1.msra.mxu0 %v174
  %330 = vmatprep.subr.mxu0 0.0
  %331 = vmatpush1.msra.mxu0 %v146
  %332 = vmatprep.subr.mxu0 0.0
  %333 = vmatpush1.msra.mxu0 %v175
  %334 = vmatprep.subr.mxu0 0.0
  %335 = vmatpush1.msra.mxu0 %v176
  %336 = vmatprep.subr.mxu0 0.0
  %337 = vmatpush1.msra.mxu0 %v290
  %338 = vmatprep.subr.mxu0 0.0
  %339 = vmatpush1.msra.mxu0 %v291
  %340 = vmatprep.subr.mxu0 0.0
  %341 = vmatpush1.msra.mxu0 %v292
  %342 = vmatprep.subr.mxu0 0.0
  %343 = vmatpush1.msra.mxu0 %v293
  %344 = vmatprep.subr.mxu0 0.0
  %345 = vmatpush1.msra.mxu0 %v294
  %346 = vmatprep.subr.mxu0 0.0
  %347 = vmatpush1.msra.mxu0 %v295
  %348 = vmatprep.subr.mxu0 0.0
  %349 = vmatpush1.msra.mxu0 %v310
  %350 = vmatprep.subr.mxu0 0.0
  %351 = vmatpush1.msra.mxu0 0.0
  %352 = vmatprep.subr.mxu0 0.0
  %353 = vmatpush1.msra.mxu0 0.0
  %354 = vmatprep.subr.mxu0 0.0
  %355 = vmatpush1.msra.mxu0 0.0
  %356 = vmatprep.subr.mxu0 0.0
  %357 = vmatpush1.msra.mxu0 0.0
  %358 = vmatprep.subr.mxu0 0.0
  %359 = vmatpush1.msra.mxu0 0.0
  %360 = vmatprep.subr.mxu0 0.0
  %361 = vmatpush1.msra.mxu0 0.0
  %362 = vmatprep.subr.mxu0 0.0
  %363 = vmatpush1.msra.mxu0 0.0
  %364 = vmatprep.subr.mxu0 0.0
  %365 = vmatpush1.msra.mxu0 0.0
  %366 = vmatprep.subr.mxu0 0.0
  %367 = vmatpush1.msra.mxu0 0.0
  %368 = vmatprep.subr.mxu0 0.0
  %369 = vmatpush1.msra.mxu0 0.0
  %370 = vmatprep.subr.mxu0 0.0
  %371 = vmatpush1.msra.mxu0 0.0
  %372 = vmatprep.subr.mxu0 0.0
  %373 = vmatpush1.msra.mxu0 0.0
  %374 = vmatprep.subr.mxu0 0.0
  %375 = vmatpush1.msra.mxu0 0.0
  %376 = vmatprep.mubr.f32.mxu0 %v305
  %377 = vmatmul.mubr.f32.gmra.mrb[0].mxu0 %v50
  %v378 = vpop.f32.mrb[0].mxu0
  %v379 = vadd.f32 0.0, %v378
  %v380 = vpop.f32.mrb[0].mxu0
  %381 = vmatprep.mubr.f32.mxu0 %v308
  %382 = vmatmul.mubr.f32.gmra.mrb[0].mxu0 %v52
  %v383 = vpop.f32.mrb[0].mxu0
  %v384 = vadd.f32 0.0, %v383
  %v385 = vpop.f32.mrb[0].mxu0
  %386 = vdwg.mxu0
  %v387 = vrot.slane %v44, 6
  %v388 = vsel %vm86, %v387, %v87
  %v390 = vrot.slane %v44, 2
  %v391 = vrot.slane %v47, 2
  %392 = vrot.lane.b32.xlu0 %v390, 127
  %v393 = vpop.permute.xlu0 %392
  %394 = vrot.lane.b32.xlu0 %v391, 127
  %v395 = vpop.permute.xlu0 %394
  %v396 = vsel %vm62, %v393, %v395
  %v398 = vsel %vm94, %v390, %v95
  %v399 = vsel %vm94, %v391, %v98
  %400 = vrot.lane.b32.xlu0 %v398, 127
  %v401 = vpop.permute.xlu0 %400
  %402 = vrot.lane.b32.xlu0 %v399, 127
  %v403 = vpop.permute.xlu0 %402
  %404 = vrot.lane.b32.xlu0 %v95, 127
  %v405 = vpop.permute.xlu0 %404
  %406 = vrot.lane.b32.xlu0 %v98, 127
  %v407 = vpop.permute.xlu0 %406
  %v408 = vsel %vm62, %v401, %v403
  %v409 = vsel %vm62, %v405, %v407
  %v412 = vrot.slane %v47, 6
  %413 = vrot.lane.b32.xlu0 %v387, 126
  %v414 = vpop.permute.xlu0 %413
  %415 = vrot.lane.b32.xlu0 %v412, 126
  %v416 = vpop.permute.xlu0 %415
  %v417 = vsel %vm82, %v414, %v416
  %v419 = vsel %vm86, %v412, %v113
  %420 = vrot.lane.b32.xlu0 %v388, 126
  %v421 = vpop.permute.xlu0 %420
  %422 = vrot.lane.b32.xlu0 %v419, 126
  %v423 = vpop.permute.xlu0 %422
  %v424 = vsel %vm82, %v421, %v423
  %v426 = vrot.slane %v46, 4
  %428 = vrot.lane.b32.xlu0 %v45, 127
  %v429 = vpop.permute.xlu0 %428
  %430 = vrot.lane.b32.xlu0 %v48, 127
  %v431 = vpop.permute.xlu0 %430
  %432 = vrot.lane.b32.xlu0 %v46, 127
  %v433 = vpop.permute.xlu0 %432
  %434 = vrot.lane.b32.xlu0 %v49, 127
  %v435 = vpop.permute.xlu0 %434
  %v436 = vsel %vm62, %v429, %v431
  %v437 = vsel %vm62, %v433, %v435
  %v440 = vsel %vm67, %v68, %v426
  %v441 = vrot.slane %v49, 4
  %v442 = vsel %vm67, %v70, %v441
  %443 = vrot.lane.b32.xlu0 %v440, 126
  %v444 = vpop.permute.xlu0 %443
  %445 = vrot.lane.b32.xlu0 %v442, 126
  %v446 = vpop.permute.xlu0 %445
  %v447 = vsel %vm82, %v444, %v446
  %449 = vrot.lane.b32.xlu0 %v426, 126
  %v450 = vpop.permute.xlu0 %449
  %451 = vrot.lane.b32.xlu0 %v441, 126
  %v452 = vpop.permute.xlu0 %451
  %v453 = vsel %vm82, %v450, %v452
  %455 = vrot.lane.b32.xlu0 %v398, 121
  %v456 = vpop.permute.xlu0 %455
  %457 = vrot.lane.b32.xlu0 %v399, 121
  %v458 = vpop.permute.xlu0 %457
  %459 = vrot.lane.b32.xlu0 %v95, 121
  %v460 = vpop.permute.xlu0 %459
  %461 = vrot.lane.b32.xlu0 %v98, 121
  %v462 = vpop.permute.xlu0 %461
  %v463 = vsel %vm132, %v456, %v458
  %v464 = vsel %vm132, %v460, %v462
  %467 = vrot.lane.b32.xlu0 %v387, 120
  %v468 = vpop.permute.xlu0 %467
  %469 = vrot.lane.b32.xlu0 %v412, 120
  %v470 = vpop.permute.xlu0 %469
  %v471 = vsel %vm145, %v468, %v470
  %473 = vrot.lane.b32.xlu0 %v388, 120
  %v474 = vpop.permute.xlu0 %473
  %475 = vrot.lane.b32.xlu0 %v419, 120
  %v476 = vpop.permute.xlu0 %475
  %v477 = vsel %vm145, %v474, %v476
  %479 = vrot.lane.b32.xlu0 %v390, 119
  %v480 = vpop.permute.xlu0 %479
  %481 = vrot.lane.b32.xlu0 %v391, 119
  %v482 = vpop.permute.xlu0 %481
  %v483 = vsel %vm158, %v480, %v482
  %485 = vrot.lane.b32.xlu0 %v398, 119
  %v486 = vpop.permute.xlu0 %485
  %487 = vrot.lane.b32.xlu0 %v399, 119
  %v488 = vpop.permute.xlu0 %487
  %489 = vrot.lane.b32.xlu0 %v95, 119
  %v490 = vpop.permute.xlu0 %489
  %491 = vrot.lane.b32.xlu0 %v98, 119
  %v492 = vpop.permute.xlu0 %491
  %v493 = vsel %vm158, %v486, %v488
  %v494 = vsel %vm158, %v490, %v492
  %497 = vrot.lane.b32.xlu0 %v46, 121
  %v498 = vpop.permute.xlu0 %497
  %499 = vrot.lane.b32.xlu0 %v49, 121
  %v500 = vpop.permute.xlu0 %499
  %v501 = vsel %vm132, %v498, %v500
  %v503 = vsel %vm94, %v388, %v396
  %v504 = vsel %vm67, %v396, %v408
  %v505 = vsel %vm86, %v409, %v417
  %v506 = vsel %vm94, %v424, %v426
  %v507 = vsel %vm67, %v426, %v436
  %v508 = vsel %vm94, %v447, %v453
  %v509 = vsel %vm67, %v453, %v463
  %v510 = vsel %vm86, %v464, %v471
  %v511 = vsel %vm94, %v477, %v483
  %v512 = vsel %vm67, %v483, %v493
  %v513 = vsel %vm86, %v494, %v501
  %519 = vrot.lane.b32.xlu0 %v388, 122
  %v520 = vpop.permute.xlu0 %519
  %521 = vrot.lane.b32.xlu0 %v419, 122
  %v522 = vpop.permute.xlu0 %521
  %vm523 = vcmask 998400
  %v524 = vsel %vm523, %v520, %v522
  %527 = vrot.lane.b32.xlu0 %v390, 121
  %v528 = vpop.permute.xlu0 %527
  %529 = vrot.lane.b32.xlu0 %v391, 121
  %v530 = vpop.permute.xlu0 %529
  %v531 = vsel %vm132, %v528, %v530
  %v537 = vsel %vm94, %v440, %v426
  %v538 = vsel %vm94, %v442, %v441
  %v539 = vsel %vm67, %v441, %v431
  %v540 = vsel %vm94, %v524, %v531
  %v541 = vsel %vm94, %v522, %v530
  %v542 = vsel %vm67, %v531, %v463
  %v543 = vsel %vm67, %v530, %v458
  %v544 = vsel %vm86, %v462, %v470
  %557 = vrot.lane.b32.xlu0 %v537, 120
  %v558 = vpop.permute.xlu0 %557
  %559 = vrot.lane.b32.xlu0 %v538, 120
  %v560 = vpop.permute.xlu0 %559
  %561 = vrot.lane.b32.xlu0 %v507, 120
  %v562 = vpop.permute.xlu0 %561
  %563 = vrot.lane.b32.xlu0 %v539, 120
  %v564 = vpop.permute.xlu0 %563
  %565 = vrot.lane.b32.xlu0 %v437, 120
  %v566 = vpop.permute.xlu0 %565
  %567 = vrot.lane.b32.xlu0 %v435, 120
  %v568 = vpop.permute.xlu0 %567
  %569 = vrot.lane.b32.xlu0 %v540, 120
  %v570 = vpop.permute.xlu0 %569
  %571 = vrot.lane.b32.xlu0 %v541, 120
  %v572 = vpop.permute.xlu0 %571
  %573 = vrot.lane.b32.xlu0 %v542, 120
  %v574 = vpop.permute.xlu0 %573
  %575 = vrot.lane.b32.xlu0 %v543, 120
  %v576 = vpop.permute.xlu0 %575
  %577 = vrot.lane.b32.xlu0 %v510, 120
  %v578 = vpop.permute.xlu0 %577
  %579 = vrot.lane.b32.xlu0 %v544, 120
  %v580 = vpop.permute.xlu0 %579
  %581 = vrot.lane.b32.xlu0 %v477, 120
  %v582 = vpop.permute.xlu0 %581
  %583 = vrot.lane.b32.xlu0 %v476, 120
  %v584 = vpop.permute.xlu0 %583
  %v585 = vsel %vm145, %v558, %v560
  %v586 = vsel %vm145, %v562, %v564
  %v587 = vsel %vm145, %v566, %v568
  %v588 = vsel %vm145, %v570, %v572
  %v589 = vsel %vm145, %v574, %v576
  %v590 = vsel %vm145, %v578, %v580
  %v591 = vsel %vm145, %v582, %v584
  %v598 = vsel %vm94, %v591, 0
  %600 = vmatprep.subr.mxu0 0.0
  %601 = vmatpush1.msra.mxu0 %v503
  %602 = vmatprep.subr.mxu0 0.0
  %603 = vmatpush1.msra.mxu0 %v504
  %604 = vmatprep.subr.mxu0 0.0
  %605 = vmatpush1.msra.mxu0 %v505
  %606 = vmatprep.subr.mxu0 0.0
  %607 = vmatpush1.msra.mxu0 %v506
  %608 = vmatprep.subr.mxu0 0.0
  %609 = vmatpush1.msra.mxu0 %v507
  %610 = vmatprep.subr.mxu0 0.0
  %611 = vmatpush1.msra.mxu0 %v437
  %612 = vmatprep.subr.mxu0 0.0
  %613 = vmatpush1.msra.mxu0 %v508
  %614 = vmatprep.subr.mxu0 0.0
  %615 = vmatpush1.msra.mxu0 %v509
  %616 = vmatprep.subr.mxu0 0.0
  %617 = vmatpush1.msra.mxu0 %v510
  %618 = vmatprep.subr.mxu0 0.0
  %619 = vmatpush1.msra.mxu0 %v511
  %620 = vmatprep.subr.mxu0 0.0
  %621 = vmatpush1.msra.mxu0 %v512
  %622 = vmatprep.subr.mxu0 0.0
  %623 = vmatpush1.msra.mxu0 %v513
  %624 = vmatprep.subr.mxu0 0.0
  %625 = vmatpush1.msra.mxu0 %v585
  %626 = vmatprep.subr.mxu0 0.0
  %627 = vmatpush1.msra.mxu0 %v586
  %628 = vmatprep.subr.mxu0 0.0
  %629 = vmatpush1.msra.mxu0 %v587
  %630 = vmatprep.subr.mxu0 0.0
  %631 = vmatpush1.msra.mxu0 %v588
  %632 = vmatprep.subr.mxu0 0.0
  %633 = vmatpush1.msra.mxu0 %v589
  %634 = vmatprep.subr.mxu0 0.0
  %635 = vmatpush1.msra.mxu0 %v590
  %636 = vmatprep.subr.mxu0 0.0
  %637 = vmatpush1.msra.mxu0 %v598
  %638 = vmatprep.subr.mxu0 0.0
  %639 = vmatpush1.msra.mxu0 0.0
  %640 = vmatprep.subr.mxu0 0.0
  %641 = vmatpush1.msra.mxu0 0.0
  %642 = vmatprep.subr.mxu0 0.0
  %643 = vmatpush1.msra.mxu0 0.0
  %644 = vmatprep.subr.mxu0 0.0
  %645 = vmatpush1.msra.mxu0 0.0
  %646 = vmatprep.subr.mxu0 0.0
  %647 = vmatpush1.msra.mxu0 0.0
  %648 = vmatprep.subr.mxu0 0.0
  %649 = vmatpush1.msra.mxu0 0.0
  %650 = vmatprep.subr.mxu0 0.0
  %651 = vmatpush1.msra.mxu0 0.0
  %652 = vmatprep.subr.mxu0 0.0
  %653 = vmatpush1.msra.mxu0 0.0
  %654 = vmatprep.subr.mxu0 0.0
  %655 = vmatpush1.msra.mxu0 0.0
  %656 = vmatprep.subr.mxu0 0.0
  %657 = vmatpush1.msra.mxu0 0.0
  %658 = vmatprep.subr.mxu0 0.0
  %659 = vmatpush1.msra.mxu0 0.0
  %660 = vmatprep.subr.mxu0 0.0
  %661 = vmatpush1.msra.mxu0 0.0
  %662 = vmatprep.subr.mxu0 0.0
  %663 = vmatpush1.msra.mxu0 0.0
  %664 = vmatprep.mubr.f32.mxu0 %v305
  %665 = vmatmul.mubr.f32.gmra.mrb[0].mxu0 %v50
  %v666 = vpop.f32.mrb[0].mxu0
  %v667 = vadd.f32 0.0, %v666
  %v668 = vpop.f32.mrb[0].mxu0
  %669 = vmatprep.mubr.f32.mxu0 %v308
  %670 = vmatmul.mubr.f32.gmra.mrb[0].mxu0 %v52
  %v671 = vpop.f32.mrb[0].mxu0
  %v672 = vadd.f32 0.0, %v671
  %v673 = vpop.f32.mrb[0].mxu0
  %674 = vdwg.mxu0
  %v675 = vmax.f32 %v379, %v667
  %v676 = vmax.f32 %v384, %v672
  %677 = vrot.lane.b32.xlu0 %v440, 120
  %v678 = vpop.permute.xlu0 %677
  %679 = vrot.lane.b32.xlu0 %v442, 120
  %v680 = vpop.permute.xlu0 %679
  %v681 = vsel %vm145, %v678, %v680
  %683 = vrot.lane.b32.xlu0 %v426, 120
  %v684 = vpop.permute.xlu0 %683
  %685 = vrot.lane.b32.xlu0 %v441, 120
  %v686 = vpop.permute.xlu0 %685
  %v687 = vsel %vm145, %v684, %v686
  %689 = vrot.lane.b32.xlu0 %v45, 119
  %v690 = vpop.permute.xlu0 %689
  %691 = vrot.lane.b32.xlu0 %v48, 119
  %v692 = vpop.permute.xlu0 %691
  %693 = vrot.lane.b32.xlu0 %v46, 119
  %v694 = vpop.permute.xlu0 %693
  %695 = vrot.lane.b32.xlu0 %v49, 119
  %v696 = vpop.permute.xlu0 %695
  %v697 = vsel %vm158, %v690, %v692
  %v698 = vsel %vm158, %v694, %v696
  %701 = vrot.lane.b32.xlu0 %v387, 114
  %v702 = vpop.permute.xlu0 %701
  %703 = vrot.lane.b32.xlu0 %v412, 114
  %v704 = vpop.permute.xlu0 %703
  %vm705 = vcmask 932864
  %v706 = vsel %vm705, %v702, %v704
  %v708 = vsel %vm94, %v447, %v531
  %v709 = vsel %vm67, %v483, %v218
  %v710 = vsel %vm94, %v681, %v687
  %v711 = vsel %vm67, %v687, %v697
  %v712 = vsel %vm86, %v698, %v706
  %v718 = vsel %vm94, %v419, %v395
  %v719 = vsel %vm67, %v395, %v403
  %v720 = vsel %vm86, %v407, %v416
  %727 = vrot.lane.b32.xlu0 %v503, 114
  %v728 = vpop.permute.xlu0 %727
  %729 = vrot.lane.b32.xlu0 %v718, 114
  %v730 = vpop.permute.xlu0 %729
  %731 = vrot.lane.b32.xlu0 %v504, 114
  %v732 = vpop.permute.xlu0 %731
  %733 = vrot.lane.b32.xlu0 %v719, 114
  %v734 = vpop.permute.xlu0 %733
  %735 = vrot.lane.b32.xlu0 %v505, 114
  %v736 = vpop.permute.xlu0 %735
  %737 = vrot.lane.b32.xlu0 %v720, 114
  %v738 = vpop.permute.xlu0 %737
  %739 = vrot.lane.b32.xlu0 %v537, 114
  %v740 = vpop.permute.xlu0 %739
  %741 = vrot.lane.b32.xlu0 %v538, 114
  %v742 = vpop.permute.xlu0 %741
  %743 = vrot.lane.b32.xlu0 %v507, 114
  %v744 = vpop.permute.xlu0 %743
  %745 = vrot.lane.b32.xlu0 %v539, 114
  %v746 = vpop.permute.xlu0 %745
  %747 = vrot.lane.b32.xlu0 %v437, 114
  %v748 = vpop.permute.xlu0 %747
  %749 = vrot.lane.b32.xlu0 %v435, 114
  %v750 = vpop.permute.xlu0 %749
  %751 = vrot.lane.b32.xlu0 %v447, 114
  %v752 = vpop.permute.xlu0 %751
  %753 = vrot.lane.b32.xlu0 %v446, 114
  %v754 = vpop.permute.xlu0 %753
  %v755 = vsel %vm705, %v728, %v730
  %v756 = vsel %vm705, %v732, %v734
  %v757 = vsel %vm705, %v736, %v738
  %v758 = vsel %vm705, %v740, %v742
  %v759 = vsel %vm705, %v744, %v746
  %v760 = vsel %vm705, %v748, %v750
  %v761 = vsel %vm705, %v752, %v754
  %v768 = vsel %vm94, %v761, 0
  %770 = vmatprep.subr.mxu0 0.0
  %771 = vmatpush1.msra.mxu0 %v537
  %772 = vmatprep.subr.mxu0 0.0
  %773 = vmatpush1.msra.mxu0 %v507
  %774 = vmatprep.subr.mxu0 0.0
  %775 = vmatpush1.msra.mxu0 %v437
  %776 = vmatprep.subr.mxu0 0.0
  %777 = vmatpush1.msra.mxu0 %v708
  %778 = vmatprep.subr.mxu0 0.0
  %779 = vmatpush1.msra.mxu0 %v542
  %780 = vmatprep.subr.mxu0 0.0
  %781 = vmatpush1.msra.mxu0 %v510
  %782 = vmatprep.subr.mxu0 0.0
  %783 = vmatpush1.msra.mxu0 %v511
  %784 = vmatprep.subr.mxu0 0.0
  %785 = vmatpush1.msra.mxu0 %v709
  %786 = vmatprep.subr.mxu0 0.0
  %787 = vmatpush1.msra.mxu0 %v501
  %788 = vmatprep.subr.mxu0 0.0
  %789 = vmatpush1.msra.mxu0 %v710
  %790 = vmatprep.subr.mxu0 0.0
  %791 = vmatpush1.msra.mxu0 %v711
  %792 = vmatprep.subr.mxu0 0.0
  %793 = vmatpush1.msra.mxu0 %v712
  %794 = vmatprep.subr.mxu0 0.0
  %795 = vmatpush1.msra.mxu0 %v755
  %796 = vmatprep.subr.mxu0 0.0
  %797 = vmatpush1.msra.mxu0 %v756
  %798 = vmatprep.subr.mxu0 0.0
  %799 = vmatpush1.msra.mxu0 %v757
  %800 = vmatprep.subr.mxu0 0.0
  %801 = vmatpush1.msra.mxu0 %v758
  %802 = vmatprep.subr.mxu0 0.0
  %803 = vmatpush1.msra.mxu0 %v759
  %804 = vmatprep.subr.mxu0 0.0
  %805 = vmatpush1.msra.mxu0 %v760
  %806 = vmatprep.subr.mxu0 0.0
  %807 = vmatpush1.msra.mxu0 %v768
  %808 = vmatprep.subr.mxu0 0.0
  %809 = vmatpush1.msra.mxu0 0.0
  %810 = vmatprep.subr.mxu0 0.0
  %811 = vmatpush1.msra.mxu0 0.0
  %812 = vmatprep.subr.mxu0 0.0
  %813 = vmatpush1.msra.mxu0 0.0
  %814 = vmatprep.subr.mxu0 0.0
  %815 = vmatpush1.msra.mxu0 0.0
  %816 = vmatprep.subr.mxu0 0.0
  %817 = vmatpush1.msra.mxu0 0.0
  %818 = vmatprep.subr.mxu0 0.0
  %819 = vmatpush1.msra.mxu0 0.0
  %820 = vmatprep.subr.mxu0 0.0
  %821 = vmatpush1.msra.mxu0 0.0
  %822 = vmatprep.subr.mxu0 0.0
  %823 = vmatpush1.msra.mxu0 0.0
  %824 = vmatprep.subr.mxu0 0.0
  %825 = vmatpush1.msra.mxu0 0.0
  %826 = vmatprep.subr.mxu0 0.0
  %827 = vmatpush1.msra.mxu0 0.0
  %828 = vmatprep.subr.mxu0 0.0
  %829 = vmatpush1.msra.mxu0 0.0
  %830 = vmatprep.subr.mxu0 0.0
  %831 = vmatpush1.msra.mxu0 0.0
  %832 = vmatprep.subr.mxu0 0.0
  %833 = vmatpush1.msra.mxu0 0.0
  %834 = vmatprep.mubr.f32.mxu0 %v305
  %835 = vmatmul.mubr.f32.gmra.mrb[0].mxu0 %v50
  %v836 = vpop.f32.mrb[0].mxu0
  %v837 = vadd.f32 0.0, %v836
  %v838 = vpop.f32.mrb[0].mxu0
  %839 = vmatprep.mubr.f32.mxu0 %v308
  %840 = vmatmul.mubr.f32.gmra.mrb[0].mxu0 %v52
  %v841 = vpop.f32.mrb[0].mxu0
  %v842 = vadd.f32 0.0, %v841
  %v843 = vpop.f32.mrb[0].mxu0
  %844 = vdwg.mxu0
  %v845 = vmax.f32 %v675, %v837
  %v846 = vmax.f32 %v676, %v842
  %847 = vrot.lane.b32.xlu0 %v96, 126
  %v848 = vpop.permute.xlu0 %847
  %849 = vrot.lane.b32.xlu0 %v99, 126
  %v850 = vpop.permute.xlu0 %849
  %v851 = vsel %vm82, %v848, %v850
  %854 = vrot.lane.b32.xlu0 %v88, 121
  %v855 = vpop.permute.xlu0 %854
  %856 = vrot.lane.b32.xlu0 %v114, 121
  %v857 = vpop.permute.xlu0 %856
  %v858 = vsel %vm132, %v855, %v857
  %860 = vrot.lane.b32.xlu0 %v97, 120
  %v861 = vpop.permute.xlu0 %860
  %862 = vrot.lane.b32.xlu0 %v100, 120
  %v863 = vpop.permute.xlu0 %862
  %v864 = vsel %vm145, %v861, %v863
  %866 = vrot.lane.b32.xlu0 %v96, 120
  %v867 = vpop.permute.xlu0 %866
  %868 = vrot.lane.b32.xlu0 %v99, 120
  %v869 = vpop.permute.xlu0 %868
  %v870 = vsel %vm145, %v867, %v869
  %872 = vrot.lane.b32.xlu0 %v87, 119
  %v873 = vpop.permute.xlu0 %872
  %874 = vrot.lane.b32.xlu0 %v113, 119
  %v875 = vpop.permute.xlu0 %874
  %876 = vrot.lane.b32.xlu0 %v89, 119
  %v877 = vpop.permute.xlu0 %876
  %878 = vrot.lane.b32.xlu0 %v115, 119
  %v879 = vpop.permute.xlu0 %878
  %v880 = vsel %vm158, %v873, %v875
  %v881 = vsel %vm158, %v877, %v879
  %884 = vrot.lane.b32.xlu0 %v88, 119
  %v885 = vpop.permute.xlu0 %884
  %886 = vrot.lane.b32.xlu0 %v114, 119
  %v887 = vpop.permute.xlu0 %886
  %v888 = vsel %vm158, %v885, %v887
  %890 = vrot.lane.b32.xlu0 %v69, 114
  %v891 = vpop.permute.xlu0 %890
  %892 = vrot.lane.b32.xlu0 %v71, 114
  %v893 = vpop.permute.xlu0 %892
  %v894 = vsel %vm705, %v891, %v893
  %v896 = vsel %vm94, %v851, %v211
  %v897 = vsel %vm67, %v697, %v858
  %v898 = vsel %vm86, %v858, %v864
  %v899 = vsel %vm94, %v870, %v880
  %v900 = vsel %vm67, %v881, %v888
  %v901 = vsel %vm86, %v888, %v894
  %904 = vrot.lane.b32.xlu0 %v96, 1
  %v905 = vpop.permute.xlu0 %904
  %906 = vrot.lane.b32.xlu0 %v99, 1
  %v907 = vpop.permute.xlu0 %906
  %vm908 = vcmask 7168
  %v909 = vsel %vm908, %v905, %v907
  %v916 = vsel %vm67, %v48, %v61
  %v917 = vsel %vm86, %v61, %v75
  %v918 = vsel %vm94, %v905, %v87
  %v919 = vsel %vm94, %v909, %v113
  %v920 = vsel %vm67, %v115, %v114
  %v921 = vsel %vm86, %v114, %v104
  %932 = vrot.lane.b32.xlu0 %v44, 113
  %v933 = vpop.permute.xlu0 %932
  %934 = vrot.lane.b32.xlu0 %v47, 113
  %v935 = vpop.permute.xlu0 %934
  %936 = vrot.lane.b32.xlu0 %v167, 113
  %v937 = vpop.permute.xlu0 %936
  %938 = vrot.lane.b32.xlu0 %v916, 113
  %v939 = vpop.permute.xlu0 %938
  %940 = vrot.lane.b32.xlu0 %v168, 113
  %v941 = vpop.permute.xlu0 %940
  %942 = vrot.lane.b32.xlu0 %v917, 113
  %v943 = vpop.permute.xlu0 %942
  %944 = vrot.lane.b32.xlu0 %v918, 113
  %v945 = vpop.permute.xlu0 %944
  %946 = vrot.lane.b32.xlu0 %v919, 113
  %v947 = vpop.permute.xlu0 %946
  %948 = vrot.lane.b32.xlu0 %v170, 113
  %v949 = vpop.permute.xlu0 %948
  %950 = vrot.lane.b32.xlu0 %v920, 113
  %v951 = vpop.permute.xlu0 %950
  %952 = vrot.lane.b32.xlu0 %v171, 113
  %v953 = vpop.permute.xlu0 %952
  %954 = vrot.lane.b32.xlu0 %v921, 113
  %v955 = vpop.permute.xlu0 %954
  %956 = vrot.lane.b32.xlu0 %v111, 113
  %v957 = vpop.permute.xlu0 %956
  %958 = vrot.lane.b32.xlu0 %v110, 113
  %v959 = vpop.permute.xlu0 %958
  %vm960 = vcmask 924672
  %v961 = vsel %vm960, %v933, %v935
  %v962 = vsel %vm960, %v937, %v939
  %v963 = vsel %vm960, %v941, %v943
  %v964 = vsel %vm960, %v945, %v947
  %v965 = vsel %vm960, %v949, %v951
  %v966 = vsel %vm960, %v953, %v955
  %v967 = vsel %vm960, %v957, %v959
  %v974 = vsel %vm94, %v967, 0
  %976 = vmatprep.subr.mxu0 0.0
  %977 = vmatpush1.msra.mxu0 %v240
  %978 = vmatprep.subr.mxu0 0.0
  %979 = vmatpush1.msra.mxu0 %v242
  %980 = vmatprep.subr.mxu0 0.0
  %981 = vmatpush1.msra.mxu0 %v244
  %982 = vmatprep.subr.mxu0 0.0
  %983 = vmatpush1.msra.mxu0 %v896
  %984 = vmatprep.subr.mxu0 0.0
  %985 = vmatpush1.msra.mxu0 %v246
  %986 = vmatprep.subr.mxu0 0.0
  %987 = vmatpush1.msra.mxu0 %v248
  %988 = vmatprep.subr.mxu0 0.0
  %989 = vmatpush1.msra.mxu0 %v239
  %990 = vmatprep.subr.mxu0 0.0
  %991 = vmatpush1.msra.mxu0 %v897
  %992 = vmatprep.subr.mxu0 0.0
  %993 = vmatpush1.msra.mxu0 %v898
  %994 = vmatprep.subr.mxu0 0.0
  %995 = vmatpush1.msra.mxu0 %v899
  %996 = vmatprep.subr.mxu0 0.0
  %997 = vmatpush1.msra.mxu0 %v900
  %998 = vmatprep.subr.mxu0 0.0
  %999 = vmatpush1.msra.mxu0 %v901
  %1000 = vmatprep.subr.mxu0 0.0
  %1001 = vmatpush1.msra.mxu0 %v961
  %1002 = vmatprep.subr.mxu0 0.0
  %1003 = vmatpush1.msra.mxu0 %v962
  %1004 = vmatprep.subr.mxu0 0.0
  %1005 = vmatpush1.msra.mxu0 %v963
  %1006 = vmatprep.subr.mxu0 0.0
  %1007 = vmatpush1.msra.mxu0 %v964
  %1008 = vmatprep.subr.mxu0 0.0
  %1009 = vmatpush1.msra.mxu0 %v965
  %1010 = vmatprep.subr.mxu0 0.0
  %1011 = vmatpush1.msra.mxu0 %v966
  %1012 = vmatprep.subr.mxu0 0.0
  %1013 = vmatpush1.msra.mxu0 %v974
  %1014 = vmatprep.subr.mxu0 0.0
  %1015 = vmatpush1.msra.mxu0 0.0
  %1016 = vmatprep.subr.mxu0 0.0
  %1017 = vmatpush1.msra.mxu0 0.0
  %1018 = vmatprep.subr.mxu0 0.0
  %1019 = vmatpush1.msra.mxu0 0.0
  %1020 = vmatprep.subr.mxu0 0.0
  %1021 = vmatpush1.msra.mxu0 0.0
  %1022 = vmatprep.subr.mxu0 0.0
  %1023 = vmatpush1.msra.mxu0 0.0
  %1024 = vmatprep.subr.mxu0 0.0
  %1025 = vmatpush1.msra.mxu0 0.0
  %1026 = vmatprep.subr.mxu0 0.0
  %1027 = vmatpush1.msra.mxu0 0.0
  %1028 = vmatprep.subr.mxu0 0.0
  %1029 = vmatpush1.msra.mxu0 0.0
  %1030 = vmatprep.subr.mxu0 0.0
  %1031 = vmatpush1.msra.mxu0 0.0
  %1032 = vmatprep.subr.mxu0 0.0
  %1033 = vmatpush1.msra.mxu0 0.0
  %1034 = vmatprep.subr.mxu0 0.0
  %1035 = vmatpush1.msra.mxu0 0.0
  %1036 = vmatprep.subr.mxu0 0.0
  %1037 = vmatpush1.msra.mxu0 0.0
  %1038 = vmatprep.subr.mxu0 0.0
  %1039 = vmatpush1.msra.mxu0 0.0
  %1040 = vmatprep.mubr.f32.mxu0 %v305
  %1041 = vmatmul.mubr.f32.gmra.mrb[0].mxu0 %v50
  %v1042 = vpop.f32.mrb[0].mxu0
  %v1043 = vadd.f32 0.0, %v1042
  %v1044 = vpop.f32.mrb[0].mxu0
  %1045 = vmatprep.mubr.f32.mxu0 %v308
  %1046 = vmatmul.mubr.f32.gmra.mrb[0].mxu0 %v52
  %v1047 = vpop.f32.mrb[0].mxu0
  %v1048 = vadd.f32 0.0, %v1047
  %v1049 = vpop.f32.mrb[0].mxu0
  %1050 = vdwg.mxu0
  %v1051 = vmax.f32 %v845, %v1043
  %v1052 = vmax.f32 %v846, %v1048
  %v1053 = vld [vmem:[%s1] sm:$0xff]
  %v1054 = vld [vmem:[%s1 + $0x8] sm:$0xff]
  %1056 = vset.pattern.permute.xlu0 0
  %1057 = vperm.xlu0 %1056, %v1053
  %v1058 = vpop.permute.xlu0 %1057
  %1061 = vset.pattern.permute.xlu0 0
  %1062 = vperm.xlu0 %1061, %v1054
  %v1063 = vpop.permute.xlu0 %1062
  %v1065 = vadd.f32 %v1051, %v1058
  %v1066 = vadd.f32 %v1052, %v1063
  %v1067 = vmax.f32 %v1065, 0.0
  %v1068 = vmax.f32 %v1066, 0.0
  %v1069 = vpack.c.bf16 %v1068, %v1067
  %v1071 = vunpack.c.l.b16 %v1069
  %v1072 = vunpack.c.h.b16 %v1069
  %v1073 = vpack.c.b16 %v1071, %v1071
  %v1074 = vpack.c.b16 %v1072, %v1072
  %1077 = vst [vmem:[%s4] sm:$0xf] %v1073
  %1078 = vst [vmem:[%s4 + $0x4] sm:$0xf] %v1074
  // Predicated region
  $region18: #{net_digit5_forward.4} parent=0 // pred_check
    _
  $region19: #{net_digit5_forward.4} parent=0 // pred_check_branch
    %1080 = sbr.rel (0) target = $region21
  $region20: #{net_digit5_forward.4} parent=0 // pred_region
    _
  $region21: #{net_digit5_forward.4} parent=0 // pred_fallthru
    _
  // Predicated region
  $region22: #{net_digit5_forward.4} parent=0 // pred_check
    _
  $region23: #{net_digit5_forward.4} parent=0 // pred_check_branch
    %1082 = sbr.rel (0) target = $region25
  $region24: #{net_digit5_forward.4} parent=0 // pred_region
    _
  $region25: #{net_digit5_forward.4} parent=0 // pred_fallthru
    _

// kernel: net_digit5_forward.3
$region0: #{net_digit5_forward.3}
  #allocation0 [shape = 'u32[]', space=smem, size = 0x4, offset = 0x4, fixed_abs, tag = 'smem constant byte address 0x4 - core index']
  #allocation1 [shape = 'u32[144,128]{1,0:T(1,128)}', space=vmem, size = 0x12000, scoped, tag = 'internal scratch']
  %s0 = inlined_call_operand.vmem [shape: f32[8,75], index: 0, kind: input, shape index: {}]
  %s1 = inlined_call_operand.vmem [shape: f32[8,1], index: 1, kind: input, shape index: {}]
  %s2 = inlined_call_operand.vmem [shape: f32[12,512], index: 2, kind: input, shape index: {}, may-alias: {2,3}]
  %s3 = inlined_call_operand.vmem [shape: f32[12,512], index: 3, kind: input, shape index: {}, may-alias: {2,3}]
  %s4 = inlined_call_operand.vmem [shape: bf16[8,512], index: 4, kind: output, shape index: {}]
  %s5 = sld [smem:[#allocation0]]
  $region110: #{net_digit5_forward.3} parent=0
    _
  %s7 = ssub.s32 1, %s5
  %s8 = scalar_select 0, %s7, %s5
  $region1: #{net_digit5_forward.3} parent=0
    #allocation2 [shape = 'u8[32768]{0}', space=vmem, size = 0x8000, scoped, tag = 'input window, operand 2']
    #allocation3 [shape = 'u8[16384]{0}', space=vmem, size = 0x4000, scoped, tag = 'input window, operand 3']
    loop: start=0, step=1, limit=4
    $region2: #{net_digit5_forward.3} parent=1 // loop_pre_header
      _
    $region3: #{net_digit5_forward.3} parent=1 // loop_header
      %s10 = sphi 0, %s14
      %p11 = scmp.ge.s32.totalorder %s10, 4
      %s18 = sphi 0, %s18
      %s20 = sphi 0, %s18
      %s21 = sphi 0, %s20
      %s35 = sphi 0, %s21
      %s39 = sphi 0, %s39
      %s41 = sphi 0, %s39
      %s42 = sphi 0, %s41
      %s56 = sphi 0, %s42
      %s62 = sphi 0, %s64
      %s65 = sphi 0, %s62
      %s66 = sphi 0, %s65
      %s82 = sphi 0, %s66
      %s96 = sphi 0, %s98
      %s99 = sphi 0, %s96
      %s100 = sphi 0, %s99
      %s116 = sphi 0, %s100
      %s122 = sphi 0, %s124
      %s125 = sphi 0, %s122
      %s126 = sphi 0, %s125
      %s142 = sphi 0, %s126
    $region4: #{net_digit5_forward.3} parent=1 // loop_header_branch
      %13 = sbr.rel (%p11) target = $region8
    $region5: #{net_digit5_forward.3} parent=1 // loop_body
      %s15 = ssub.s32 %s10, 1
      %s16 = ssub.s32 %s10, 2
      %s17 = sadd.s32 %s10, 1
      %s19 = sadd.s32 %s18, 1
      %p22 = scmp.eq.s32.totalorder %s10, 1
      %p23 = scmp.ne.s32.totalorder %s18, %s20
      %p24 = scmp.eq.s32.totalorder %s10, 0
      %p25 = por %p23, %p24
      %p26 = scmp.ne.s32.totalorder %s18, %s20
      %p27 = scmp.eq.s32.totalorder %s15, 1
      %p28 = por %p26, %p27
      %p29 = scmp.ne.s32.totalorder %s20, %s21
      %p30 = scmp.eq.s32.totalorder %s15, 0
      %p31 = por %p29, %p30
      %p32 = scmp.ne.s32.totalorder %s20, %s21
      %p33 = scmp.eq.s32.totalorder %s16, 1
      %p34 = por %p32, %p33
      %p36 = scmp.ne.s32.totalorder %s21, %s35
      %p37 = scmp.eq.s32.totalorder %s16, 0
      %p38 = por %p36, %p37
      %s40 = sadd.s32 %s39, 1
      %p43 = scmp.eq.s32.totalorder %s10, 1
      %p44 = scmp.ne.s32.totalorder %s39, %s41
      %p45 = scmp.eq.s32.totalorder %s10, 0
      %p46 = por %p44, %p45
      %p47 = scmp.ne.s32.totalorder %s39, %s41
      %p48 = scmp.eq.s32.totalorder %s15, 1
      %p49 = por %p47, %p48
      %p50 = scmp.ne.s32.totalorder %s41, %s42
      %p51 = scmp.eq.s32.totalorder %s15, 0
      %p52 = por %p50, %p51
      %p53 = scmp.ne.s32.totalorder %s41, %s42
      %p54 = scmp.eq.s32.totalorder %s16, 1
      %p55 = por %p53, %p54
      %p57 = scmp.ne.s32.totalorder %s42, %s56
      %p58 = scmp.eq.s32.totalorder %s16, 0
      %p59 = por %p57, %p58
      %s60 = ssub.s32 %s10, %s17
      %p61 = scmp.eq.s32.totalorder %s60, 0
      %s63 = sadd.s32 %s62, 1
      %s64 = scalar_select %p61, %s62, %s63
      %p67 = pneg %p61
      %p68 = scmp.eq.s32.totalorder %s10, 1
      %p69 = por %p67, %p68
      %p70 = scmp.ne.s32.totalorder %s62, %s65
      %p71 = scmp.eq.s32.totalorder %s10, 0
      %p72 = por %p70, %p71
      %p73 = scmp.ne.s32.totalorder %s62, %s65
      %p74 = scmp.eq.s32.totalorder %s15, 1
      %p75 = por %p73, %p74
      %p76 = scmp.ne.s32.totalorder %s65, %s66
      %p77 = scmp.eq.s32.totalorder %s15, 0
      %p78 = por %p76, %p77
      %p79 = scmp.ne.s32.totalorder %s65, %s66
      %p80 = scmp.eq.s32.totalorder %s16, 1
      %p81 = por %p79, %p80
      %p83 = scmp.ne.s32.totalorder %s66, %s82
      %p84 = scmp.eq.s32.totalorder %s16, 0
      %p85 = por %p83, %p84
      %s86 = sadd.s32 %s10, 1
      %p87 = scmp.lt.s32.totalorder %s86, 1
      %s88 = scalar_select %p87, %s86, 1
      %s89 = smul.u32 %s88, 2
      %s90 = sadd.s32 %s17, 1
      %p91 = scmp.lt.s32.totalorder %s90, 1
      %s92 = scalar_select %p91, %s90, 1
      %s93 = smul.u32 %s92, 2
      %s94 = ssub.s32 %s89, %s93
      %p95 = scmp.eq.s32.totalorder %s94, 0
      %s97 = sadd.s32 %s96, 1
      %s98 = scalar_select %p95, %s96, %s97
      %p101 = pneg %p95
      %p102 = scmp.eq.s32.totalorder %s10, 1
      %p103 = por %p101, %p102
      %p104 = scmp.ne.s32.totalorder %s96, %s99
      %p105 = scmp.eq.s32.totalorder %s10, 0
      %p106 = por %p104, %p105
      %p107 = scmp.ne.s32.totalorder %s96, %s99
      %p108 = scmp.eq.s32.totalorder %s15, 1
      %p109 = por %p107, %p108
      %p110 = scmp.ne.s32.totalorder %s99, %s100
      %p111 = scmp.eq.s32.totalorder %s15, 0
      %p112 = por %p110, %p111
      %p113 = scmp.ne.s32.totalorder %s99, %s100
      %p114 = scmp.eq.s32.totalorder %s16, 1
      %p115 = por %p113, %p114
      %p117 = scmp.ne.s32.totalorder %s100, %s116
      %p118 = scmp.eq.s32.totalorder %s16, 0
      %p119 = por %p117, %p118
      %s120 = ssub.s32 %s10, %s17
      %p121 = scmp.eq.s32.totalorder %s120, 0
      %s123 = sadd.s32 %s122, 1
      %s124 = scalar_select %p121, %s122, %s123
      %p127 = pneg %p121
      %p128 = scmp.eq.s32.totalorder %s10, 1
      %p129 = por %p127, %p128
      %p130 = scmp.ne.s32.totalorder %s122, %s125
      %p131 = scmp.eq.s32.totalorder %s10, 0
      %p132 = por %p130, %p131
      %p133 = scmp.ne.s32.totalorder %s122, %s125
      %p134 = scmp.eq.s32.totalorder %s15, 1
      %p135 = por %p133, %p134
      %p136 = scmp.ne.s32.totalorder %s125, %s126
      %p137 = scmp.eq.s32.totalorder %s15, 0
      %p138 = por %p136, %p137
      %p139 = scmp.ne.s32.totalorder %s125, %s126
      %p140 = scmp.eq.s32.totalorder %s16, 1
      %p141 = por %p139, %p140
      %p143 = scmp.ne.s32.totalorder %s126, %s142
      %p144 = scmp.eq.s32.totalorder %s16, 0
      %p145 = por %p143, %p144
      %p146 = scmp.le.s32.totalorder 1, %s10
      %p147 = scmp.lt.s32.totalorder %s10, 3
      %p148 = pnand %p146, %p147
      %p149 = pneg %p148
      // Predicated region
      $region9: #{net_digit5_forward.3} parent=5 // pred_check
        _
      $region10: #{net_digit5_forward.3} parent=5 // pred_check_branch
        %151 = sbr.rel (%p148) target = $region12
      $region11: #{net_digit5_forward.3} parent=5 // pred_region
        %s152 = ssub.s32 %s10, 1
        // Predicated region
        $region13: #{net_digit5_forward.3} parent=11 // pred_check
          %p153 = pneg %p31
        $region14: #{net_digit5_forward.3} parent=11 // pred_check_branch
          %155 = sbr.rel (%p153) target = $region16
        $region15: #{net_digit5_forward.3} parent=11 // pred_region
          _
        $region16: #{net_digit5_forward.3} parent=11 // pred_fallthru
          _
        // Predicated region
        $region17: #{net_digit5_forward.3} parent=11 // pred_check
          %p156 = pneg %p52
        $region18: #{net_digit5_forward.3} parent=11 // pred_check_branch
          %158 = sbr.rel (%p156) target = $region20
        $region19: #{net_digit5_forward.3} parent=11 // pred_region
          _
        $region20: #{net_digit5_forward.3} parent=11 // pred_fallthru
          _
      $region12: #{net_digit5_forward.3} parent=5 // pred_fallthru
        _
      %p159 = scmp.lt.s32.totalorder %s10, 2
      // Predicated region
      $region21: #{net_digit5_forward.3} parent=5 // pred_check
        %p160 = pneg %p159
      $region22: #{net_digit5_forward.3} parent=5 // pred_check_branch
        %162 = sbr.rel (%p160) target = $region24
      $region23: #{net_digit5_forward.3} parent=5 // pred_region
        // Predicated region
        $region25: #{net_digit5_forward.3} parent=23 // pred_check
          %p163 = pneg %p72
        $region26: #{net_digit5_forward.3} parent=23 // pred_check_branch
          %165 = sbr.rel (%p163) target = $region28
        $region27: #{net_digit5_forward.3} parent=23 // pred_region
          %s166 = sand.u32 %s62, 1
          %s167 = sand.u32 %s62, 1
          %s168 = smul.addr %s167, 32
          %s169 = scalar_lea.vmem [#allocation2], %s168
          %s170 = smul.u32 2, %s10
          %s171 = smul.addr %s170, 8
          %s172 = scalar_lea.vmem %s2, %s171
          // Predicated region
          $region29: #{net_digit5_forward.3} parent=27 // pred_check
            _
          $region30: #{net_digit5_forward.3} parent=27 // pred_check_branch
            %174 = sbr.rel (0) target = $region32
          $region31: #{net_digit5_forward.3} parent=27 // pred_region
            // Predicated region
            $region33: #{net_digit5_forward.3} parent=31 // pred_check
              _
            $region34: #{net_digit5_forward.3} parent=31 // pred_check_branch
              %176 = sbr.rel (0) target = $region36
            $region35: #{net_digit5_forward.3} parent=31 // pred_region
              loop: start=0, step=1, limit=1
              $region37: #{net_digit5_forward.3} parent=35 // loop_pre_header
                _
              $region38: #{net_digit5_forward.3} parent=35 // loop_header
                %s178 = sphi 0, %s182
                %p179 = scmp.ge.s32.totalorder %s178, 1
                %s183 = sphi %s172, %s172
                %s184 = sphi %s169, %s169
              $region39: #{net_digit5_forward.3} parent=35 // loop_header_branch
                %181 = sbr.rel (%p179) target = $region43
              $region40: #{net_digit5_forward.3} parent=35 // loop_body
                %v185 = vld [vmem:[%s183] sm:$0xff]
                %186 = vst [vmem:[%s184] sm:$0xff] %v185
                %v187 = vld [vmem:[%s183 + $0x8] sm:$0xff]
                %188 = vst [vmem:[%s184 + $0x8] sm:$0xff] %v187
                %v189 = vld [vmem:[%s183 + $0x20] sm:$0xff]
                %190 = vst [vmem:[%s184 + $0x10] sm:$0xff] %v189
                %v191 = vld [vmem:[%s183 + $0x28] sm:$0xff]
                %192 = vst [vmem:[%s184 + $0x18] sm:$0xff] %v191
              $region41: #{net_digit5_forward.3} parent=35 // loop_footer
                %s182 = sadd.s32 1, %s178
              $region42: #{net_digit5_forward.3} parent=35 // loop_footer_branch
                %177 = sbr.rel target = $region38
              $region43: #{net_digit5_forward.3} parent=35 // loop_exit
                _
            $region36: #{net_digit5_forward.3} parent=31 // pred_fallthru
              _
            // Predicated region
            $region44: #{net_digit5_forward.3} parent=31 // pred_check
              _
            $region45: #{net_digit5_forward.3} parent=31 // pred_check_branch
              %194 = sbr.rel target = $region47
            $region46: #{net_digit5_forward.3} parent=31 // pred_region
              _
            $region47: #{net_digit5_forward.3} parent=31 // pred_fallthru
              _
          $region32: #{net_digit5_forward.3} parent=27 // pred_fallthru
            _
          %195 = vnop
        $region28: #{net_digit5_forward.3} parent=23 // pred_fallthru
          _
        // Predicated region
        $region48: #{net_digit5_forward.3} parent=23 // pred_check
          %p196 = pneg %p106
        $region49: #{net_digit5_forward.3} parent=23 // pred_check_branch
          %198 = sbr.rel (%p196) target = $region51
        $region50: #{net_digit5_forward.3} parent=23 // pred_region
          %s199 = sand.u32 %s96, 1
          %s200 = sand.u32 %s96, 1
          %s201 = smul.addr %s200, 16
          %s202 = scalar_lea.vmem [#allocation3], %s201
          %s203 = sadd.s32 %s10, 1
          %p204 = scmp.lt.s32.totalorder %s203, 1
          %s205 = scalar_select %p204, %s203, 1
          %s206 = smul.u32 %s205, 2
          %s207 = smul.addr %s206, 8
          %s208 = scalar_lea.vmem %s3, %s207
          // Predicated region
          $region52: #{net_digit5_forward.3} parent=50 // pred_check
            _
          $region53: #{net_digit5_forward.3} parent=50 // pred_check_branch
            %210 = sbr.rel (0) target = $region55
          $region54: #{net_digit5_forward.3} parent=50 // pred_region
            // Predicated region
            $region56: #{net_digit5_forward.3} parent=54 // pred_check
              _
            $region57: #{net_digit5_forward.3} parent=54 // pred_check_branch
              %212 = sbr.rel (0) target = $region59
            $region58: #{net_digit5_forward.3} parent=54 // pred_region
              // Predicated region
              $region71: #{net_digit5_forward.3} parent=58 // pred_check
                _
              $region72: #{net_digit5_forward.3} parent=58 // pred_check_branch
                %229 = sbr.rel (0) target = $region74
              $region73: #{net_digit5_forward.3} parent=58 // pred_region
                loop: start=0, step=1, limit=1
                $region75: #{net_digit5_forward.3} parent=73 // loop_pre_header
                  _
                $region76: #{net_digit5_forward.3} parent=73 // loop_header
                  %s231 = sphi 0, %s235
                  %p232 = scmp.ge.s32.totalorder %s231, 1
                  %s236 = sphi %s208, %s208
                  %s237 = sphi %s202, %s202
                $region77: #{net_digit5_forward.3} parent=73 // loop_header_branch
                  %234 = sbr.rel (%p232) target = $region81
                $region78: #{net_digit5_forward.3} parent=73 // loop_body
                  %v238 = vld [vmem:[%s236] sm:$0xff]
                  %239 = vst [vmem:[%s237] sm:$0xff] %v238
                  %v240 = vld [vmem:[%s236 + $0x20] sm:$0xff]
                  %241 = vst [vmem:[%s237 + $0x8] sm:$0xff] %v240
                $region79: #{net_digit5_forward.3} parent=73 // loop_footer
                  %s235 = sadd.s32 1, %s231
                $region80: #{net_digit5_forward.3} parent=73 // loop_footer_branch
                  %230 = sbr.rel target = $region76
                $region81: #{net_digit5_forward.3} parent=73 // loop_exit
                  _
              $region74: #{net_digit5_forward.3} parent=58 // pred_fallthru
                _
              // Predicated region
              $region82: #{net_digit5_forward.3} parent=58 // pred_check
                _
              $region83: #{net_digit5_forward.3} parent=58 // pred_check_branch
                %243 = sbr.rel target = $region85
              $region84: #{net_digit5_forward.3} parent=58 // pred_region
                _
              $region85: #{net_digit5_forward.3} parent=58 // pred_fallthru
                _
            $region59: #{net_digit5_forward.3} parent=54 // pred_fallthru
              _
            // Predicated region
            $region60: #{net_digit5_forward.3} parent=54 // pred_check
              _
            $region61: #{net_digit5_forward.3} parent=54 // pred_check_branch
              %214 = sbr.rel target = $region63
            $region62: #{net_digit5_forward.3} parent=54 // pred_region
              loop: start=0, step=1, limit=1
              $region64: #{net_digit5_forward.3} parent=62 // loop_pre_header
                _
              $region65: #{net_digit5_forward.3} parent=62 // loop_header
                %s217 = sphi 0, %s221
                %p218 = scmp.ge.s32.totalorder %s217, 1
                %s222 = sphi %s208, %s208
                %s223 = sphi %s202, %s202
              $region66: #{net_digit5_forward.3} parent=62 // loop_header_branch
                %220 = sbr.rel (%p218) target = $region70
              $region67: #{net_digit5_forward.3} parent=62 // loop_body
                %v224 = vld [vmem:[%s222] sm:$0xff]
                %225 = vst [vmem:[%s223] sm:$0xff] %v224
                %v226 = vld [vmem:[%s222 + $0x20] sm:$0xff]
                %227 = vst [vmem:[%s223 + $0x8] sm:$0xff] %v226
              $region68: #{net_digit5_forward.3} parent=62 // loop_footer
                %s221 = sadd.s32 1, %s217
              $region69: #{net_digit5_forward.3} parent=62 // loop_footer_branch
                %216 = sbr.rel target = $region65
              $region70: #{net_digit5_forward.3} parent=62 // loop_exit
                _
            $region63: #{net_digit5_forward.3} parent=54 // pred_fallthru
              _
          $region55: #{net_digit5_forward.3} parent=50 // pred_fallthru
            _
          %244 = vnop
        $region51: #{net_digit5_forward.3} parent=23 // pred_fallthru
          _
      $region24: #{net_digit5_forward.3} parent=5 // pred_fallthru
        _
      %p245 = scmp.le.s32.totalorder 1, %s10
      %p246 = scmp.lt.s32.totalorder %s10, 3
      %p247 = pnand %p245, %p246
      %p248 = pneg %p247
      // Predicated region
      $region86: #{net_digit5_forward.3} parent=5 // pred_check
        _
      $region87: #{net_digit5_forward.3} parent=5 // pred_check_branch
        %250 = sbr.rel (%p247) target = $region89
      $region88: #{net_digit5_forward.3} parent=5 // pred_region
        %s251 = ssub.s32 %s10, 1
        %s252 = sand.u32 %s65, 1
        %s253 = sand.u32 %s65, 1
        %s254 = smul.addr %s253, 32
        %s255 = scalar_lea.vmem [#allocation2], %s254
        // Predicated region
        $region90: #{net_digit5_forward.3} parent=88 // pred_check
          %p256 = pneg %p78
        $region91: #{net_digit5_forward.3} parent=88 // pred_check_branch
          %258 = sbr.rel (%p256) target = $region93
        $region92: #{net_digit5_forward.3} parent=88 // pred_region
          _
        $region93: #{net_digit5_forward.3} parent=88 // pred_fallthru
          _
        %s259 = sand.u32 %s99, 1
        %s260 = sand.u32 %s99, 1
        %s261 = smul.addr %s260, 16
        %s262 = scalar_lea.vmem [#allocation3], %s261
        // Predicated region
        $region94: #{net_digit5_forward.3} parent=88 // pred_check
          %p263 = pneg %p112
        $region95: #{net_digit5_forward.3} parent=88 // pred_check_branch
          %265 = sbr.rel (%p263) target = $region97
        $region96: #{net_digit5_forward.3} parent=88 // pred_region
          _
        $region97: #{net_digit5_forward.3} parent=88 // pred_fallthru
          _
        %p266 = pneg %p31
        %p267 = pneg %p28
        %p268 = pneg %p52
        %p269 = pneg %p49
        %s270 = sand.u32 %s65, 1
        %s271 = sand.u32 %s65, 1
        %s272 = smul.addr %s271, 32
        %s273 = scalar_lea.vmem [#allocation2], %s272
        %p274 = pneg %p78
        %p275 = pneg %p75
        %s276 = sand.u32 %s99, 1
        %s277 = sand.u32 %s99, 1
        %s278 = smul.addr %s277, 16
        %s279 = scalar_lea.vmem [#allocation3], %s278
        %p280 = pneg %p112
        %p281 = pneg %p109
        %p282 = pneg %p138
        %p283 = pneg %p135
        %s284 = smul.u32 2, %s15
        %p285 = scmp.lt.s32.totalorder %s284, 3
        %s286 = scalar_select %p285, %s284, 3
        %s287 = smul.addr %s286, 4
        %s288 = scalar_lea.vmem %s4, %s287
        %s289 = smul.u32 2, %s15
        %s290 = sadd.s32 %s15, 1
        %p291 = scmp.lt.s32.totalorder %s290, 1
        %s292 = scalar_select %p291, %s290, 1
        %s293 = smul.u32 %s292, 2
        %s294 = smul.u32 2, %s15
        %p295 = scmp.lt.s32.totalorder %s294, 3
        %s296 = scalar_select %p295, %s294, 3
        %s297 = smul.addr %s296, 4
        %s298 = scalar_lea.vmem %s4, %s297
        %s299 = smul.u32 2, %s15
        %v300 = vld [vmem:[%s255] sm:$0xff]
        %v301 = vld [vmem:[%s255 + $0x8] sm:$0xff]
        %v302 = vld [vmem:[%s255 + $0x10] sm:$0xf]
        %v303 = vld [vmem:[%s255 + $0x18] sm:$0xf]
        %v304 = vld [vmem:[%s262] sm:$0xff]
        %v305 = vld [vmem:[%s262 + $0x8] sm:$0xf]
        %v306 = vld [vmem:[%s0] sm:$0xff]
        %v310 = vrot.slane %v300, 2
        %v311 = vrot.slane %v301, 2
        %v312 = vrot.slane %v304, 2
        %313 = vrot.lane.b32.xlu0 %v310, 127
        %v314 = vpop.permute.xlu0 %313
        %315 = vrot.lane.b32.xlu0 %v311, 127
        %v316 = vpop.permute.xlu0 %315
        %317 = vrot.lane.b32.xlu0 %v312, 127
        %v318 = vpop.permute.xlu0 %317
        %vm319 = vcmask 1039360
        %v320 = vsel %vm319, %v314, %v316
        %v321 = vsel %vm319, %v316, %v318
        %v324 = vrot.slane %v300, 4
        %v325 = vrot.slane %v301, 4
        %v326 = vrot.slane %v304, 4
        %327 = vrot.lane.b32.xlu0 %v324, 126
        %v328 = vpop.permute.xlu0 %327
        %329 = vrot.lane.b32.xlu0 %v325, 126
        %v330 = vpop.permute.xlu0 %329
        %331 = vrot.lane.b32.xlu0 %v326, 126
        %v332 = vpop.permute.xlu0 %331
        %vm333 = vcmask 1031168
        %v334 = vsel %vm333, %v328, %v330
        %v335 = vsel %vm333, %v330, %v332
        %vm340 = vcmask 1040384
        %v341 = vrot.slane %v300, 7
        %v342 = vrot.slane %v301, 7
        %v343 = vrot.slane %v302, 7
        %v344 = vsel %vm340, %v341, %v343
        %v345 = vrot.slane %v303, 7
        %v346 = vsel %vm340, %v342, %v345
        %vm354 = vcmask 1046528
        %v355 = vrot.slane %v300, 1
        %v356 = vrot.slane %v302, 1
        %v357 = vsel %vm354, %v355, %v356
        %v358 = vrot.slane %v301, 1
        %v359 = vrot.slane %v303, 1
        %v360 = vsel %vm354, %v358, %v359
        %v361 = vrot.slane %v304, 1
        %v362 = vrot.slane %v305, 1
        %v363 = vsel %vm354, %v361, %v362
        %364 = vrot.lane.b32.xlu0 %v357, 127
        %v365 = vpop.permute.xlu0 %364
        %366 = vrot.lane.b32.xlu0 %v360, 127
        %v367 = vpop.permute.xlu0 %366
        %368 = vrot.lane.b32.xlu0 %v363, 127
        %v369 = vpop.permute.xlu0 %368
        %v370 = vsel %vm319, %v365, %v367
        %v371 = vsel %vm319, %v367, %v369
        %374 = vrot.lane.b32.xlu0 %v356, 127
        %v375 = vpop.permute.xlu0 %374
        %376 = vrot.lane.b32.xlu0 %v359, 127
        %v377 = vpop.permute.xlu0 %376
        %378 = vrot.lane.b32.xlu0 %v362, 127
        %v379 = vpop.permute.xlu0 %378
        %v380 = vsel %vm319, %v375, %v377
        %v381 = vsel %vm319, %v377, %v379
        %vm384 = vcmask 1044480
        %v385 = vrot.slane %v300, 3
        %v386 = vrot.slane %v302, 3
        %v387 = vsel %vm384, %v385, %v386
        %v388 = vrot.slane %v301, 3
        %v389 = vrot.slane %v303, 3
        %v390 = vsel %vm384, %v388, %v389
        %v391 = vrot.slane %v304, 3
        %v392 = vrot.slane %v305, 3
        %v393 = vsel %vm384, %v391, %v392
        %394 = vrot.lane.b32.xlu0 %v387, 126
        %v395 = vpop.permute.xlu0 %394
        %396 = vrot.lane.b32.xlu0 %v390, 126
        %v397 = vpop.permute.xlu0 %396
        %398 = vrot.lane.b32.xlu0 %v393, 126
        %v399 = vpop.permute.xlu0 %398
        %v400 = vsel %vm333, %v395, %v397
        %v401 = vsel %vm333, %v397, %v399
        %404 = vrot.lane.b32.xlu0 %v310, 112
        %v405 = vpop.permute.xlu0 %404
        %406 = vrot.lane.b32.xlu0 %v311, 112
        %v407 = vpop.permute.xlu0 %406
        %408 = vrot.lane.b32.xlu0 %v312, 112
        %v409 = vpop.permute.xlu0 %408
        %vm410 = vcmask 916480
        %v411 = vsel %vm410, %v405, %v407
        %v412 = vsel %vm410, %v407, %v409
        %415 = vrot.lane.b32.xlu0 %v324, 111
        %v416 = vpop.permute.xlu0 %415
        %417 = vrot.lane.b32.xlu0 %v325, 111
        %v418 = vpop.permute.xlu0 %417
        %419 = vrot.lane.b32.xlu0 %v326, 111
        %v420 = vpop.permute.xlu0 %419
        %vm421 = vcmask 908288
        %v422 = vsel %vm421, %v416, %v418
        %v423 = vsel %vm421, %v418, %v420
        %v426 = vrot.slane %v300, 6
        %v427 = vrot.slane %v301, 6
        %v428 = vrot.slane %v304, 6
        %429 = vrot.lane.b32.xlu0 %v426, 110
        %v430 = vpop.permute.xlu0 %429
        %431 = vrot.lane.b32.xlu0 %v427, 110
        %v432 = vpop.permute.xlu0 %431
        %433 = vrot.lane.b32.xlu0 %v428, 110
        %v434 = vpop.permute.xlu0 %433
        %vm435 = vcmask 900096
        %v436 = vsel %vm435, %v430, %v432
        %v437 = vsel %vm435, %v432, %v434
        %440 = vrot.lane.b32.xlu0 %v357, 112
        %v441 = vpop.permute.xlu0 %440
        %442 = vrot.lane.b32.xlu0 %v360, 112
        %v443 = vpop.permute.xlu0 %442
        %444 = vrot.lane.b32.xlu0 %v363, 112
        %v445 = vpop.permute.xlu0 %444
        %v446 = vsel %vm410, %v441, %v443
        %v447 = vsel %vm410, %v443, %v445
        %vm450 = vcmask 1045504
        %v451 = vsel %vm450, %v300, %v320
        %v452 = vsel %vm450, %v301, %v321
        %vm453 = vcmask 1043456
        %v454 = vsel %vm453, %v320, %v334
        %v455 = vsel %vm453, %v321, %v335
        %v456 = vsel %vm354, %v454, %v341
        %v457 = vsel %vm354, %v455, %v342
        %vm458 = vcmask 1041408
        %v459 = vsel %vm458, %v344, %v343
        %v460 = vsel %vm458, %v346, %v345
        %v461 = vsel %vm384, %v459, %v370
        %v462 = vsel %vm384, %v460, %v371
        %vm463 = vcmask 1042432
        %v464 = vsel %vm463, %v380, %v400
        %v465 = vsel %vm463, %v381, %v401
        %v466 = vsel %vm450, %v464, %v411
        %v467 = vsel %vm450, %v465, %v412
        %v468 = vsel %vm453, %v411, %v422
        %v469 = vsel %vm453, %v412, %v423
        %v470 = vsel %vm354, %v468, %v422
        %v471 = vsel %vm354, %v469, %v423
        %v472 = vsel %vm458, %v422, %v436
        %v473 = vsel %vm458, %v423, %v437
        %v474 = vsel %vm384, %v472, %v446
        %v475 = vsel %vm384, %v473, %v447
        %479 = vrot.lane.b32.xlu0 %v387, 127
        %v480 = vpop.permute.xlu0 %479
        %481 = vrot.lane.b32.xlu0 %v390, 127
        %v482 = vpop.permute.xlu0 %481
        %483 = vrot.lane.b32.xlu0 %v393, 127
        %v484 = vpop.permute.xlu0 %483
        %v485 = vsel %vm319, %v480, %v482
        %v486 = vsel %vm319, %v482, %v484
        %490 = vrot.lane.b32.xlu0 %v386, 127
        %v491 = vpop.permute.xlu0 %490
        %492 = vrot.lane.b32.xlu0 %v389, 127
        %v493 = vpop.permute.xlu0 %492
        %494 = vrot.lane.b32.xlu0 %v392, 127
        %v495 = vpop.permute.xlu0 %494
        %v496 = vsel %vm319, %v491, %v493
        %v497 = vsel %vm319, %v493, %v495
        %v501 = vrot.slane %v300, 5
        %v502 = vrot.slane %v302, 5
        %v503 = vsel %vm463, %v501, %v502
        %v504 = vrot.slane %v301, 5
        %v505 = vrot.slane %v303, 5
        %v506 = vsel %vm463, %v504, %v505
        %v507 = vrot.slane %v304, 5
        %v508 = vrot.slane %v305, 5
        %v509 = vsel %vm463, %v507, %v508
        %510 = vrot.lane.b32.xlu0 %v503, 126
        %v511 = vpop.permute.xlu0 %510
        %512 = vrot.lane.b32.xlu0 %v506, 126
        %v513 = vpop.permute.xlu0 %512
        %514 = vrot.lane.b32.xlu0 %v509, 126
        %v515 = vpop.permute.xlu0 %514
        %v516 = vsel %vm333, %v511, %v513
        %v517 = vsel %vm333, %v513, %v515
        %521 = vrot.lane.b32.xlu0 %v324, 112
        %v522 = vpop.permute.xlu0 %521
        %523 = vrot.lane.b32.xlu0 %v325, 112
        %v524 = vpop.permute.xlu0 %523
        %525 = vrot.lane.b32.xlu0 %v326, 112
        %v526 = vpop.permute.xlu0 %525
        %v527 = vsel %vm410, %v522, %v524
        %v528 = vsel %vm410, %v524, %v526
        %532 = vrot.lane.b32.xlu0 %v426, 111
        %v533 = vpop.permute.xlu0 %532
        %534 = vrot.lane.b32.xlu0 %v427, 111
        %v535 = vpop.permute.xlu0 %534
        %536 = vrot.lane.b32.xlu0 %v428, 111
        %v537 = vpop.permute.xlu0 %536
        %v538 = vsel %vm421, %v533, %v535
        %v539 = vsel %vm421, %v535, %v537
        %543 = vrot.lane.b32.xlu0 %v300, 110
        %v544 = vpop.permute.xlu0 %543
        %545 = vrot.lane.b32.xlu0 %v301, 110
        %v546 = vpop.permute.xlu0 %545
        %547 = vrot.lane.b32.xlu0 %v304, 110
        %v548 = vpop.permute.xlu0 %547
        %v549 = vsel %vm435, %v544, %v546
        %v550 = vsel %vm435, %v546, %v548
        %v551 = vsel %vm463, %v356, %v485
        %v552 = vsel %vm463, %v359, %v486
        %v553 = vsel %vm463, %v362, %v484
        %v554 = vsel %vm450, %v551, %v496
        %v555 = vsel %vm450, %v552, %v497
        %v556 = vsel %vm450, %v553, %v495
        %v557 = vsel %vm340, %v496, %v516
        %v558 = vsel %vm340, %v497, %v517
        %v559 = vsel %vm340, %v495, %v515
        %v560 = vsel %vm453, %v557, %v527
        %v561 = vsel %vm453, %v558, %v528
        %v562 = vsel %vm453, %v559, %v526
        %v563 = vsel %vm354, %v560, %v527
        %v564 = vsel %vm354, %v561, %v528
        %v565 = vsel %vm354, %v562, %v526
        %v566 = vsel %vm458, %v527, %v538
        %v567 = vsel %vm458, %v528, %v539
        %v568 = vsel %vm458, %v526, %v537
        %v569 = vsel %vm384, %v566, %v538
        %v570 = vsel %vm384, %v567, %v539
        %v571 = vsel %vm384, %v568, %v537
        %581 = vrot.lane.b32.xlu0 %v554, 112
        %v582 = vpop.permute.xlu0 %581
        %583 = vrot.lane.b32.xlu0 %v555, 112
        %v584 = vpop.permute.xlu0 %583
        %585 = vrot.lane.b32.xlu0 %v556, 112
        %v586 = vpop.permute.xlu0 %585
        %587 = vrot.lane.b32.xlu0 %v563, 112
        %v588 = vpop.permute.xlu0 %587
        %589 = vrot.lane.b32.xlu0 %v564, 112
        %v590 = vpop.permute.xlu0 %589
        %591 = vrot.lane.b32.xlu0 %v565, 112
        %v592 = vpop.permute.xlu0 %591
        %593 = vrot.lane.b32.xlu0 %v569, 112
        %v594 = vpop.permute.xlu0 %593
        %595 = vrot.lane.b32.xlu0 %v570, 112
        %v596 = vpop.permute.xlu0 %595
        %597 = vrot.lane.b32.xlu0 %v571, 112
        %v598 = vpop.permute.xlu0 %597
        %599 = vrot.lane.b32.xlu0 %v549, 112
        %v600 = vpop.permute.xlu0 %599
        %601 = vrot.lane.b32.xlu0 %v550, 112
        %v602 = vpop.permute.xlu0 %601
        %603 = vrot.lane.b32.xlu0 %v548, 112
        %v604 = vpop.permute.xlu0 %603
        %v605 = vsel %vm410, %v582, %v584
        %v606 = vsel %vm410, %v584, %v586
        %v607 = vsel %vm410, %v588, %v590
        %v608 = vsel %vm410, %v590, %v592
        %v609 = vsel %vm410, %v594, %v596
        %v610 = vsel %vm410, %v596, %v598
        %v611 = vsel %vm410, %v600, %v602
        %v612 = vsel %vm410, %v602, %v604
        %vm619 = vcmask 613376
        %v621 = vsel %vm619, %v306, 0
        %v623 = vsel %vm463, %v611, 0
        %v625 = vsel %vm463, %v612, 0
        %627 = vmatprep.subr.mxu0 %v452
        %628 = vmatpush1.msra.mxu0 %v451
        %629 = vmatprep.subr.mxu0 %v457
        %630 = vmatpush1.msra.mxu0 %v456
        %631 = vmatprep.subr.mxu0 %v462
        %632 = vmatpush1.msra.mxu0 %v461
        %633 = vmatprep.subr.mxu0 %v467
        %634 = vmatpush1.msra.mxu0 %v466
        %635 = vmatprep.subr.mxu0 %v471
        %636 = vmatpush1.msra.mxu0 %v470
        %637 = vmatprep.subr.mxu0 %v475
        %638 = vmatpush1.msra.mxu0 %v474
        %639 = vmatprep.subr.mxu0 %v606
        %640 = vmatpush1.msra.mxu0 %v605
        %641 = vmatprep.subr.mxu0 %v608
        %642 = vmatpush1.msra.mxu0 %v607
        %643 = vmatprep.subr.mxu0 %v610
        %644 = vmatpush1.msra.mxu0 %v609
        %645 = vmatprep.subr.mxu0 %v625
        %646 = vmatpush1.msra.mxu0 %v623
        %647 = vmatprep.subr.mxu0 0.0
        %648 = vmatpush1.msra.mxu0 0.0
        %649 = vmatprep.subr.mxu0 0.0
        %650 = vmatpush1.msra.mxu0 0.0
        %651 = vmatprep.subr.mxu0 0.0
        %652 = vmatpush1.msra.mxu0 0.0
        %653 = vmatprep.subr.mxu0 0.0
        %654 = vmatpush1.msra.mxu0 0.0
        %655 = vmatprep.subr.mxu0 0.0
        %656 = vmatpush1.msra.mxu0 0.0
        %657 = vmatprep.subr.mxu0 0.0
        %658 = vmatpush1.msra.mxu0 0.0
        %659 = vmatprep.subr.mxu0 0.0
        %660 = vmatpush1.msra.mxu0 0.0
        %661 = vmatprep.subr.mxu0 0.0
        %662 = vmatpush1.msra.mxu0 0.0
        %663 = vmatprep.subr.mxu0 0.0
        %664 = vmatpush1.msra.mxu0 0.0
        %665 = vmatprep.subr.mxu0 0.0
        %666 = vmatpush1.msra.mxu0 0.0
        %667 = vmatprep.subr.mxu0 0.0
        %668 = vmatpush1.msra.mxu0 0.0
        %669 = vmatprep.subr.mxu0 0.0
        %670 = vmatpush1.msra.mxu0 0.0
        %671 = vmatprep.subr.mxu0 0.0
        %672 = vmatpush1.msra.mxu0 0.0
        %673 = vmatprep.subr.mxu0 0.0
        %674 = vmatpush1.msra.mxu0 0.0
        %675 = vmatprep.subr.mxu0 0.0
        %676 = vmatpush1.msra.mxu0 0.0
        %677 = vmatprep.subr.mxu0 0.0
        %678 = vmatpush1.msra.mxu0 0.0
        %679 = vmatprep.subr.mxu0 0.0
        %680 = vmatpush1.msra.mxu0 0.0
        %681 = vmatprep.subr.mxu0 0.0
        %682 = vmatpush1.msra.mxu0 0.0
        %683 = vmatprep.subr.mxu0 0.0
        %684 = vmatpush1.msra.mxu0 0.0
        %685 = vmatprep.subr.mxu0 0.0
        %686 = vmatpush1.msra.mxu0 0.0
        %687 = vmatprep.subr.mxu0 0.0
        %688 = vmatpush1.msra.mxu0 0.0
        %689 = vmatprep.subr.mxu0 0.0
        %690 = vmatpush1.msra.mxu0 0.0
        %691 = vmatprep.mubr.f32.mxu0 0.0
        %692 = vmatmul.mubr.f32.gmra.mrb[0].mxu0 %v621
        %v693 = vpop.f32.mrb[0].mxu0
        %v694 = vadd.f32 0.0, %v693
        %v695 = vpop.f32.mrb[0].mxu0
        %v696 = vadd.f32 0.0, %v695
        %697 = vdwg.mxu0
        %700 = vrot.lane.b32.xlu0 %v501, 127
        %v701 = vpop.permute.xlu0 %700
        %702 = vrot.lane.b32.xlu0 %v504, 127
        %v703 = vpop.permute.xlu0 %702
        %704 = vrot.lane.b32.xlu0 %v507, 127
        %v705 = vpop.permute.xlu0 %704
        %v706 = vsel %vm319, %v701, %v703
        %v707 = vsel %vm319, %v703, %v705
        %v710 = vrot.slane %v304, 7
        %711 = vrot.lane.b32.xlu0 %v341, 126
        %v712 = vpop.permute.xlu0 %711
        %713 = vrot.lane.b32.xlu0 %v342, 126
        %v714 = vpop.permute.xlu0 %713
        %715 = vrot.lane.b32.xlu0 %v710, 126
        %v716 = vpop.permute.xlu0 %715
        %v717 = vsel %vm333, %v712, %v714
        %v718 = vsel %vm333, %v714, %v716
        %v721 = vrot.slane %v302, 2
        %v722 = vrot.slane %v303, 2
        %v725 = vrot.slane %v302, 4
        %v726 = vsel %vm453, %v324, %v725
        %v727 = vrot.slane %v303, 4
        %v728 = vsel %vm453, %v325, %v727
        %v729 = vrot.slane %v305, 4
        %v730 = vsel %vm453, %v326, %v729
        %731 = vrot.lane.b32.xlu0 %v726, 127
        %v732 = vpop.permute.xlu0 %731
        %733 = vrot.lane.b32.xlu0 %v728, 127
        %v734 = vpop.permute.xlu0 %733
        %735 = vrot.lane.b32.xlu0 %v730, 127
        %v736 = vpop.permute.xlu0 %735
        %v737 = vsel %vm319, %v732, %v734
        %v738 = vsel %vm319, %v734, %v736
        %741 = vrot.lane.b32.xlu0 %v725, 127
        %v742 = vpop.permute.xlu0 %741
        %743 = vrot.lane.b32.xlu0 %v727, 127
        %v744 = vpop.permute.xlu0 %743
        %745 = vrot.lane.b32.xlu0 %v729, 127
        %v746 = vpop.permute.xlu0 %745
        %v747 = vsel %vm319, %v742, %v744
        %v748 = vsel %vm319, %v744, %v746
        %v751 = vrot.slane %v302, 6
        %v752 = vsel %vm458, %v426, %v751
        %v753 = vrot.slane %v303, 6
        %v754 = vsel %vm458, %v427, %v753
        %v755 = vrot.slane %v305, 6
        %v756 = vsel %vm458, %v428, %v755
        %757 = vrot.lane.b32.xlu0 %v752, 126
        %v758 = vpop.permute.xlu0 %757
        %759 = vrot.lane.b32.xlu0 %v754, 126
        %v760 = vpop.permute.xlu0 %759
        %761 = vrot.lane.b32.xlu0 %v756, 126
        %v762 = vpop.permute.xlu0 %761
        %v763 = vsel %vm333, %v758, %v760
        %v764 = vsel %vm333, %v760, %v762
        %767 = vrot.lane.b32.xlu0 %v751, 126
        %v768 = vpop.permute.xlu0 %767
        %769 = vrot.lane.b32.xlu0 %v753, 126
        %v770 = vpop.permute.xlu0 %769
        %771 = vrot.lane.b32.xlu0 %v755, 126
        %v772 = vpop.permute.xlu0 %771
        %v773 = vsel %vm333, %v768, %v770
        %v774 = vsel %vm333, %v770, %v772
        %777 = vrot.lane.b32.xlu0 %v501, 112
        %v778 = vpop.permute.xlu0 %777
        %779 = vrot.lane.b32.xlu0 %v504, 112
        %v780 = vpop.permute.xlu0 %779
        %781 = vrot.lane.b32.xlu0 %v507, 112
        %v782 = vpop.permute.xlu0 %781
        %v783 = vsel %vm410, %v778, %v780
        %v784 = vsel %vm410, %v780, %v782
        %787 = vrot.lane.b32.xlu0 %v341, 111
        %v788 = vpop.permute.xlu0 %787
        %789 = vrot.lane.b32.xlu0 %v342, 111
        %v790 = vpop.permute.xlu0 %789
        %791 = vrot.lane.b32.xlu0 %v710, 111
        %v792 = vpop.permute.xlu0 %791
        %v793 = vsel %vm421, %v788, %v790
        %v794 = vsel %vm421, %v790, %v792
        %797 = vrot.lane.b32.xlu0 %v355, 110
        %v798 = vpop.permute.xlu0 %797
        %799 = vrot.lane.b32.xlu0 %v358, 110
        %v800 = vpop.permute.xlu0 %799
        %801 = vrot.lane.b32.xlu0 %v361, 110
        %v802 = vpop.permute.xlu0 %801
        %v803 = vsel %vm435, %v798, %v800
        %v804 = vsel %vm435, %v800, %v802
        %807 = vrot.lane.b32.xlu0 %v725, 112
        %v808 = vpop.permute.xlu0 %807
        %809 = vrot.lane.b32.xlu0 %v727, 112
        %v810 = vpop.permute.xlu0 %809
        %811 = vrot.lane.b32.xlu0 %v729, 112
        %v812 = vpop.permute.xlu0 %811
        %v813 = vsel %vm410, %v808, %v810
        %v814 = vsel %vm410, %v810, %v812
        %v817 = vsel %vm463, %v385, %v706
        %v818 = vsel %vm463, %v388, %v707
        %v819 = vsel %vm450, %v817, %v706
        %v820 = vsel %vm450, %v818, %v707
        %v821 = vsel %vm340, %v706, %v717
        %v822 = vsel %vm340, %v707, %v718
        %v823 = vsel %vm453, %v821, %v717
        %v824 = vsel %vm453, %v822, %v718
        %v825 = vsel %vm354, %v823, %v721
        %v826 = vsel %vm354, %v824, %v722
        %v827 = vsel %vm458, %v721, %v737
        %v828 = vsel %vm458, %v722, %v738
        %v829 = vsel %vm384, %v827, %v747
        %v830 = vsel %vm384, %v828, %v748
        %v831 = vsel %vm463, %v763, %v773
        %v832 = vsel %vm463, %v764, %v774
        %v833 = vsel %vm450, %v831, %v783
        %v834 = vsel %vm450, %v832, %v784
        %v835 = vsel %vm340, %v783, %v793
        %v836 = vsel %vm340, %v784, %v794
        %v837 = vsel %vm453, %v835, %v793
        %v838 = vsel %vm453, %v836, %v794
        %v839 = vsel %vm354, %v837, %v803
        %v840 = vsel %vm354, %v838, %v804
        %v841 = vsel %vm384, %v803, %v813
        %v842 = vsel %vm384, %v804, %v814
        %849 = vrot.lane.b32.xlu0 %v300, 127
        %v850 = vpop.permute.xlu0 %849
        %851 = vrot.lane.b32.xlu0 %v301, 127
        %v852 = vpop.permute.xlu0 %851
        %853 = vrot.lane.b32.xlu0 %v304, 127
        %v854 = vpop.permute.xlu0 %853
        %855 = vrot.lane.b32.xlu0 %v302, 127
        %v856 = vpop.permute.xlu0 %855
        %857 = vrot.lane.b32.xlu0 %v303, 127
        %v858 = vpop.permute.xlu0 %857
        %859 = vrot.lane.b32.xlu0 %v305, 127
        %v860 = vpop.permute.xlu0 %859
        %v861 = vsel %vm319, %v850, %v852
        %v862 = vsel %vm319, %v852, %v854
        %v863 = vsel %vm319, %v856, %v858
        %v864 = vsel %vm319, %v858, %v860
        %871 = vrot.lane.b32.xlu0 %v341, 113
        %v872 = vpop.permute.xlu0 %871
        %873 = vrot.lane.b32.xlu0 %v342, 113
        %v874 = vpop.permute.xlu0 %873
        %875 = vrot.lane.b32.xlu0 %v710, 113
        %v876 = vpop.permute.xlu0 %875
        %vm877 = vcmask 924672
        %v878 = vsel %vm877, %v872, %v874
        %v879 = vsel %vm877, %v874, %v876
        %883 = vrot.lane.b32.xlu0 %v355, 112
        %v884 = vpop.permute.xlu0 %883
        %885 = vrot.lane.b32.xlu0 %v358, 112
        %v886 = vpop.permute.xlu0 %885
        %887 = vrot.lane.b32.xlu0 %v361, 112
        %v888 = vpop.permute.xlu0 %887
        %v889 = vsel %vm410, %v884, %v886
        %v890 = vsel %vm410, %v886, %v888
        %894 = vrot.lane.b32.xlu0 %v385, 111
        %v895 = vpop.permute.xlu0 %894
        %896 = vrot.lane.b32.xlu0 %v388, 111
        %v897 = vpop.permute.xlu0 %896
        %898 = vrot.lane.b32.xlu0 %v391, 111
        %v899 = vpop.permute.xlu0 %898
        %v900 = vsel %vm421, %v895, %v897
        %v901 = vsel %vm421, %v897, %v899
        %v905 = vsel %vm463, %v752, %v751
        %v906 = vsel %vm463, %v754, %v753
        %v907 = vsel %vm463, %v756, %v755
        %v908 = vsel %vm450, %v905, %v861
        %v909 = vsel %vm450, %v906, %v862
        %v910 = vsel %vm450, %v907, %v854
        %v911 = vsel %vm453, %v863, %v878
        %v912 = vsel %vm453, %v864, %v879
        %v913 = vsel %vm453, %v860, %v876
        %v914 = vsel %vm354, %v911, %v889
        %v915 = vsel %vm354, %v912, %v890
        %v916 = vsel %vm354, %v913, %v888
        %v917 = vsel %vm384, %v889, %v900
        %v918 = vsel %vm384, %v890, %v901
        %v919 = vsel %vm384, %v888, %v899
        %929 = vrot.lane.b32.xlu0 %v908, 111
        %v930 = vpop.permute.xlu0 %929
        %931 = vrot.lane.b32.xlu0 %v909, 111
        %v932 = vpop.permute.xlu0 %931
        %933 = vrot.lane.b32.xlu0 %v910, 111
        %v934 = vpop.permute.xlu0 %933
        %935 = vrot.lane.b32.xlu0 %v914, 111
        %v936 = vpop.permute.xlu0 %935
        %937 = vrot.lane.b32.xlu0 %v915, 111
        %v938 = vpop.permute.xlu0 %937
        %939 = vrot.lane.b32.xlu0 %v916, 111
        %v940 = vpop.permute.xlu0 %939
        %941 = vrot.lane.b32.xlu0 %v917, 111
        %v942 = vpop.permute.xlu0 %941
        %943 = vrot.lane.b32.xlu0 %v918, 111
        %v944 = vpop.permute.xlu0 %943
        %945 = vrot.lane.b32.xlu0 %v919, 111
        %v946 = vpop.permute.xlu0 %945
        %947 = vrot.lane.b32.xlu0 %v900, 111
        %v948 = vpop.permute.xlu0 %947
        %949 = vrot.lane.b32.xlu0 %v901, 111
        %v950 = vpop.permute.xlu0 %949
        %951 = vrot.lane.b32.xlu0 %v899, 111
        %v952 = vpop.permute.xlu0 %951
        %v953 = vsel %vm421, %v930, %v932
        %v954 = vsel %vm421, %v932, %v934
        %v955 = vsel %vm421, %v936, %v938
        %v956 = vsel %vm421, %v938, %v940
        %v957 = vsel %vm421, %v942, %v944
        %v958 = vsel %vm421, %v944, %v946
        %v959 = vsel %vm421, %v948, %v950
        %v960 = vsel %vm421, %v950, %v952
        %v967 = vsel %vm463, %v959, 0
        %v969 = vsel %vm463, %v960, 0
        %971 = vmatprep.subr.mxu0 %v820
        %972 = vmatpush1.msra.mxu0 %v819
        %973 = vmatprep.subr.mxu0 %v826
        %974 = vmatpush1.msra.mxu0 %v825
        %975 = vmatprep.subr.mxu0 %v830
        %976 = vmatpush1.msra.mxu0 %v829
        %977 = vmatprep.subr.mxu0 %v834
        %978 = vmatpush1.msra.mxu0 %v833
        %979 = vmatprep.subr.mxu0 %v840
        %980 = vmatpush1.msra.mxu0 %v839
        %981 = vmatprep.subr.mxu0 %v842
        %982 = vmatpush1.msra.mxu0 %v841
        %983 = vmatprep.subr.mxu0 %v954
        %984 = vmatpush1.msra.mxu0 %v953
        %985 = vmatprep.subr.mxu0 %v956
        %986 = vmatpush1.msra.mxu0 %v955
        %987 = vmatprep.subr.mxu0 %v958
        %988 = vmatpush1.msra.mxu0 %v957
        %989 = vmatprep.subr.mxu0 %v969
        %990 = vmatpush1.msra.mxu0 %v967
        %991 = vmatprep.subr.mxu0 0.0
        %992 = vmatpush1.msra.mxu0 0.0
        %993 = vmatprep.subr.mxu0 0.0
        %994 = vmatpush1.msra.mxu0 0.0
        %995 = vmatprep.subr.mxu0 0.0
        %996 = vmatpush1.msra.mxu0 0.0
        %997 = vmatprep.subr.mxu0 0.0
        %998 = vmatpush1.msra.mxu0 0.0
        %999 = vmatprep.subr.mxu0 0.0
        %1000 = vmatpush1.msra.mxu0 0.0
        %1001 = vmatprep.subr.mxu0 0.0
        %1002 = vmatpush1.msra.mxu0 0.0
        %1003 = vmatprep.subr.mxu0 0.0
        %1004 = vmatpush1.msra.mxu0 0.0
        %1005 = vmatprep.subr.mxu0 0.0
        %1006 = vmatpush1.msra.mxu0 0.0
        %1007 = vmatprep.subr.mxu0 0.0
        %1008 = vmatpush1.msra.mxu0 0.0
        %1009 = vmatprep.subr.mxu0 0.0
        %1010 = vmatpush1.msra.mxu0 0.0
        %1011 = vmatprep.subr.mxu0 0.0
        %1012 = vmatpush1.msra.mxu0 0.0
        %1013 = vmatprep.subr.mxu0 0.0
        %1014 = vmatpush1.msra.mxu0 0.0
        %1015 = vmatprep.subr.mxu0 0.0
        %1016 = vmatpush1.msra.mxu0 0.0
        %1017 = vmatprep.subr.mxu0 0.0
        %1018 = vmatpush1.msra.mxu0 0.0
        %1019 = vmatprep.subr.mxu0 0.0
        %1020 = vmatpush1.msra.mxu0 0.0
        %1021 = vmatprep.subr.mxu0 0.0
        %1022 = vmatpush1.msra.mxu0 0.0
        %1023 = vmatprep.subr.mxu0 0.0
        %1024 = vmatpush1.msra.mxu0 0.0
        %1025 = vmatprep.subr.mxu0 0.0
        %1026 = vmatpush1.msra.mxu0 0.0
        %1027 = vmatprep.subr.mxu0 0.0
        %1028 = vmatpush1.msra.mxu0 0.0
        %1029 = vmatprep.subr.mxu0 0.0
        %1030 = vmatpush1.msra.mxu0 0.0
        %1031 = vmatprep.subr.mxu0 0.0
        %1032 = vmatpush1.msra.mxu0 0.0
        %1033 = vmatprep.subr.mxu0 0.0
        %1034 = vmatpush1.msra.mxu0 0.0
        %1035 = vmatprep.mubr.f32.mxu0 0.0
        %1036 = vmatmul.mubr.f32.gmra.mrb[0].mxu0 %v621
        %v1037 = vpop.f32.mrb[0].mxu0
        %v1038 = vadd.f32 0.0, %v1037
        %v1039 = vpop.f32.mrb[0].mxu0
        %v1040 = vadd.f32 0.0, %v1039
        %1041 = vdwg.mxu0
        %v1042 = vmax.f32 %v694, %v1038
        %v1043 = vmax.f32 %v696, %v1040
        %v1044 = vsel %vm450, %v310, %v721
        %v1045 = vsel %vm450, %v311, %v722
        %v1046 = vrot.slane %v305, 2
        %v1047 = vsel %vm450, %v312, %v1046
        %1048 = vrot.lane.b32.xlu0 %v1044, 126
        %v1049 = vpop.permute.xlu0 %1048
        %1050 = vrot.lane.b32.xlu0 %v1045, 126
        %v1051 = vpop.permute.xlu0 %1050
        %1052 = vrot.lane.b32.xlu0 %v1047, 126
        %v1053 = vpop.permute.xlu0 %1052
        %v1054 = vsel %vm333, %v1049, %v1051
        %v1055 = vsel %vm333, %v1051, %v1053
        %1058 = vrot.lane.b32.xlu0 %v501, 110
        %v1059 = vpop.permute.xlu0 %1058
        %1060 = vrot.lane.b32.xlu0 %v504, 110
        %v1061 = vpop.permute.xlu0 %1060
        %1062 = vrot.lane.b32.xlu0 %v507, 110
        %v1063 = vpop.permute.xlu0 %1062
        %v1064 = vsel %vm435, %v1059, %v1061
        %v1065 = vsel %vm435, %v1061, %v1063
        %1068 = vrot.lane.b32.xlu0 %v300, 112
        %v1069 = vpop.permute.xlu0 %1068
        %1070 = vrot.lane.b32.xlu0 %v301, 112
        %v1071 = vpop.permute.xlu0 %1070
        %1072 = vrot.lane.b32.xlu0 %v304, 112
        %v1073 = vpop.permute.xlu0 %1072
        %1074 = vrot.lane.b32.xlu0 %v302, 112
        %v1075 = vpop.permute.xlu0 %1074
        %1076 = vrot.lane.b32.xlu0 %v303, 112
        %v1077 = vpop.permute.xlu0 %1076
        %1078 = vrot.lane.b32.xlu0 %v305, 112
        %v1079 = vpop.permute.xlu0 %1078
        %v1080 = vsel %vm410, %v1069, %v1071
        %v1081 = vsel %vm410, %v1071, %v1073
        %v1082 = vsel %vm410, %v1075, %v1077
        %v1083 = vsel %vm410, %v1077, %v1079
        %1088 = vrot.lane.b32.xlu0 %v1044, 111
        %v1089 = vpop.permute.xlu0 %1088
        %1090 = vrot.lane.b32.xlu0 %v1045, 111
        %v1091 = vpop.permute.xlu0 %1090
        %1092 = vrot.lane.b32.xlu0 %v1047, 111
        %v1093 = vpop.permute.xlu0 %1092
        %v1094 = vsel %vm421, %v1089, %v1091
        %v1095 = vsel %vm421, %v1091, %v1093
        %1098 = vrot.lane.b32.xlu0 %v721, 111
        %v1099 = vpop.permute.xlu0 %1098
        %1100 = vrot.lane.b32.xlu0 %v722, 111
        %v1101 = vpop.permute.xlu0 %1100
        %1102 = vrot.lane.b32.xlu0 %v1046, 111
        %v1103 = vpop.permute.xlu0 %1102
        %v1104 = vsel %vm421, %v1099, %v1101
        %v1105 = vsel %vm421, %v1101, %v1103
        %1108 = vrot.lane.b32.xlu0 %v726, 110
        %v1109 = vpop.permute.xlu0 %1108
        %1110 = vrot.lane.b32.xlu0 %v728, 110
        %v1111 = vpop.permute.xlu0 %1110
        %1112 = vrot.lane.b32.xlu0 %v730, 110
        %v1113 = vpop.permute.xlu0 %1112
        %v1114 = vsel %vm435, %v1109, %v1111
        %v1115 = vsel %vm435, %v1111, %v1113
        %1118 = vrot.lane.b32.xlu0 %v385, 96
        %v1119 = vpop.permute.xlu0 %1118
        %1120 = vrot.lane.b32.xlu0 %v388, 96
        %v1121 = vpop.permute.xlu0 %1120
        %1122 = vrot.lane.b32.xlu0 %v391, 96
        %v1123 = vpop.permute.xlu0 %1122
        %vm1124 = vcmask 785408
        %v1125 = vsel %vm1124, %v1119, %v1121
        %v1126 = vsel %vm1124, %v1121, %v1123
        %v1129 = vsel %vm453, %v863, %v1054
        %v1130 = vsel %vm453, %v864, %v1055
        %v1131 = vsel %vm354, %v1129, %v889
        %v1132 = vsel %vm354, %v1130, %v890
        %v1133 = vsel %vm463, %v900, %v1064
        %v1134 = vsel %vm463, %v901, %v1065
        %v1135 = vsel %vm450, %v1133, %v1080
        %v1136 = vsel %vm450, %v1134, %v1081
        %v1137 = vsel %vm453, %v1082, %v1094
        %v1138 = vsel %vm453, %v1083, %v1095
        %v1139 = vsel %vm354, %v1137, %v1104
        %v1140 = vsel %vm354, %v1138, %v1105
        %v1141 = vsel %vm458, %v1104, %v1114
        %v1142 = vsel %vm458, %v1105, %v1115
        %v1143 = vsel %vm384, %v1141, %v1125
        %v1144 = vsel %vm384, %v1142, %v1126
        %v1154 = vsel %vm463, %v391, %v705
        %v1155 = vsel %vm450, %v1154, %v705
        %v1156 = vsel %vm340, %v705, %v716
        %v1157 = vsel %vm453, %v821, %v1044
        %v1158 = vsel %vm453, %v822, %v1045
        %v1159 = vsel %vm453, %v1156, %v1047
        %v1160 = vsel %vm354, %v1157, %v721
        %v1161 = vsel %vm354, %v1158, %v722
        %v1162 = vsel %vm354, %v1159, %v1046
        %v1163 = vsel %vm458, %v1046, %v736
        %v1164 = vsel %vm384, %v1163, %v746
        %1174 = vrot.lane.b32.xlu0 %v819, 96
        %v1175 = vpop.permute.xlu0 %1174
        %1176 = vrot.lane.b32.xlu0 %v820, 96
        %v1177 = vpop.permute.xlu0 %1176
        %1178 = vrot.lane.b32.xlu0 %v1155, 96
        %v1179 = vpop.permute.xlu0 %1178
        %1180 = vrot.lane.b32.xlu0 %v1160, 96
        %v1181 = vpop.permute.xlu0 %1180
        %1182 = vrot.lane.b32.xlu0 %v1161, 96
        %v1183 = vpop.permute.xlu0 %1182
        %1184 = vrot.lane.b32.xlu0 %v1162, 96
        %v1185 = vpop.permute.xlu0 %1184
        %1186 = vrot.lane.b32.xlu0 %v829, 96
        %v1187 = vpop.permute.xlu0 %1186
        %1188 = vrot.lane.b32.xlu0 %v830, 96
        %v1189 = vpop.permute.xlu0 %1188
        %1190 = vrot.lane.b32.xlu0 %v1164, 96
        %v1191 = vpop.permute.xlu0 %1190
        %1192 = vrot.lane.b32.xlu0 %v763, 96
        %v1193 = vpop.permute.xlu0 %1192
        %1194 = vrot.lane.b32.xlu0 %v764, 96
        %v1195 = vpop.permute.xlu0 %1194
        %1196 = vrot.lane.b32.xlu0 %v762, 96
        %v1197 = vpop.permute.xlu0 %1196
        %v1198 = vsel %vm1124, %v1175, %v1177
        %v1199 = vsel %vm1124, %v1177, %v1179
        %v1200 = vsel %vm1124, %v1181, %v1183
        %v1201 = vsel %vm1124, %v1183, %v1185
        %v1202 = vsel %vm1124, %v1187, %v1189
        %v1203 = vsel %vm1124, %v1189, %v1191
        %v1204 = vsel %vm1124, %v1193, %v1195
        %v1205 = vsel %vm1124, %v1195, %v1197
        %v1212 = vsel %vm463, %v1204, 0
        %v1214 = vsel %vm463, %v1205, 0
        %1216 = vmatprep.subr.mxu0 %v909
        %1217 = vmatpush1.msra.mxu0 %v908
        %1218 = vmatprep.subr.mxu0 %v1132
        %1219 = vmatpush1.msra.mxu0 %v1131
        %1220 = vmatprep.subr.mxu0 %v918
        %1221 = vmatpush1.msra.mxu0 %v917
        %1222 = vmatprep.subr.mxu0 %v1136
        %1223 = vmatpush1.msra.mxu0 %v1135
        %1224 = vmatprep.subr.mxu0 %v1140
        %1225 = vmatpush1.msra.mxu0 %v1139
        %1226 = vmatprep.subr.mxu0 %v1144
        %1227 = vmatpush1.msra.mxu0 %v1143
        %1228 = vmatprep.subr.mxu0 %v1199
        %1229 = vmatpush1.msra.mxu0 %v1198
        %1230 = vmatprep.subr.mxu0 %v1201
        %1231 = vmatpush1.msra.mxu0 %v1200
        %1232 = vmatprep.subr.mxu0 %v1203
        %1233 = vmatpush1.msra.mxu0 %v1202
        %1234 = vmatprep.subr.mxu0 %v1214
        %1235 = vmatpush1.msra.mxu0 %v1212
        %1236 = vmatprep.subr.mxu0 0.0
        %1237 = vmatpush1.msra.mxu0 0.0
        %1238 = vmatprep.subr.mxu0 0.0
        %1239 = vmatpush1.msra.mxu0 0.0
        %1240 = vmatprep.subr.mxu0 0.0
        %1241 = vmatpush1.msra.mxu0 0.0
        %1242 = vmatprep.subr.mxu0 0.0
        %1243 = vmatpush1.msra.mxu0 0.0
        %1244 = vmatprep.subr.mxu0 0.0
        %1245 = vmatpush1.msra.mxu0 0.0
        %1246 = vmatprep.subr.mxu0 0.0
        %1247 = vmatpush1.msra.mxu0 0.0
        %1248 = vmatprep.subr.mxu0 0.0
        %1249 = vmatpush1.msra.mxu0 0.0
        %1250 = vmatprep.subr.mxu0 0.0
        %1251 = vmatpush1.msra.mxu0 0.0
        %1252 = vmatprep.subr.mxu0 0.0
        %1253 = vmatpush1.msra.mxu0 0.0
        %1254 = vmatprep.subr.mxu0 0.0
        %1255 = vmatpush1.msra.mxu0 0.0
        %1256 = vmatprep.subr.mxu0 0.0
        %1257 = vmatpush1.msra.mxu0 0.0
        %1258 = vmatprep.subr.mxu0 0.0
        %1259 = vmatpush1.msra.mxu0 0.0
        %1260 = vmatprep.subr.mxu0 0.0
        %1261 = vmatpush1.msra.mxu0 0.0
        %1262 = vmatprep.subr.mxu0 0.0
        %1263 = vmatpush1.msra.mxu0 0.0
        %1264 = vmatprep.subr.mxu0 0.0
        %1265 = vmatpush1.msra.mxu0 0.0
        %1266 = vmatprep.subr.mxu0 0.0
        %1267 = vmatpush1.msra.mxu0 0.0
        %1268 = vmatprep.subr.mxu0 0.0
        %1269 = vmatpush1.msra.mxu0 0.0
        %1270 = vmatprep.subr.mxu0 0.0
        %1271 = vmatpush1.msra.mxu0 0.0
        %1272 = vmatprep.subr.mxu0 0.0
        %1273 = vmatpush1.msra.mxu0 0.0
        %1274 = vmatprep.subr.mxu0 0.0
        %1275 = vmatpush1.msra.mxu0 0.0
        %1276 = vmatprep.subr.mxu0 0.0
        %1277 = vmatpush1.msra.mxu0 0.0
        %1278 = vmatprep.subr.mxu0 0.0
        %1279 = vmatpush1.msra.mxu0 0.0
        %1280 = vmatprep.mubr.f32.mxu0 0.0
        %1281 = vmatmul.mubr.f32.gmra.mrb[0].mxu0 %v621
        %v1282 = vpop.f32.mrb[0].mxu0
        %v1283 = vadd.f32 0.0, %v1282
        %v1284 = vpop.f32.mrb[0].mxu0
        %v1285 = vadd.f32 0.0, %v1284
        %1286 = vdwg.mxu0
        %v1287 = vmax.f32 %v1042, %v1283
        %v1288 = vmax.f32 %v1043, %v1285
        %1289 = vrot.lane.b32.xlu0 %v502, 126
        %v1290 = vpop.permute.xlu0 %1289
        %1291 = vrot.lane.b32.xlu0 %v505, 126
        %v1292 = vpop.permute.xlu0 %1291
        %1293 = vrot.lane.b32.xlu0 %v508, 126
        %v1294 = vpop.permute.xlu0 %1293
        %v1295 = vsel %vm333, %v1290, %v1292
        %v1296 = vsel %vm333, %v1292, %v1294
        %1301 = vrot.lane.b32.xlu0 %v386, 112
        %v1302 = vpop.permute.xlu0 %1301
        %1303 = vrot.lane.b32.xlu0 %v389, 112
        %v1304 = vpop.permute.xlu0 %1303
        %1305 = vrot.lane.b32.xlu0 %v392, 112
        %v1306 = vpop.permute.xlu0 %1305
        %v1307 = vsel %vm410, %v1302, %v1304
        %v1308 = vsel %vm410, %v1304, %v1306
        %1311 = vrot.lane.b32.xlu0 %v503, 111
        %v1312 = vpop.permute.xlu0 %1311
        %1313 = vrot.lane.b32.xlu0 %v506, 111
        %v1314 = vpop.permute.xlu0 %1313
        %1315 = vrot.lane.b32.xlu0 %v509, 111
        %v1316 = vpop.permute.xlu0 %1315
        %v1317 = vsel %vm421, %v1312, %v1314
        %v1318 = vsel %vm421, %v1314, %v1316
        %1321 = vrot.lane.b32.xlu0 %v502, 111
        %v1322 = vpop.permute.xlu0 %1321
        %1323 = vrot.lane.b32.xlu0 %v505, 111
        %v1324 = vpop.permute.xlu0 %1323
        %1325 = vrot.lane.b32.xlu0 %v508, 111
        %v1326 = vpop.permute.xlu0 %1325
        %v1327 = vsel %vm421, %v1322, %v1324
        %v1328 = vsel %vm421, %v1324, %v1326
        %v1331 = vrot.slane %v305, 7
        %v1332 = vsel %vm340, %v710, %v1331
        %1333 = vrot.lane.b32.xlu0 %v341, 110
        %v1334 = vpop.permute.xlu0 %1333
        %1335 = vrot.lane.b32.xlu0 %v342, 110
        %v1336 = vpop.permute.xlu0 %1335
        %1337 = vrot.lane.b32.xlu0 %v710, 110
        %v1338 = vpop.permute.xlu0 %1337
        %1339 = vrot.lane.b32.xlu0 %v344, 110
        %v1340 = vpop.permute.xlu0 %1339
        %1341 = vrot.lane.b32.xlu0 %v346, 110
        %v1342 = vpop.permute.xlu0 %1341
        %1343 = vrot.lane.b32.xlu0 %v1332, 110
        %v1344 = vpop.permute.xlu0 %1343
        %v1345 = vsel %vm435, %v1334, %v1336
        %v1346 = vsel %vm435, %v1336, %v1338
        %v1347 = vsel %vm435, %v1340, %v1342
        %v1348 = vsel %vm435, %v1342, %v1344
        %1353 = vrot.lane.b32.xlu0 %v343, 110
        %v1354 = vpop.permute.xlu0 %1353
        %1355 = vrot.lane.b32.xlu0 %v345, 110
        %v1356 = vpop.permute.xlu0 %1355
        %1357 = vrot.lane.b32.xlu0 %v1331, 110
        %v1358 = vpop.permute.xlu0 %1357
        %v1359 = vsel %vm435, %v1354, %v1356
        %v1360 = vsel %vm435, %v1356, %v1358
        %1363 = vrot.lane.b32.xlu0 %v426, 96
        %v1364 = vpop.permute.xlu0 %1363
        %1365 = vrot.lane.b32.xlu0 %v427, 96
        %v1366 = vpop.permute.xlu0 %1365
        %1367 = vrot.lane.b32.xlu0 %v428, 96
        %v1368 = vpop.permute.xlu0 %1367
        %v1369 = vsel %vm1124, %v1364, %v1366
        %v1370 = vsel %vm1124, %v1366, %v1368
        %v1373 = vsel %vm453, %v557, %v1295
        %v1374 = vsel %vm453, %v558, %v1296
        %v1375 = vsel %vm354, %v1373, %v527
        %v1376 = vsel %vm354, %v1374, %v528
        %v1377 = vsel %vm450, %v549, %v1307
        %v1378 = vsel %vm450, %v550, %v1308
        %v1379 = vsel %vm340, %v1307, %v1317
        %v1380 = vsel %vm340, %v1308, %v1318
        %v1381 = vsel %vm453, %v1379, %v1327
        %v1382 = vsel %vm453, %v1380, %v1328
        %v1383 = vsel %vm354, %v1381, %v1345
        %v1384 = vsel %vm354, %v1382, %v1346
        %v1385 = vsel %vm458, %v1347, %v1359
        %v1386 = vsel %vm458, %v1348, %v1360
        %v1387 = vsel %vm384, %v1385, %v1369
        %v1388 = vsel %vm384, %v1386, %v1370
        %1390 = vrot.lane.b32.xlu0 %v502, 1
        %v1391 = vpop.permute.xlu0 %1390
        %1392 = vrot.lane.b32.xlu0 %v505, 1
        %v1393 = vpop.permute.xlu0 %1392
        %1394 = vrot.lane.b32.xlu0 %v508, 1
        %v1395 = vpop.permute.xlu0 %1394
        %vm1396 = vcmask 7168
        %v1397 = vsel %vm1396, %v1391, %v1393
        %v1398 = vsel %vm1396, %v1393, %v1395
        %v1406 = vsel %vm450, %v304, %v318
        %v1407 = vsel %vm453, %v320, %v1391
        %v1408 = vsel %vm453, %v321, %v1397
        %v1409 = vsel %vm453, %v318, %v1398
        %v1410 = vsel %vm354, %v1407, %v341
        %v1411 = vsel %vm354, %v1408, %v342
        %v1412 = vsel %vm354, %v1409, %v710
        %v1413 = vsel %vm458, %v1332, %v1331
        %v1414 = vsel %vm384, %v1413, %v369
        %1424 = vrot.lane.b32.xlu0 %v451, 95
        %v1425 = vpop.permute.xlu0 %1424
        %1426 = vrot.lane.b32.xlu0 %v452, 95
        %v1427 = vpop.permute.xlu0 %1426
        %1428 = vrot.lane.b32.xlu0 %v1406, 95
        %v1429 = vpop.permute.xlu0 %1428
        %1430 = vrot.lane.b32.xlu0 %v1410, 95
        %v1431 = vpop.permute.xlu0 %1430
        %1432 = vrot.lane.b32.xlu0 %v1411, 95
        %v1433 = vpop.permute.xlu0 %1432
        %1434 = vrot.lane.b32.xlu0 %v1412, 95
        %v1435 = vpop.permute.xlu0 %1434
        %1436 = vrot.lane.b32.xlu0 %v461, 95
        %v1437 = vpop.permute.xlu0 %1436
        %1438 = vrot.lane.b32.xlu0 %v462, 95
        %v1439 = vpop.permute.xlu0 %1438
        %1440 = vrot.lane.b32.xlu0 %v1414, 95
        %v1441 = vpop.permute.xlu0 %1440
        %1442 = vrot.lane.b32.xlu0 %v380, 95
        %v1443 = vpop.permute.xlu0 %1442
        %1444 = vrot.lane.b32.xlu0 %v381, 95
        %v1445 = vpop.permute.xlu0 %1444
        %1446 = vrot.lane.b32.xlu0 %v379, 95
        %v1447 = vpop.permute.xlu0 %1446
        %vm1448 = vcmask 777216
        %v1449 = vsel %vm1448, %v1425, %v1427
        %v1450 = vsel %vm1448, %v1427, %v1429
        %v1451 = vsel %vm1448, %v1431, %v1433
        %v1452 = vsel %vm1448, %v1433, %v1435
        %v1453 = vsel %vm1448, %v1437, %v1439
        %v1454 = vsel %vm1448, %v1439, %v1441
        %v1455 = vsel %vm1448, %v1443, %v1445
        %v1456 = vsel %vm1448, %v1445, %v1447
        %v1463 = vsel %vm463, %v1455, 0
        %v1465 = vsel %vm463, %v1456, 0
        %1467 = vmatprep.subr.mxu0 %v555
        %1468 = vmatpush1.msra.mxu0 %v554
        %1469 = vmatprep.subr.mxu0 %v1376
        %1470 = vmatpush1.msra.mxu0 %v1375
        %1471 = vmatprep.subr.mxu0 %v570
        %1472 = vmatpush1.msra.mxu0 %v569
        %1473 = vmatprep.subr.mxu0 %v1378
        %1474 = vmatpush1.msra.mxu0 %v1377
        %1475 = vmatprep.subr.mxu0 %v1384
        %1476 = vmatpush1.msra.mxu0 %v1383
        %1477 = vmatprep.subr.mxu0 %v1388
        %1478 = vmatpush1.msra.mxu0 %v1387
        %1479 = vmatprep.subr.mxu0 %v1450
        %1480 = vmatpush1.msra.mxu0 %v1449
        %1481 = vmatprep.subr.mxu0 %v1452
        %1482 = vmatpush1.msra.mxu0 %v1451
        %1483 = vmatprep.subr.mxu0 %v1454
        %1484 = vmatpush1.msra.mxu0 %v1453
        %1485 = vmatprep.subr.mxu0 %v1465
        %1486 = vmatpush1.msra.mxu0 %v1463
        %1487 = vmatprep.subr.mxu0 0.0
        %1488 = vmatpush1.msra.mxu0 0.0
        %1489 = vmatprep.subr.mxu0 0.0
        %1490 = vmatpush1.msra.mxu0 0.0
        %1491 = vmatprep.subr.mxu0 0.0
        %1492 = vmatpush1.msra.mxu0 0.0
        %1493 = vmatprep.subr.mxu0 0.0
        %1494 = vmatpush1.msra.mxu0 0.0
        %1495 = vmatprep.subr.mxu0 0.0
        %1496 = vmatpush1.msra.mxu0 0.0
        %1497 = vmatprep.subr.mxu0 0.0
        %1498 = vmatpush1.msra.mxu0 0.0
        %1499 = vmatprep.subr.mxu0 0.0
        %1500 = vmatpush1.msra.mxu0 0.0
        %1501 = vmatprep.subr.mxu0 0.0
        %1502 = vmatpush1.msra.mxu0 0.0
        %1503 = vmatprep.subr.mxu0 0.0
        %1504 = vmatpush1.msra.mxu0 0.0
        %1505 = vmatprep.subr.mxu0 0.0
        %1506 = vmatpush1.msra.mxu0 0.0
        %1507 = vmatprep.subr.mxu0 0.0
        %1508 = vmatpush1.msra.mxu0 0.0
        %1509 = vmatprep.subr.mxu0 0.0
        %1510 = vmatpush1.msra.mxu0 0.0
        %1511 = vmatprep.subr.mxu0 0.0
        %1512 = vmatpush1.msra.mxu0 0.0
        %1513 = vmatprep.subr.mxu0 0.0
        %1514 = vmatpush1.msra.mxu0 0.0
        %1515 = vmatprep.subr.mxu0 0.0
        %1516 = vmatpush1.msra.mxu0 0.0
        %1517 = vmatprep.subr.mxu0 0.0
        %1518 = vmatpush1.msra.mxu0 0.0
        %1519 = vmatprep.subr.mxu0 0.0
        %1520 = vmatpush1.msra.mxu0 0.0
        %1521 = vmatprep.subr.mxu0 0.0
        %1522 = vmatpush1.msra.mxu0 0.0
        %1523 = vmatprep.subr.mxu0 0.0
        %1524 = vmatpush1.msra.mxu0 0.0
        %1525 = vmatprep.subr.mxu0 0.0
        %1526 = vmatpush1.msra.mxu0 0.0
        %1527 = vmatprep.subr.mxu0 0.0
        %1528 = vmatpush1.msra.mxu0 0.0
        %1529 = vmatprep.subr.mxu0 0.0
        %1530 = vmatpush1.msra.mxu0 0.0
        %1531 = vmatprep.mubr.f32.mxu0 0.0
        %1532 = vmatmul.mubr.f32.gmra.mrb[0].mxu0 %v621
        %v1533 = vpop.f32.mrb[0].mxu0
        %v1534 = vadd.f32 0.0, %v1533
        %v1535 = vpop.f32.mrb[0].mxu0
        %v1536 = vadd.f32 0.0, %v1535
        %1537 = vdwg.mxu0
        %v1538 = vmax.f32 %v1287, %v1534
        %v1539 = vmax.f32 %v1288, %v1536
        %v1540 = vld [vmem:[%s1] sm:$0xff]
        %1542 = vset.pattern.permute.xlu0 0
        %1543 = vperm.xlu0 %1542, %v1540
        %v1544 = vpop.permute.xlu0 %1543
        %v1546 = vadd.f32 %v1538, %v1544
        %v1547 = vadd.f32 %v1539, %v1544
        %v1548 = vmax.f32 %v1546, 0.0
        %v1549 = vmax.f32 %v1547, 0.0
        %v1550 = vpack.c.bf16 %v1548, %v1548
        %v1551 = vpack.c.bf16 %v1549, %v1549
        %v1554 = vunpack.c.l.b16 %v1550
        %v1555 = vunpack.c.l.b16 %v1551
        %v1556 = vpack.c.b16 %v1555, %v1554
        %1558 = vst [vmem:[%s298] sm:$0xff] %v1556
        %s1559 = smul.u32 2, %s15
        %p1560 = scmp.lt.s32.totalorder %s1559, 3
        %s1561 = scalar_select %p1560, %s1559, 3
        %s1562 = smul.addr %s1561, 4
        %s1563 = scalar_lea.vmem %s4, %s1562
        // Predicated region
        $region98: #{net_digit5_forward.3} parent=88 // pred_check
          %p1564 = pneg %p135
        $region99: #{net_digit5_forward.3} parent=88 // pred_check_branch
          %1566 = sbr.rel (%p1564) target = $region101
        $region100: #{net_digit5_forward.3} parent=88 // pred_region
          %s1567 = smul.u32 2, %s15
        $region101: #{net_digit5_forward.3} parent=88 // pred_fallthru
          _
      $region89: #{net_digit5_forward.3} parent=5 // pred_fallthru
        _
      %p1568 = scmp.le.s32.totalorder 2, %s10
      // Predicated region
      $region102: #{net_digit5_forward.3} parent=5 // pred_check
        %p1569 = pneg %p1568
      $region103: #{net_digit5_forward.3} parent=5 // pred_check_branch
        %1571 = sbr.rel (%p1569) target = $region105
      $region104: #{net_digit5_forward.3} parent=5 // pred_region
        %s1572 = ssub.s32 %s10, 2
        // Predicated region
        $region106: #{net_digit5_forward.3} parent=104 // pred_check
          %p1573 = pneg %p141
        $region107: #{net_digit5_forward.3} parent=104 // pred_check_branch
          %1575 = sbr.rel (%p1573) target = $region109
        $region108: #{net_digit5_forward.3} parent=104 // pred_region
          %s1576 = smul.u32 2, %s16
          %p1577 = scmp.lt.s32.totalorder %s1576, 3
          %s1578 = scalar_select %p1577, %s1576, 3
          %s1579 = smul.addr %s1578, 4
          %s1580 = scalar_lea.vmem %s4, %s1579
        $region109: #{net_digit5_forward.3} parent=104 // pred_fallthru
          _
      $region105: #{net_digit5_forward.3} parent=5 // pred_fallthru
        _
    $region6: #{net_digit5_forward.3} parent=1 // loop_footer
      %s14 = sadd.s32 1, %s10
    $region7: #{net_digit5_forward.3} parent=1 // loop_footer_branch
      %9 = sbr.rel target = $region3
    $region8: #{net_digit5_forward.3} parent=1 // loop_exit
      _

</llo_original>
